<compile_context>
chip_gen: v7x
topology: tpu7x:2x2x1
jax: 0.10.0
libtpu: 0.0.40
codegen_flags: <defaults>
</compile_context>

<pallas_src>
import functools

import jax
import jax.numpy as jnp
from jax import lax
from jax.experimental import pallas as pl
from jax.experimental.pallas import tpu as pltpu

LANES = 128  # TPU vreg lane width


# ---------------------------------------------------------------------------
# Fused forward kernel.
#   x_ref   : (T*B, Din)   time-major rows (row = t*B + b)
#   w1_ref  : (Din, H),        b1_ref : (1, H)
#   wih_ref : (L, H, 4H)       input->gate weights, pre-transposed
#   whh_ref : (L, H, 4H)       hidden->gate weights, pre-transposed
#   bl_ref  : (L, 1, 4H)       folded bias (b_ih + b_hh)
#   wfc_ref : (H, Npad),       bfc_ref : (1, Npad)   (zero-padded to 128 lanes)
#   o_ref   : (T*B, Npad)      time-major output
#   seq_ref : (T*B, H)         VMEM scratch: top-layer output sequence
# ---------------------------------------------------------------------------
def _lstm_model_kernel(x_ref, w1_ref, b1_ref, wih_ref, whh_ref, bl_ref,
                       wfc_ref, bfc_ref, o_ref, seq_ref, *, B, T):
    H = w1_ref.shape[1]
    L = wih_ref.shape[0]
    G = 4 * H

    # ---- linear1 over all time-major rows at once --------------------------
    seq0 = (jnp.dot(x_ref[...], w1_ref[...], preferred_element_type=jnp.float32)
            + b1_ref[...])                                        # (T*B, H)

    # ---- layer-0 input projection hoisted out of the recurrence ------------
    gates0 = (jnp.dot(seq0, wih_ref[0], preferred_element_type=jnp.float32)
              + bl_ref[0])                                        # (T*B, 4H)

    # ---- hoisted constants for the single-tanh fused gate nonlinearity -----
    lane = lax.broadcasted_iota(jnp.int32, (B, G), 1)
    is_cell = (lane >= 2 * H) & (lane < 3 * H)      # "g" gate in [i, f, g, o]
    pre_scale = jnp.where(is_cell, 1.0, 0.5).astype(jnp.float32)

    # ---- hoisted per-layer weight / bias loads (tiny, stay resident) -------
    whhs = [whh_ref[l] for l in range(L)]                         # (H, 4H)
    wihs = [wih_ref[l] for l in range(L)]                         # (H, 4H)
    biases = [jnp.broadcast_to(bl_ref[l], (B, G)) for l in range(L)]

    def cell(g, c_prev):
        # sigmoid(x) = 0.5*tanh(x/2) + 0.5  ->  single tanh over (B, 4H).
        tg = jnp.tanh(g * pre_scale)
        act = jnp.where(is_cell, tg, 0.5 * tg + 0.5)
        i_g = act[:, 0 * H:1 * H]
        f_g = act[:, 1 * H:2 * H]
        g_g = act[:, 2 * H:3 * H]
        o_g = act[:, 3 * H:4 * H]
        c_new = f_g * c_prev + i_g * g_g
        h_new = o_g * jnp.tanh(c_new)
        return h_new, c_new

    h = [jnp.zeros((B, H), jnp.float32) for _ in range(L)]
    c = [jnp.zeros((B, H), jnp.float32) for _ in range(L)]

    # ---- wavefront (diagonal) schedule over (layer, time) ------------------
    # At step s, every cell with l + t == s consumes only step s-1 results
    # (snapshot lists h_prev/c_prev), so the per-step cells are independent
    # and their MXU->EUP->VPU latency overlaps.
    for s in range(L + T - 1):                      # static unroll (small T, L)
        h_prev = list(h)
        c_prev = list(c)
        for l in range(L):
            t = s - l
            if not (0 <= t < T):
                continue
            if l == 0:
                g = (gates0[t * B:(t + 1) * B, :]
                     + jnp.dot(h_prev[0], whhs[0],
                               preferred_element_type=jnp.float32))
            else:
                g = (jnp.dot(h_prev[l - 1], wihs[l],
                             preferred_element_type=jnp.float32)
                     + jnp.dot(h_prev[l], whhs[l],
                               preferred_element_type=jnp.float32)
                     + biases[l])
            h[l], c[l] = cell(g, c_prev[l])
            if l == L - 1:
                # Per-step store into the VMEM scratch sequence buffer
                # (store slot is otherwise idle; avoids a stack relayout).
                seq_ref[t * B:(t + 1) * B, :] = h[l]
        # TODO(synk): nn.LSTM inter-layer dropout=0.2 is training-mode only
        # and is omitted here (inference semantics).

    # ---- fcLayer on the whole top-layer sequence, lane-dense output --------
    out = (jnp.dot(seq_ref[...], wfc_ref[...],
                   preferred_element_type=jnp.float32) + bfc_ref[...])
    o_ref[...] = out


# ---------------------------------------------------------------------------
# Parameter init (deterministic, PyTorch-style uniform bounds).
# ---------------------------------------------------------------------------
def init_params(key, in_dim, hidden_dim, out_dim, layer_num):
    ks = jax.random.split(key, 4 + 4 * layer_num)
    k = iter(ks)

    def u(rng, shape, bound):
        return jax.random.uniform(rng, shape, jnp.float32,
                                  minval=-bound, maxval=bound)

    b1 = 1.0 / float(jnp.sqrt(in_dim))
    bh = 1.0 / float(jnp.sqrt(hidden_dim))
    # General lane-dense padding rule: round up to a multiple of 128.
    n_pad = ((out_dim + LANES - 1) // LANES) * LANES

    w1 = u(next(k), (in_dim, hidden_dim), b1)        # linear1.weight (transposed)
    bb1 = u(next(k), (1, hidden_dim), b1)            # linear1.bias
    wfc = u(next(k), (hidden_dim, out_dim), bh)      # fcLayer.weight (transposed)
    bfc = u(next(k), (1, out_dim), bh)               # fcLayer.bias

    # Zero-padded extra columns are sliced off in the wrapper (math unchanged).
    wfc_pad = jnp.zeros((hidden_dim, n_pad), jnp.float32).at[:, :out_dim].set(wfc)
    bfc_pad = jnp.zeros((1, n_pad), jnp.float32).at[:, :out_dim].set(bfc)

    wih, whh, blstm = [], [], []
    for _ in range(layer_num):
        wih.append(u(next(k), (hidden_dim, 4 * hidden_dim), bh))
        whh.append(u(next(k), (hidden_dim, 4 * hidden_dim), bh))
        # PyTorch keeps separate b_ih / b_hh; they are only ever summed -> fold.
        blstm.append(u(next(k), (1, 4 * hidden_dim), bh)
                     + u(next(k), (1, 4 * hidden_dim), bh))

    return {
        "hidden_dim": hidden_dim,
        "layer_num": layer_num,
        "out_dim": out_dim,
        "w1": w1,
        "b1": bb1,
        "wfc_pad": wfc_pad,
        "bfc_pad": bfc_pad,
        "wih": jnp.stack(wih),      # (L, H, 4H)
        "whh": jnp.stack(whh),      # (L, H, 4H)
        "blstm": jnp.stack(blstm),  # (L, 1, 4H)
    }


# ---------------------------------------------------------------------------
# Forward pass matching lstmModel.forward — single fused pallas_call.
# All 3-D <-> 2-D reshapes / transposes live here (free XLA layout plumbing).
# ---------------------------------------------------------------------------
def lstm_model_forward(x, params):
    B, T, Din = x.shape
    H = params["hidden_dim"]
    L = params["layer_num"]
    n_pad = params["wfc_pad"].shape[1]

    # Time-major flattening outside the kernel: row index = t*B + b.
    x_tm = jnp.transpose(x, (1, 0, 2)).reshape(T * B, Din)

    kernel = functools.partial(_lstm_model_kernel, B=B, T=T)
    out_pad = pl.pallas_call(
        kernel,
        out_shape=jax.ShapeDtypeStruct((T * B, n_pad), jnp.float32),
        in_specs=[
            pl.BlockSpec((T * B, Din), lambda: (0, 0)),
            pl.BlockSpec((Din, H), lambda: (0, 0)),
            pl.BlockSpec((1, H), lambda: (0, 0)),
            pl.BlockSpec((L, H, 4 * H), lambda: (0, 0, 0)),
            pl.BlockSpec((L, H, 4 * H), lambda: (0, 0, 0)),
            pl.BlockSpec((L, 1, 4 * H), lambda: (0, 0, 0)),
            pl.BlockSpec((H, n_pad), lambda: (0, 0)),
            pl.BlockSpec((1, n_pad), lambda: (0, 0)),
        ],
        out_specs=pl.BlockSpec((T * B, n_pad), lambda: (0, 0)),
        scratch_shapes=[pltpu.VMEM((T * B, H), jnp.float32)],
    )(x_tm, params["w1"], params["b1"], params["wih"], params["whh"],
      params["blstm"], params["wfc_pad"], params["bfc_pad"])

    # (T*B, Npad) time-major -> (B, T, out_dim)
    out = out_pad.reshape(T, B, n_pad).transpose(1, 0, 2)
    return out[:, :, :params["out_dim"]]


# ---------------------------------------------------------------------------
# Pure-JAX reference (standard sequential LSTM) for a numerical sanity check.
# ---------------------------------------------------------------------------
def _ref_forward(x, params):
    B, T, Din = x.shape
    H = params["hidden_dim"]
    seq = (x.reshape(B * T, Din) @ params["w1"] + params["b1"]).reshape(B, T, H)
    for l in range(params["layer_num"]):
        wih, whh, bl = params["wih"][l], params["whh"][l], params["blstm"][l]
        h = jnp.zeros((B, H), jnp.float32)
        c = jnp.zeros((B, H), jnp.float32)
        outs = []
        for t in range(T):
            g = seq[:, t, :] @ wih + h @ whh + bl
            i_g = jax.nn.sigmoid(g[:, :H])
            f_g = jax.nn.sigmoid(g[:, H:2 * H])
            g_g = jnp.tanh(g[:, 2 * H:3 * H])
            o_g = jax.nn.sigmoid(g[:, 3 * H:])
            c = f_g * c + i_g * g_g
            h = o_g * jnp.tanh(c)
            outs.append(h)
        seq = jnp.stack(outs, axis=1)
    out = seq.reshape(B * T, H) @ params["wfc_pad"] + params["bfc_pad"]
    return out.reshape(B, T, -1)[:, :, :params["out_dim"]]


if __name__ == "__main__":
    in_dim, hidden_dim, out_dim, layer_num = 4, 32, 8, 2
    batch, seq_len = 2, 8

    key = jax.random.PRNGKey(0)
    kx, kp = jax.random.split(key)
    x = jax.random.normal(kx, (batch, seq_len, in_dim), jnp.float32)
    params = init_params(kp, in_dim, hidden_dim, out_dim, layer_num)

    out = lstm_model_forward(x, params)
    out = jax.block_until_ready(out)
    assert out.shape == (batch, seq_len, out_dim), out.shape

    ref = _ref_forward(x, params)
    assert bool(jnp.all(jnp.isfinite(out)))
    assert bool(jnp.allclose(out, ref, atol=5e-3, rtol=5e-3)), \
        float(jnp.max(jnp.abs(out - ref)))

    print("KERNEL_OK")
</pallas_src>

<mosaic_0001>
module attributes {stable_mosaic.version = 11 : i64} {
  func.func @_lstm_model_kernel(%arg0: memref<16x4xf32, #tpu.memory_space<vmem>>, %arg1: memref<4x32xf32, #tpu.memory_space<vmem>>, %arg2: memref<1x32xf32, #tpu.memory_space<vmem>>, %arg3: memref<2x32x128xf32, #tpu.memory_space<vmem>>, %arg4: memref<2x32x128xf32, #tpu.memory_space<vmem>>, %arg5: memref<2x1x128xf32, #tpu.memory_space<vmem>>, %arg6: memref<32x128xf32, #tpu.memory_space<vmem>>, %arg7: memref<1x128xf32, #tpu.memory_space<vmem>>, %arg8: memref<16x128xf32, #tpu.memory_space<vmem>>, %arg9: memref<16x32xf32, #tpu.memory_space<vmem>>) attributes {dimension_semantics = [], scalar_prefetch = 0 : i64, scratch_operands = 1 : i64, tpu.core_type = #tpu.core_type<tc>} {
    %c0 = arith.constant 0 : index
    %c0_0 = arith.constant 0 : index
    %0 = vector.load %arg0[%c0, %c0_0] : memref<16x4xf32, #tpu.memory_space<vmem>>, vector<16x4xf32>
    %c0_1 = arith.constant 0 : index
    %c0_2 = arith.constant 0 : index
    %1 = vector.load %arg1[%c0_1, %c0_2] : memref<4x32xf32, #tpu.memory_space<vmem>>, vector<4x32xf32>
    %cst = arith.constant dense<0.000000e+00> : vector<16x32xf32>
    %2 = tpu.matmul %0, %1, %cst {dimension_numbers = #tpu.dot_dimension_numbers<[1], [0], [0], [1], [0, 0, 1, 1], [], []>} : vector<16x4xf32>, vector<4x32xf32>, vector<16x32xf32> -> vector<16x32xf32>
    %c0_3 = arith.constant 0 : index
    %c0_4 = arith.constant 0 : index
    %3 = vector.load %arg2[%c0_3, %c0_4] : memref<1x32xf32, #tpu.memory_space<vmem>>, vector<1x32xf32>
    %4 = vector.broadcast %3 : vector<1x32xf32> to vector<16x32xf32>
    %5 = arith.addf %2, %4 : vector<16x32xf32>
    %c0_5 = arith.constant 0 : index
    %c0_6 = arith.constant 0 : index
    %c0_7 = arith.constant 0 : index
    %6 = vector.load %arg3[%c0_5, %c0_6, %c0_7] : memref<2x32x128xf32, #tpu.memory_space<vmem>>, vector<1x32x128xf32>
    %7 = vector.shape_cast %6 : vector<1x32x128xf32> to vector<32x128xf32>
    %cst_8 = arith.constant dense<0.000000e+00> : vector<16x128xf32>
    %8 = tpu.matmul %5, %7, %cst_8 {dimension_numbers = #tpu.dot_dimension_numbers<[1], [0], [0], [1], [0, 0, 1, 1], [], []>} : vector<16x32xf32>, vector<32x128xf32>, vector<16x128xf32> -> vector<16x128xf32>
    %c0_9 = arith.constant 0 : index
    %c0_10 = arith.constant 0 : index
    %c0_11 = arith.constant 0 : index
    %9 = vector.load %arg5[%c0_9, %c0_10, %c0_11] : memref<2x1x128xf32, #tpu.memory_space<vmem>>, vector<1x1x128xf32>
    %10 = vector.shape_cast %9 : vector<1x1x128xf32> to vector<1x128xf32>
    %11 = vector.broadcast %10 : vector<1x128xf32> to vector<16x128xf32>
    %12 = arith.addf %8, %11 : vector<16x128xf32>
    %13 = tpu.iota {dimensions = array<i32: 1>} : vector<2x128xi32>
    %c64_i32 = arith.constant 64 : i32
    %14 = vector.broadcast %c64_i32 : i32 to vector<2x128xi32>
    %15 = arith.cmpi sge, %13, %14 : vector<2x128xi32>
    %c96_i32 = arith.constant 96 : i32
    %16 = vector.broadcast %c96_i32 : i32 to vector<2x128xi32>
    %17 = arith.cmpi slt, %13, %16 : vector<2x128xi32>
    %18 = arith.andi %15, %17 : vector<2x128xi1>
    %cst_12 = arith.constant 1.000000e+00 : f32
    %cst_13 = arith.constant 5.000000e-01 : f32
    %19 = vector.broadcast %cst_12 : f32 to vector<2x128xf32>
    %20 = vector.broadcast %cst_13 : f32 to vector<2x128xf32>
    %21 = arith.select %18, %19, %20 : vector<2x128xi1>, vector<2x128xf32>
    %c0_14 = arith.constant 0 : index
    %c0_15 = arith.constant 0 : index
    %c0_16 = arith.constant 0 : index
    %22 = vector.load %arg4[%c0_14, %c0_15, %c0_16] : memref<2x32x128xf32, #tpu.memory_space<vmem>>, vector<1x32x128xf32>
    %23 = vector.shape_cast %22 : vector<1x32x128xf32> to vector<32x128xf32>
    %c1 = arith.constant 1 : index
    %c0_17 = arith.constant 0 : index
    %c0_18 = arith.constant 0 : index
    %24 = vector.load %arg4[%c1, %c0_17, %c0_18] : memref<2x32x128xf32, #tpu.memory_space<vmem>>, vector<1x32x128xf32>
    %25 = vector.shape_cast %24 : vector<1x32x128xf32> to vector<32x128xf32>
    %c1_19 = arith.constant 1 : index
    %c0_20 = arith.constant 0 : index
    %c0_21 = arith.constant 0 : index
    %26 = vector.load %arg3[%c1_19, %c0_20, %c0_21] : memref<2x32x128xf32, #tpu.memory_space<vmem>>, vector<1x32x128xf32>
    %27 = vector.shape_cast %26 : vector<1x32x128xf32> to vector<32x128xf32>
    %c1_22 = arith.constant 1 : index
    %c0_23 = arith.constant 0 : index
    %c0_24 = arith.constant 0 : index
    %28 = vector.load %arg5[%c1_22, %c0_23, %c0_24] : memref<2x1x128xf32, #tpu.memory_space<vmem>>, vector<1x1x128xf32>
    %29 = vector.shape_cast %28 : vector<1x1x128xf32> to vector<1x128xf32>
    %30 = vector.shape_cast %29 : vector<1x128xf32> to vector<1x128xf32>
    %31 = vector.broadcast %30 : vector<1x128xf32> to vector<2x128xf32>
    %cst_25 = arith.constant 0.000000e+00 : f32
    %32 = vector.broadcast %cst_25 : f32 to vector<2x32xf32>
    %cst_26 = arith.constant 0.000000e+00 : f32
    %33 = vector.broadcast %cst_26 : f32 to vector<2x32xf32>
    %cst_27 = arith.constant 0.000000e+00 : f32
    %34 = vector.broadcast %cst_27 : f32 to vector<2x32xf32>
    %cst_28 = arith.constant 0.000000e+00 : f32
    %35 = vector.broadcast %cst_28 : f32 to vector<2x32xf32>
    %36 = vector.extract_strided_slice %12 {offsets = [0, 0], sizes = [2, 128], strides = [1, 1]} : vector<16x128xf32> to vector<2x128xf32>
    %cst_29 = arith.constant dense<0.000000e+00> : vector<2x128xf32>
    %37 = tpu.matmul %32, %23, %cst_29 {dimension_numbers = #tpu.dot_dimension_numbers<[1], [0], [0], [1], [0, 0, 1, 1], [], []>} : vector<2x32xf32>, vector<32x128xf32>, vector<2x128xf32> -> vector<2x128xf32>
    %38 = arith.addf %36, %37 : vector<2x128xf32>
    %39 = arith.mulf %38, %21 : vector<2x128xf32>
    %40 = math.tanh %39 : vector<2x128xf32>
    %cst_30 = arith.constant 5.000000e-01 : f32
    %41 = vector.broadcast %cst_30 : f32 to vector<2x128xf32>
    %42 = arith.mulf %41, %40 : vector<2x128xf32>
    %cst_31 = arith.constant 5.000000e-01 : f32
    %43 = vector.broadcast %cst_31 : f32 to vector<2x128xf32>
    %44 = arith.addf %42, %43 : vector<2x128xf32>
    %45 = arith.select %18, %40, %44 : vector<2x128xi1>, vector<2x128xf32>
    %46 = vector.extract_strided_slice %45 {offsets = [0, 0], sizes = [2, 32], strides = [1, 1]} : vector<2x128xf32> to vector<2x32xf32>
    %47 = vector.extract_strided_slice %45 {offsets = [0, 32], sizes = [2, 32], strides = [1, 1]} : vector<2x128xf32> to vector<2x32xf32>
    %48 = vector.extract_strided_slice %45 {offsets = [0, 64], sizes = [2, 32], strides = [1, 1]} : vector<2x128xf32> to vector<2x32xf32>
    %49 = vector.extract_strided_slice %45 {offsets = [0, 96], sizes = [2, 32], strides = [1, 1]} : vector<2x128xf32> to vector<2x32xf32>
    %50 = arith.mulf %47, %34 : vector<2x32xf32>
    %51 = arith.mulf %46, %48 : vector<2x32xf32>
    %52 = arith.addf %50, %51 : vector<2x32xf32>
    %53 = math.tanh %52 : vector<2x32xf32>
    %54 = arith.mulf %49, %53 : vector<2x32xf32>
    %55 = vector.extract_strided_slice %12 {offsets = [2, 0], sizes = [2, 128], strides = [1, 1]} : vector<16x128xf32> to vector<2x128xf32>
    %cst_32 = arith.constant dense<0.000000e+00> : vector<2x128xf32>
    %56 = tpu.matmul %54, %23, %cst_32 {dimension_numbers = #tpu.dot_dimension_numbers<[1], [0], [0], [1], [0, 0, 1, 1], [], []>} : vector<2x32xf32>, vector<32x128xf32>, vector<2x128xf32> -> vector<2x128xf32>
    %57 = arith.addf %55, %56 : vector<2x128xf32>
    %58 = arith.mulf %57, %21 : vector<2x128xf32>
    %59 = math.tanh %58 : vector<2x128xf32>
    %cst_33 = arith.constant 5.000000e-01 : f32
    %60 = vector.broadcast %cst_33 : f32 to vector<2x128xf32>
    %61 = arith.mulf %60, %59 : vector<2x128xf32>
    %cst_34 = arith.constant 5.000000e-01 : f32
    %62 = vector.broadcast %cst_34 : f32 to vector<2x128xf32>
    %63 = arith.addf %61, %62 : vector<2x128xf32>
    %64 = arith.select %18, %59, %63 : vector<2x128xi1>, vector<2x128xf32>
    %65 = vector.extract_strided_slice %64 {offsets = [0, 0], sizes = [2, 32], strides = [1, 1]} : vector<2x128xf32> to vector<2x32xf32>
    %66 = vector.extract_strided_slice %64 {offsets = [0, 32], sizes = [2, 32], strides = [1, 1]} : vector<2x128xf32> to vector<2x32xf32>
    %67 = vector.extract_strided_slice %64 {offsets = [0, 64], sizes = [2, 32], strides = [1, 1]} : vector<2x128xf32> to vector<2x32xf32>
    %68 = vector.extract_strided_slice %64 {offsets = [0, 96], sizes = [2, 32], strides = [1, 1]} : vector<2x128xf32> to vector<2x32xf32>
    %69 = arith.mulf %66, %52 : vector<2x32xf32>
    %70 = arith.mulf %65, %67 : vector<2x32xf32>
    %71 = arith.addf %69, %70 : vector<2x32xf32>
    %72 = math.tanh %71 : vector<2x32xf32>
    %73 = arith.mulf %68, %72 : vector<2x32xf32>
    %cst_35 = arith.constant dense<0.000000e+00> : vector<2x128xf32>
    %74 = tpu.matmul %54, %27, %cst_35 {dimension_numbers = #tpu.dot_dimension_numbers<[1], [0], [0], [1], [0, 0, 1, 1], [], []>} : vector<2x32xf32>, vector<32x128xf32>, vector<2x128xf32> -> vector<2x128xf32>
    %cst_36 = arith.constant dense<0.000000e+00> : vector<2x128xf32>
    %75 = tpu.matmul %33, %25, %cst_36 {dimension_numbers = #tpu.dot_dimension_numbers<[1], [0], [0], [1], [0, 0, 1, 1], [], []>} : vector<2x32xf32>, vector<32x128xf32>, vector<2x128xf32> -> vector<2x128xf32>
    %76 = arith.addf %74, %75 : vector<2x128xf32>
    %77 = arith.addf %76, %31 : vector<2x128xf32>
    %78 = arith.mulf %77, %21 : vector<2x128xf32>
    %79 = math.tanh %78 : vector<2x128xf32>
    %cst_37 = arith.constant 5.000000e-01 : f32
    %80 = vector.broadcast %cst_37 : f32 to vector<2x128xf32>
    %81 = arith.mulf %80, %79 : vector<2x128xf32>
    %cst_38 = arith.constant 5.000000e-01 : f32
    %82 = vector.broadcast %cst_38 : f32 to vector<2x128xf32>
    %83 = arith.addf %81, %82 : vector<2x128xf32>
    %84 = arith.select %18, %79, %83 : vector<2x128xi1>, vector<2x128xf32>
    %85 = vector.extract_strided_slice %84 {offsets = [0, 0], sizes = [2, 32], strides = [1, 1]} : vector<2x128xf32> to vector<2x32xf32>
    %86 = vector.extract_strided_slice %84 {offsets = [0, 32], sizes = [2, 32], strides = [1, 1]} : vector<2x128xf32> to vector<2x32xf32>
    %87 = vector.extract_strided_slice %84 {offsets = [0, 64], sizes = [2, 32], strides = [1, 1]} : vector<2x128xf32> to vector<2x32xf32>
    %88 = vector.extract_strided_slice %84 {offsets = [0, 96], sizes = [2, 32], strides = [1, 1]} : vector<2x128xf32> to vector<2x32xf32>
    %89 = arith.mulf %86, %35 : vector<2x32xf32>
    %90 = arith.mulf %85, %87 : vector<2x32xf32>
    %91 = arith.addf %89, %90 : vector<2x32xf32>
    %92 = math.tanh %91 : vector<2x32xf32>
    %93 = arith.mulf %88, %92 : vector<2x32xf32>
    %c0_39 = arith.constant 0 : index
    %c0_40 = arith.constant 0 : index
    %94 = vector.load %arg9[%c0_39, %c0_40] : memref<16x32xf32, #tpu.memory_space<vmem>>, vector<2x32xf32>
    tpu.vector_store %arg9[%c0_39, %c0_40], %93 {strides = array<i32>} : memref<16x32xf32, #tpu.memory_space<vmem>>, vector<2x32xf32>,
    %95 = vector.extract_strided_slice %12 {offsets = [4, 0], sizes = [2, 128], strides = [1, 1]} : vector<16x128xf32> to vector<2x128xf32>
    %cst_41 = arith.constant dense<0.000000e+00> : vector<2x128xf32>
    %96 = tpu.matmul %73, %23, %cst_41 {dimension_numbers = #tpu.dot_dimension_numbers<[1], [0], [0], [1], [0, 0, 1, 1], [], []>} : vector<2x32xf32>, vector<32x128xf32>, vector<2x128xf32> -> vector<2x128xf32>
    %97 = arith.addf %95, %96 : vector<2x128xf32>
    %98 = arith.mulf %97, %21 : vector<2x128xf32>
    %99 = math.tanh %98 : vector<2x128xf32>
    %cst_42 = arith.constant 5.000000e-01 : f32
    %100 = vector.broadcast %cst_42 : f32 to vector<2x128xf32>
    %101 = arith.mulf %100, %99 : vector<2x128xf32>
    %cst_43 = arith.constant 5.000000e-01 : f32
    %102 = vector.broadcast %cst_43 : f32 to vector<2x128xf32>
    %103 = arith.addf %101, %102 : vector<2x128xf32>
    %104 = arith.select %18, %99, %103 : vector<2x128xi1>, vector<2x128xf32>
    %105 = vector.extract_strided_slice %104 {offsets = [0, 0], sizes = [2, 32], strides = [1, 1]} : vector<2x128xf32> to vector<2x32xf32>
    %106 = vector.extract_strided_slice %104 {offsets = [0, 32], sizes = [2, 32], strides = [1, 1]} : vector<2x128xf32> to vector<2x32xf32>
    %107 = vector.extract_strided_slice %104 {offsets = [0, 64], sizes = [2, 32], strides = [1, 1]} : vector<2x128xf32> to vector<2x32xf32>
    %108 = vector.extract_strided_slice %104 {offsets = [0, 96], sizes = [2, 32], strides = [1, 1]} : vector<2x128xf32> to vector<2x32xf32>
    %109 = arith.mulf %106, %71 : vector<2x32xf32>
    %110 = arith.mulf %105, %107 : vector<2x32xf32>
    %111 = arith.addf %109, %110 : vector<2x32xf32>
    %112 = math.tanh %111 : vector<2x32xf32>
    %113 = arith.mulf %108, %112 : vector<2x32xf32>
    %cst_44 = arith.constant dense<0.000000e+00> : vector<2x128xf32>
    %114 = tpu.matmul %73, %27, %cst_44 {dimension_numbers = #tpu.dot_dimension_numbers<[1], [0], [0], [1], [0, 0, 1, 1], [], []>} : vector<2x32xf32>, vector<32x128xf32>, vector<2x128xf32> -> vector<2x128xf32>
    %cst_45 = arith.constant dense<0.000000e+00> : vector<2x128xf32>
    %115 = tpu.matmul %93, %25, %cst_45 {dimension_numbers = #tpu.dot_dimension_numbers<[1], [0], [0], [1], [0, 0, 1, 1], [], []>} : vector<2x32xf32>, vector<32x128xf32>, vector<2x128xf32> -> vector<2x128xf32>
    %116 = arith.addf %114, %115 : vector<2x128xf32>
    %117 = arith.addf %116, %31 : vector<2x128xf32>
    %118 = arith.mulf %117, %21 : vector<2x128xf32>
    %119 = math.tanh %118 : vector<2x128xf32>
    %cst_46 = arith.constant 5.000000e-01 : f32
    %120 = vector.broadcast %cst_46 : f32 to vector<2x128xf32>
    %121 = arith.mulf %120, %119 : vector<2x128xf32>
    %cst_47 = arith.constant 5.000000e-01 : f32
    %122 = vector.broadcast %cst_47 : f32 to vector<2x128xf32>
    %123 = arith.addf %121, %122 : vector<2x128xf32>
    %124 = arith.select %18, %119, %123 : vector<2x128xi1>, vector<2x128xf32>
    %125 = vector.extract_strided_slice %124 {offsets = [0, 0], sizes = [2, 32], strides = [1, 1]} : vector<2x128xf32> to vector<2x32xf32>
    %126 = vector.extract_strided_slice %124 {offsets = [0, 32], sizes = [2, 32], strides = [1, 1]} : vector<2x128xf32> to vector<2x32xf32>
    %127 = vector.extract_strided_slice %124 {offsets = [0, 64], sizes = [2, 32], strides = [1, 1]} : vector<2x128xf32> to vector<2x32xf32>
    %128 = vector.extract_strided_slice %124 {offsets = [0, 96], sizes = [2, 32], strides = [1, 1]} : vector<2x128xf32> to vector<2x32xf32>
    %129 = arith.mulf %126, %91 : vector<2x32xf32>
    %130 = arith.mulf %125, %127 : vector<2x32xf32>
    %131 = arith.addf %129, %130 : vector<2x32xf32>
    %132 = math.tanh %131 : vector<2x32xf32>
    %133 = arith.mulf %128, %132 : vector<2x32xf32>
    %c2 = arith.constant 2 : index
    %c0_48 = arith.constant 0 : index
    %134 = vector.load %arg9[%c2, %c0_48] : memref<16x32xf32, #tpu.memory_space<vmem>>, vector<2x32xf32>
    tpu.vector_store %arg9[%c2, %c0_48], %133 {strides = array<i32>} : memref<16x32xf32, #tpu.memory_space<vmem>>, vector<2x32xf32>,
    %135 = vector.extract_strided_slice %12 {offsets = [6, 0], sizes = [2, 128], strides = [1, 1]} : vector<16x128xf32> to vector<2x128xf32>
    %cst_49 = arith.constant dense<0.000000e+00> : vector<2x128xf32>
    %136 = tpu.matmul %113, %23, %cst_49 {dimension_numbers = #tpu.dot_dimension_numbers<[1], [0], [0], [1], [0, 0, 1, 1], [], []>} : vector<2x32xf32>, vector<32x128xf32>, vector<2x128xf32> -> vector<2x128xf32>
    %137 = arith.addf %135, %136 : vector<2x128xf32>
    %138 = arith.mulf %137, %21 : vector<2x128xf32>
    %139 = math.tanh %138 : vector<2x128xf32>
    %cst_50 = arith.constant 5.000000e-01 : f32
    %140 = vector.broadcast %cst_50 : f32 to vector<2x128xf32>
    %141 = arith.mulf %140, %139 : vector<2x128xf32>
    %cst_51 = arith.constant 5.000000e-01 : f32
    %142 = vector.broadcast %cst_51 : f32 to vector<2x128xf32>
    %143 = arith.addf %141, %142 : vector<2x128xf32>
    %144 = arith.select %18, %139, %143 : vector<2x128xi1>, vector<2x128xf32>
    %145 = vector.extract_strided_slice %144 {offsets = [0, 0], sizes = [2, 32], strides = [1, 1]} : vector<2x128xf32> to vector<2x32xf32>
    %146 = vector.extract_strided_slice %144 {offsets = [0, 32], sizes = [2, 32], strides = [1, 1]} : vector<2x128xf32> to vector<2x32xf32>
    %147 = vector.extract_strided_slice %144 {offsets = [0, 64], sizes = [2, 32], strides = [1, 1]} : vector<2x128xf32> to vector<2x32xf32>
    %148 = vector.extract_strided_slice %144 {offsets = [0, 96], sizes = [2, 32], strides = [1, 1]} : vector<2x128xf32> to vector<2x32xf32>
    %149 = arith.mulf %146, %111 : vector<2x32xf32>
    %150 = arith.mulf %145, %147 : vector<2x32xf32>
    %151 = arith.addf %149, %150 : vector<2x32xf32>
    %152 = math.tanh %151 : vector<2x32xf32>
    %153 = arith.mulf %148, %152 : vector<2x32xf32>
    %cst_52 = arith.constant dense<0.000000e+00> : vector<2x128xf32>
    %154 = tpu.matmul %113, %27, %cst_52 {dimension_numbers = #tpu.dot_dimension_numbers<[1], [0], [0], [1], [0, 0, 1, 1], [], []>} : vector<2x32xf32>, vector<32x128xf32>, vector<2x128xf32> -> vector<2x128xf32>
    %cst_53 = arith.constant dense<0.000000e+00> : vector<2x128xf32>
    %155 = tpu.matmul %133, %25, %cst_53 {dimension_numbers = #tpu.dot_dimension_numbers<[1], [0], [0], [1], [0, 0, 1, 1], [], []>} : vector<2x32xf32>, vector<32x128xf32>, vector<2x128xf32> -> vector<2x128xf32>
    %156 = arith.addf %154, %155 : vector<2x128xf32>
    %157 = arith.addf %156, %31 : vector<2x128xf32>
    %158 = arith.mulf %157, %21 : vector<2x128xf32>
    %159 = math.tanh %158 : vector<2x128xf32>
    %cst_54 = arith.constant 5.000000e-01 : f32
    %160 = vector.broadcast %cst_54 : f32 to vector<2x128xf32>
    %161 = arith.mulf %160, %159 : vector<2x128xf32>
    %cst_55 = arith.constant 5.000000e-01 : f32
    %162 = vector.broadcast %cst_55 : f32 to vector<2x128xf32>
    %163 = arith.addf %161, %162 : vector<2x128xf32>
    %164 = arith.select %18, %159, %163 : vector<2x128xi1>, vector<2x128xf32>
    %165 = vector.extract_strided_slice %164 {offsets = [0, 0], sizes = [2, 32], strides = [1, 1]} : vector<2x128xf32> to vector<2x32xf32>
    %166 = vector.extract_strided_slice %164 {offsets = [0, 32], sizes = [2, 32], strides = [1, 1]} : vector<2x128xf32> to vector<2x32xf32>
    %167 = vector.extract_strided_slice %164 {offsets = [0, 64], sizes = [2, 32], strides = [1, 1]} : vector<2x128xf32> to vector<2x32xf32>
    %168 = vector.extract_strided_slice %164 {offsets = [0, 96], sizes = [2, 32], strides = [1, 1]} : vector<2x128xf32> to vector<2x32xf32>
    %169 = arith.mulf %166, %131 : vector<2x32xf32>
    %170 = arith.mulf %165, %167 : vector<2x32xf32>
    %171 = arith.addf %169, %170 : vector<2x32xf32>
    %172 = math.tanh %171 : vector<2x32xf32>
    %173 = arith.mulf %168, %172 : vector<2x32xf32>
    %c4 = arith.constant 4 : index
    %c0_56 = arith.constant 0 : index
    %174 = vector.load %arg9[%c4, %c0_56] : memref<16x32xf32, #tpu.memory_space<vmem>>, vector<2x32xf32>
    tpu.vector_store %arg9[%c4, %c0_56], %173 {strides = array<i32>} : memref<16x32xf32, #tpu.memory_space<vmem>>, vector<2x32xf32>,
    %175 = vector.extract_strided_slice %12 {offsets = [8, 0], sizes = [2, 128], strides = [1, 1]} : vector<16x128xf32> to vector<2x128xf32>
    %cst_57 = arith.constant dense<0.000000e+00> : vector<2x128xf32>
    %176 = tpu.matmul %153, %23, %cst_57 {dimension_numbers = #tpu.dot_dimension_numbers<[1], [0], [0], [1], [0, 0, 1, 1], [], []>} : vector<2x32xf32>, vector<32x128xf32>, vector<2x128xf32> -> vector<2x128xf32>
    %177 = arith.addf %175, %176 : vector<2x128xf32>
    %178 = arith.mulf %177, %21 : vector<2x128xf32>
    %179 = math.tanh %178 : vector<2x128xf32>
    %cst_58 = arith.constant 5.000000e-01 : f32
    %180 = vector.broadcast %cst_58 : f32 to vector<2x128xf32>
    %181 = arith.mulf %180, %179 : vector<2x128xf32>
    %cst_59 = arith.constant 5.000000e-01 : f32
    %182 = vector.broadcast %cst_59 : f32 to vector<2x128xf32>
    %183 = arith.addf %181, %182 : vector<2x128xf32>
    %184 = arith.select %18, %179, %183 : vector<2x128xi1>, vector<2x128xf32>
    %185 = vector.extract_strided_slice %184 {offsets = [0, 0], sizes = [2, 32], strides = [1, 1]} : vector<2x128xf32> to vector<2x32xf32>
    %186 = vector.extract_strided_slice %184 {offsets = [0, 32], sizes = [2, 32], strides = [1, 1]} : vector<2x128xf32> to vector<2x32xf32>
    %187 = vector.extract_strided_slice %184 {offsets = [0, 64], sizes = [2, 32], strides = [1, 1]} : vector<2x128xf32> to vector<2x32xf32>
    %188 = vector.extract_strided_slice %184 {offsets = [0, 96], sizes = [2, 32], strides = [1, 1]} : vector<2x128xf32> to vector<2x32xf32>
    %189 = arith.mulf %186, %151 : vector<2x32xf32>
    %190 = arith.mulf %185, %187 : vector<2x32xf32>
    %191 = arith.addf %189, %190 : vector<2x32xf32>
    %192 = math.tanh %191 : vector<2x32xf32>
    %193 = arith.mulf %188, %192 : vector<2x32xf32>
    %cst_60 = arith.constant dense<0.000000e+00> : vector<2x128xf32>
    %194 = tpu.matmul %153, %27, %cst_60 {dimension_numbers = #tpu.dot_dimension_numbers<[1], [0], [0], [1], [0, 0, 1, 1], [], []>} : vector<2x32xf32>, vector<32x128xf32>, vector<2x128xf32> -> vector<2x128xf32>
    %cst_61 = arith.constant dense<0.000000e+00> : vector<2x128xf32>
    %195 = tpu.matmul %173, %25, %cst_61 {dimension_numbers = #tpu.dot_dimension_numbers<[1], [0], [0], [1], [0, 0, 1, 1], [], []>} : vector<2x32xf32>, vector<32x128xf32>, vector<2x128xf32> -> vector<2x128xf32>
    %196 = arith.addf %194, %195 : vector<2x128xf32>
    %197 = arith.addf %196, %31 : vector<2x128xf32>
    %198 = arith.mulf %197, %21 : vector<2x128xf32>
    %199 = math.tanh %198 : vector<2x128xf32>
    %cst_62 = arith.constant 5.000000e-01 : f32
    %200 = vector.broadcast %cst_62 : f32 to vector<2x128xf32>
    %201 = arith.mulf %200, %199 : vector<2x128xf32>
    %cst_63 = arith.constant 5.000000e-01 : f32
    %202 = vector.broadcast %cst_63 : f32 to vector<2x128xf32>
    %203 = arith.addf %201, %202 : vector<2x128xf32>
    %204 = arith.select %18, %199, %203 : vector<2x128xi1>, vector<2x128xf32>
    %205 = vector.extract_strided_slice %204 {offsets = [0, 0], sizes = [2, 32], strides = [1, 1]} : vector<2x128xf32> to vector<2x32xf32>
    %206 = vector.extract_strided_slice %204 {offsets = [0, 32], sizes = [2, 32], strides = [1, 1]} : vector<2x128xf32> to vector<2x32xf32>
    %207 = vector.extract_strided_slice %204 {offsets = [0, 64], sizes = [2, 32], strides = [1, 1]} : vector<2x128xf32> to vector<2x32xf32>
    %208 = vector.extract_strided_slice %204 {offsets = [0, 96], sizes = [2, 32], strides = [1, 1]} : vector<2x128xf32> to vector<2x32xf32>
    %209 = arith.mulf %206, %171 : vector<2x32xf32>
    %210 = arith.mulf %205, %207 : vector<2x32xf32>
    %211 = arith.addf %209, %210 : vector<2x32xf32>
    %212 = math.tanh %211 : vector<2x32xf32>
    %213 = arith.mulf %208, %212 : vector<2x32xf32>
    %c6 = arith.constant 6 : index
    %c0_64 = arith.constant 0 : index
    %214 = vector.load %arg9[%c6, %c0_64] : memref<16x32xf32, #tpu.memory_space<vmem>>, vector<2x32xf32>
    tpu.vector_store %arg9[%c6, %c0_64], %213 {strides = array<i32>} : memref<16x32xf32, #tpu.memory_space<vmem>>, vector<2x32xf32>,
    %215 = vector.extract_strided_slice %12 {offsets = [10, 0], sizes = [2, 128], strides = [1, 1]} : vector<16x128xf32> to vector<2x128xf32>
    %cst_65 = arith.constant dense<0.000000e+00> : vector<2x128xf32>
    %216 = tpu.matmul %193, %23, %cst_65 {dimension_numbers = #tpu.dot_dimension_numbers<[1], [0], [0], [1], [0, 0, 1, 1], [], []>} : vector<2x32xf32>, vector<32x128xf32>, vector<2x128xf32> -> vector<2x128xf32>
    %217 = arith.addf %215, %216 : vector<2x128xf32>
    %218 = arith.mulf %217, %21 : vector<2x128xf32>
    %219 = math.tanh %218 : vector<2x128xf32>
    %cst_66 = arith.constant 5.000000e-01 : f32
    %220 = vector.broadcast %cst_66 : f32 to vector<2x128xf32>
    %221 = arith.mulf %220, %219 : vector<2x128xf32>
    %cst_67 = arith.constant 5.000000e-01 : f32
    %222 = vector.broadcast %cst_67 : f32 to vector<2x128xf32>
    %223 = arith.addf %221, %222 : vector<2x128xf32>
    %224 = arith.select %18, %219, %223 : vector<2x128xi1>, vector<2x128xf32>
    %225 = vector.extract_strided_slice %224 {offsets = [0, 0], sizes = [2, 32], strides = [1, 1]} : vector<2x128xf32> to vector<2x32xf32>
    %226 = vector.extract_strided_slice %224 {offsets = [0, 32], sizes = [2, 32], strides = [1, 1]} : vector<2x128xf32> to vector<2x32xf32>
    %227 = vector.extract_strided_slice %224 {offsets = [0, 64], sizes = [2, 32], strides = [1, 1]} : vector<2x128xf32> to vector<2x32xf32>
    %228 = vector.extract_strided_slice %224 {offsets = [0, 96], sizes = [2, 32], strides = [1, 1]} : vector<2x128xf32> to vector<2x32xf32>
    %229 = arith.mulf %226, %191 : vector<2x32xf32>
    %230 = arith.mulf %225, %227 : vector<2x32xf32>
    %231 = arith.addf %229, %230 : vector<2x32xf32>
    %232 = math.tanh %231 : vector<2x32xf32>
    %233 = arith.mulf %228, %232 : vector<2x32xf32>
    %cst_68 = arith.constant dense<0.000000e+00> : vector<2x128xf32>
    %234 = tpu.matmul %193, %27, %cst_68 {dimension_numbers = #tpu.dot_dimension_numbers<[1], [0], [0], [1], [0, 0, 1, 1], [], []>} : vector<2x32xf32>, vector<32x128xf32>, vector<2x128xf32> -> vector<2x128xf32>
    %cst_69 = arith.constant dense<0.000000e+00> : vector<2x128xf32>
    %235 = tpu.matmul %213, %25, %cst_69 {dimension_numbers = #tpu.dot_dimension_numbers<[1], [0], [0], [1], [0, 0, 1, 1], [], []>} : vector<2x32xf32>, vector<32x128xf32>, vector<2x128xf32> -> vector<2x128xf32>
    %236 = arith.addf %234, %235 : vector<2x128xf32>
    %237 = arith.addf %236, %31 : vector<2x128xf32>
    %238 = arith.mulf %237, %21 : vector<2x128xf32>
    %239 = math.tanh %238 : vector<2x128xf32>
    %cst_70 = arith.constant 5.000000e-01 : f32
    %240 = vector.broadcast %cst_70 : f32 to vector<2x128xf32>
    %241 = arith.mulf %240, %239 : vector<2x128xf32>
    %cst_71 = arith.constant 5.000000e-01 : f32
    %242 = vector.broadcast %cst_71 : f32 to vector<2x128xf32>
    %243 = arith.addf %241, %242 : vector<2x128xf32>
    %244 = arith.select %18, %239, %243 : vector<2x128xi1>, vector<2x128xf32>
    %245 = vector.extract_strided_slice %244 {offsets = [0, 0], sizes = [2, 32], strides = [1, 1]} : vector<2x128xf32> to vector<2x32xf32>
    %246 = vector.extract_strided_slice %244 {offsets = [0, 32], sizes = [2, 32], strides = [1, 1]} : vector<2x128xf32> to vector<2x32xf32>
    %247 = vector.extract_strided_slice %244 {offsets = [0, 64], sizes = [2, 32], strides = [1, 1]} : vector<2x128xf32> to vector<2x32xf32>
    %248 = vector.extract_strided_slice %244 {offsets = [0, 96], sizes = [2, 32], strides = [1, 1]} : vector<2x128xf32> to vector<2x32xf32>
    %249 = arith.mulf %246, %211 : vector<2x32xf32>
    %250 = arith.mulf %245, %247 : vector<2x32xf32>
    %251 = arith.addf %249, %250 : vector<2x32xf32>
    %252 = math.tanh %251 : vector<2x32xf32>
    %253 = arith.mulf %248, %252 : vector<2x32xf32>
    %c8 = arith.constant 8 : index
    %c0_72 = arith.constant 0 : index
    %254 = vector.load %arg9[%c8, %c0_72] : memref<16x32xf32, #tpu.memory_space<vmem>>, vector<2x32xf32>
    tpu.vector_store %arg9[%c8, %c0_72], %253 {strides = array<i32>} : memref<16x32xf32, #tpu.memory_space<vmem>>, vector<2x32xf32>,
    %255 = vector.extract_strided_slice %12 {offsets = [12, 0], sizes = [2, 128], strides = [1, 1]} : vector<16x128xf32> to vector<2x128xf32>
    %cst_73 = arith.constant dense<0.000000e+00> : vector<2x128xf32>
    %256 = tpu.matmul %233, %23, %cst_73 {dimension_numbers = #tpu.dot_dimension_numbers<[1], [0], [0], [1], [0, 0, 1, 1], [], []>} : vector<2x32xf32>, vector<32x128xf32>, vector<2x128xf32> -> vector<2x128xf32>
    %257 = arith.addf %255, %256 : vector<2x128xf32>
    %258 = arith.mulf %257, %21 : vector<2x128xf32>
    %259 = math.tanh %258 : vector<2x128xf32>
    %cst_74 = arith.constant 5.000000e-01 : f32
    %260 = vector.broadcast %cst_74 : f32 to vector<2x128xf32>
    %261 = arith.mulf %260, %259 : vector<2x128xf32>
    %cst_75 = arith.constant 5.000000e-01 : f32
    %262 = vector.broadcast %cst_75 : f32 to vector<2x128xf32>
    %263 = arith.addf %261, %262 : vector<2x128xf32>
    %264 = arith.select %18, %259, %263 : vector<2x128xi1>, vector<2x128xf32>
    %265 = vector.extract_strided_slice %264 {offsets = [0, 0], sizes = [2, 32], strides = [1, 1]} : vector<2x128xf32> to vector<2x32xf32>
    %266 = vector.extract_strided_slice %264 {offsets = [0, 32], sizes = [2, 32], strides = [1, 1]} : vector<2x128xf32> to vector<2x32xf32>
    %267 = vector.extract_strided_slice %264 {offsets = [0, 64], sizes = [2, 32], strides = [1, 1]} : vector<2x128xf32> to vector<2x32xf32>
    %268 = vector.extract_strided_slice %264 {offsets = [0, 96], sizes = [2, 32], strides = [1, 1]} : vector<2x128xf32> to vector<2x32xf32>
    %269 = arith.mulf %266, %231 : vector<2x32xf32>
    %270 = arith.mulf %265, %267 : vector<2x32xf32>
    %271 = arith.addf %269, %270 : vector<2x32xf32>
    %272 = math.tanh %271 : vector<2x32xf32>
    %273 = arith.mulf %268, %272 : vector<2x32xf32>
    %cst_76 = arith.constant dense<0.000000e+00> : vector<2x128xf32>
    %274 = tpu.matmul %233, %27, %cst_76 {dimension_numbers = #tpu.dot_dimension_numbers<[1], [0], [0], [1], [0, 0, 1, 1], [], []>} : vector<2x32xf32>, vector<32x128xf32>, vector<2x128xf32> -> vector<2x128xf32>
    %cst_77 = arith.constant dense<0.000000e+00> : vector<2x128xf32>
    %275 = tpu.matmul %253, %25, %cst_77 {dimension_numbers = #tpu.dot_dimension_numbers<[1], [0], [0], [1], [0, 0, 1, 1], [], []>} : vector<2x32xf32>, vector<32x128xf32>, vector<2x128xf32> -> vector<2x128xf32>
    %276 = arith.addf %274, %275 : vector<2x128xf32>
    %277 = arith.addf %276, %31 : vector<2x128xf32>
    %278 = arith.mulf %277, %21 : vector<2x128xf32>
    %279 = math.tanh %278 : vector<2x128xf32>
    %cst_78 = arith.constant 5.000000e-01 : f32
    %280 = vector.broadcast %cst_78 : f32 to vector<2x128xf32>
    %281 = arith.mulf %280, %279 : vector<2x128xf32>
    %cst_79 = arith.constant 5.000000e-01 : f32
    %282 = vector.broadcast %cst_79 : f32 to vector<2x128xf32>
    %283 = arith.addf %281, %282 : vector<2x128xf32>
    %284 = arith.select %18, %279, %283 : vector<2x128xi1>, vector<2x128xf32>
    %285 = vector.extract_strided_slice %284 {offsets = [0, 0], sizes = [2, 32], strides = [1, 1]} : vector<2x128xf32> to vector<2x32xf32>
    %286 = vector.extract_strided_slice %284 {offsets = [0, 32], sizes = [2, 32], strides = [1, 1]} : vector<2x128xf32> to vector<2x32xf32>
    %287 = vector.extract_strided_slice %284 {offsets = [0, 64], sizes = [2, 32], strides = [1, 1]} : vector<2x128xf32> to vector<2x32xf32>
    %288 = vector.extract_strided_slice %284 {offsets = [0, 96], sizes = [2, 32], strides = [1, 1]} : vector<2x128xf32> to vector<2x32xf32>
    %289 = arith.mulf %286, %251 : vector<2x32xf32>
    %290 = arith.mulf %285, %287 : vector<2x32xf32>
    %291 = arith.addf %289, %290 : vector<2x32xf32>
    %292 = math.tanh %291 : vector<2x32xf32>
    %293 = arith.mulf %288, %292 : vector<2x32xf32>
    %c10 = arith.constant 10 : index
    %c0_80 = arith.constant 0 : index
    %294 = vector.load %arg9[%c10, %c0_80] : memref<16x32xf32, #tpu.memory_space<vmem>>, vector<2x32xf32>
    tpu.vector_store %arg9[%c10, %c0_80], %293 {strides = array<i32>} : memref<16x32xf32, #tpu.memory_space<vmem>>, vector<2x32xf32>,
    %295 = vector.extract_strided_slice %12 {offsets = [14, 0], sizes = [2, 128], strides = [1, 1]} : vector<16x128xf32> to vector<2x128xf32>
    %cst_81 = arith.constant dense<0.000000e+00> : vector<2x128xf32>
    %296 = tpu.matmul %273, %23, %cst_81 {dimension_numbers = #tpu.dot_dimension_numbers<[1], [0], [0], [1], [0, 0, 1, 1], [], []>} : vector<2x32xf32>, vector<32x128xf32>, vector<2x128xf32> -> vector<2x128xf32>
    %297 = arith.addf %295, %296 : vector<2x128xf32>
    %298 = arith.mulf %297, %21 : vector<2x128xf32>
    %299 = math.tanh %298 : vector<2x128xf32>
    %cst_82 = arith.constant 5.000000e-01 : f32
    %300 = vector.broadcast %cst_82 : f32 to vector<2x128xf32>
    %301 = arith.mulf %300, %299 : vector<2x128xf32>
    %cst_83 = arith.constant 5.000000e-01 : f32
    %302 = vector.broadcast %cst_83 : f32 to vector<2x128xf32>
    %303 = arith.addf %301, %302 : vector<2x128xf32>
    %304 = arith.select %18, %299, %303 : vector<2x128xi1>, vector<2x128xf32>
    %305 = vector.extract_strided_slice %304 {offsets = [0, 0], sizes = [2, 32], strides = [1, 1]} : vector<2x128xf32> to vector<2x32xf32>
    %306 = vector.extract_strided_slice %304 {offsets = [0, 32], sizes = [2, 32], strides = [1, 1]} : vector<2x128xf32> to vector<2x32xf32>
    %307 = vector.extract_strided_slice %304 {offsets = [0, 64], sizes = [2, 32], strides = [1, 1]} : vector<2x128xf32> to vector<2x32xf32>
    %308 = vector.extract_strided_slice %304 {offsets = [0, 96], sizes = [2, 32], strides = [1, 1]} : vector<2x128xf32> to vector<2x32xf32>
    %309 = arith.mulf %306, %271 : vector<2x32xf32>
    %310 = arith.mulf %305, %307 : vector<2x32xf32>
    %311 = arith.addf %309, %310 : vector<2x32xf32>
    %312 = math.tanh %311 : vector<2x32xf32>
    %313 = arith.mulf %308, %312 : vector<2x32xf32>
    %cst_84 = arith.constant dense<0.000000e+00> : vector<2x128xf32>
    %314 = tpu.matmul %273, %27, %cst_84 {dimension_numbers = #tpu.dot_dimension_numbers<[1], [0], [0], [1], [0, 0, 1, 1], [], []>} : vector<2x32xf32>, vector<32x128xf32>, vector<2x128xf32> -> vector<2x128xf32>
    %cst_85 = arith.constant dense<0.000000e+00> : vector<2x128xf32>
    %315 = tpu.matmul %293, %25, %cst_85 {dimension_numbers = #tpu.dot_dimension_numbers<[1], [0], [0], [1], [0, 0, 1, 1], [], []>} : vector<2x32xf32>, vector<32x128xf32>, vector<2x128xf32> -> vector<2x128xf32>
    %316 = arith.addf %314, %315 : vector<2x128xf32>
    %317 = arith.addf %316, %31 : vector<2x128xf32>
    %318 = arith.mulf %317, %21 : vector<2x128xf32>
    %319 = math.tanh %318 : vector<2x128xf32>
    %cst_86 = arith.constant 5.000000e-01 : f32
    %320 = vector.broadcast %cst_86 : f32 to vector<2x128xf32>
    %321 = arith.mulf %320, %319 : vector<2x128xf32>
    %cst_87 = arith.constant 5.000000e-01 : f32
    %322 = vector.broadcast %cst_87 : f32 to vector<2x128xf32>
    %323 = arith.addf %321, %322 : vector<2x128xf32>
    %324 = arith.select %18, %319, %323 : vector<2x128xi1>, vector<2x128xf32>
    %325 = vector.extract_strided_slice %324 {offsets = [0, 0], sizes = [2, 32], strides = [1, 1]} : vector<2x128xf32> to vector<2x32xf32>
    %326 = vector.extract_strided_slice %324 {offsets = [0, 32], sizes = [2, 32], strides = [1, 1]} : vector<2x128xf32> to vector<2x32xf32>
    %327 = vector.extract_strided_slice %324 {offsets = [0, 64], sizes = [2, 32], strides = [1, 1]} : vector<2x128xf32> to vector<2x32xf32>
    %328 = vector.extract_strided_slice %324 {offsets = [0, 96], sizes = [2, 32], strides = [1, 1]} : vector<2x128xf32> to vector<2x32xf32>
    %329 = arith.mulf %326, %291 : vector<2x32xf32>
    %330 = arith.mulf %325, %327 : vector<2x32xf32>
    %331 = arith.addf %329, %330 : vector<2x32xf32>
    %332 = math.tanh %331 : vector<2x32xf32>
    %333 = arith.mulf %328, %332 : vector<2x32xf32>
    %c12 = arith.constant 12 : index
    %c0_88 = arith.constant 0 : index
    %334 = vector.load %arg9[%c12, %c0_88] : memref<16x32xf32, #tpu.memory_space<vmem>>, vector<2x32xf32>
    tpu.vector_store %arg9[%c12, %c0_88], %333 {strides = array<i32>} : memref<16x32xf32, #tpu.memory_space<vmem>>, vector<2x32xf32>,
    %cst_89 = arith.constant dense<0.000000e+00> : vector<2x128xf32>
    %335 = tpu.matmul %313, %27, %cst_89 {dimension_numbers = #tpu.dot_dimension_numbers<[1], [0], [0], [1], [0, 0, 1, 1], [], []>} : vector<2x32xf32>, vector<32x128xf32>, vector<2x128xf32> -> vector<2x128xf32>
    %cst_90 = arith.constant dense<0.000000e+00> : vector<2x128xf32>
    %336 = tpu.matmul %333, %25, %cst_90 {dimension_numbers = #tpu.dot_dimension_numbers<[1], [0], [0], [1], [0, 0, 1, 1], [], []>} : vector<2x32xf32>, vector<32x128xf32>, vector<2x128xf32> -> vector<2x128xf32>
    %337 = arith.addf %335, %336 : vector<2x128xf32>
    %338 = arith.addf %337, %31 : vector<2x128xf32>
    %339 = arith.mulf %338, %21 : vector<2x128xf32>
    %340 = math.tanh %339 : vector<2x128xf32>
    %cst_91 = arith.constant 5.000000e-01 : f32
    %341 = vector.broadcast %cst_91 : f32 to vector<2x128xf32>
    %342 = arith.mulf %341, %340 : vector<2x128xf32>
    %cst_92 = arith.constant 5.000000e-01 : f32
    %343 = vector.broadcast %cst_92 : f32 to vector<2x128xf32>
    %344 = arith.addf %342, %343 : vector<2x128xf32>
    %345 = arith.select %18, %340, %344 : vector<2x128xi1>, vector<2x128xf32>
    %346 = vector.extract_strided_slice %345 {offsets = [0, 0], sizes = [2, 32], strides = [1, 1]} : vector<2x128xf32> to vector<2x32xf32>
    %347 = vector.extract_strided_slice %345 {offsets = [0, 32], sizes = [2, 32], strides = [1, 1]} : vector<2x128xf32> to vector<2x32xf32>
    %348 = vector.extract_strided_slice %345 {offsets = [0, 64], sizes = [2, 32], strides = [1, 1]} : vector<2x128xf32> to vector<2x32xf32>
    %349 = vector.extract_strided_slice %345 {offsets = [0, 96], sizes = [2, 32], strides = [1, 1]} : vector<2x128xf32> to vector<2x32xf32>
    %350 = arith.mulf %347, %331 : vector<2x32xf32>
    %351 = arith.mulf %346, %348 : vector<2x32xf32>
    %352 = arith.addf %350, %351 : vector<2x32xf32>
    %353 = math.tanh %352 : vector<2x32xf32>
    %354 = arith.mulf %349, %353 : vector<2x32xf32>
    %c14 = arith.constant 14 : index
    %c0_93 = arith.constant 0 : index
    %355 = vector.load %arg9[%c14, %c0_93] : memref<16x32xf32, #tpu.memory_space<vmem>>, vector<2x32xf32>
    tpu.vector_store %arg9[%c14, %c0_93], %354 {strides = array<i32>} : memref<16x32xf32, #tpu.memory_space<vmem>>, vector<2x32xf32>,
    %c0_94 = arith.constant 0 : index
    %c0_95 = arith.constant 0 : index
    %356 = vector.load %arg9[%c0_94, %c0_95] : memref<16x32xf32, #tpu.memory_space<vmem>>, vector<16x32xf32>
    %c0_96 = arith.constant 0 : index
    %c0_97 = arith.constant 0 : index
    %357 = vector.load %arg6[%c0_96, %c0_97] : memref<32x128xf32, #tpu.memory_space<vmem>>, vector<32x128xf32>
    %cst_98 = arith.constant dense<0.000000e+00> : vector<16x128xf32>
    %358 = tpu.matmul %356, %357, %cst_98 {dimension_numbers = #tpu.dot_dimension_numbers<[1], [0], [0], [1], [0, 0, 1, 1], [], []>} : vector<16x32xf32>, vector<32x128xf32>, vector<16x128xf32> -> vector<16x128xf32>
    %c0_99 = arith.constant 0 : index
    %c0_100 = arith.constant 0 : index
    %359 = vector.load %arg7[%c0_99, %c0_100] : memref<1x128xf32, #tpu.memory_space<vmem>>, vector<1x128xf32>
    %360 = vector.broadcast %359 : vector<1x128xf32> to vector<16x128xf32>
    %361 = arith.addf %358, %360 : vector<16x128xf32>
    %c0_101 = arith.constant 0 : index
    %c0_102 = arith.constant 0 : index
    %362 = vector.load %arg8[%c0_101, %c0_102] : memref<16x128xf32, #tpu.memory_space<vmem>>, vector<16x128xf32>
    tpu.vector_store %arg8[%c0_101, %c0_102], %361 {strides = array<i32>} : memref<16x128xf32, #tpu.memory_space<vmem>>, vector<16x128xf32>,
    return
  }
}

</mosaic_0001>

<llo_original>
// kernel: tpu_custom_call.1
$region0: #{tpu_custom_call.1}
  #allocation0 [shape = 'u32[]', space=smem, size = 0x4, offset = 0x4, fixed_abs, tag = 'smem constant byte address 0x4 - core index']
  #allocation1 [shape = 'u32[144,128]{1,0:T(1,128)}', space=vmem, size = 0x12000, scoped, tag = 'internal scratch']
  #allocation2 [shape = 'f32[16,32]{1,0:T(8,128)}', space=vmem, size = 0x2000, scoped, tag = 'scratch operand']
  %s0 = inlined_call_operand.vmem [shape: f32[16,4], index: 0, kind: input, shape index: {}]
  %s1 = inlined_call_operand.vmem [shape: f32[4,32], index: 1, kind: input, shape index: {}]
  %s2 = inlined_call_operand.vmem [shape: f32[1,32], index: 2, kind: input, shape index: {}]
  %s3 = inlined_call_operand.hbm [shape: f32[2,32,128], index: 3, kind: input, shape index: {}]
  %s4 = inlined_call_operand.hbm [shape: f32[2,32,128], index: 4, kind: input, shape index: {}]
  %s5 = inlined_call_operand.vmem [shape: f32[2,1,128], index: 5, kind: input, shape index: {}]
  %s6 = inlined_call_operand.vmem [shape: f32[32,128], index: 6, kind: input, shape index: {}]
  %s7 = inlined_call_operand.vmem [shape: f32[1,128], index: 7, kind: input, shape index: {}]
  %s8 = inlined_call_operand.hbm [shape: f32[16,128], index: 8, kind: output, shape index: {}]
  %s9 = sld [smem:[#allocation0]]
  $region50: #{tpu_custom_call.1} parent=0
    _
  %s11 = ssub.s32 1, %s9
  %s12 = scalar_select 0, %s11, %s9
  $region1: #{tpu_custom_call.1} parent=0
    #allocation3 [shape = 'u8[32768]{0}', space=vmem, size = 0x8000, scoped, tag = 'input window, operand 3, single buffered']
    #allocation4 [shape = 's32[1]{0}', space=sflag, size = 0x4, scoped, tag = 'scoped memory for tpu_custom_call.1']
    #allocation5 [shape = 's32[1]{0}', space=sflag, size = 0x4, scoped, tag = 'scoped memory for tpu_custom_call.1']
    #allocation6 [shape = 'u8[32768]{0}', space=vmem, size = 0x8000, scoped, tag = 'input window, operand 4, single buffered']
    #allocation7 [shape = 's32[1]{0}', space=sflag, size = 0x4, scoped, tag = 'scoped memory for tpu_custom_call.1']
    #allocation8 [shape = 'u8[8192]{0}', space=vmem, size = 0x2000, scoped, tag = 'output window, operand 0, single buffered']
    %13 = vsyncpa [#allocation4], 0
    %14 = vsyncpa [#allocation7], 0
    %15 = vsyncpa [#allocation5], 0
    // Predicated region
    $region2: #{tpu_custom_call.1} parent=1 // pred_check
      _
    $region3: #{tpu_custom_call.1} parent=1 // pred_check_branch
      %17 = sbr.rel (0) target = $region5
    $region4: #{tpu_custom_call.1} parent=1 // pred_region
      _
    $region5: #{tpu_custom_call.1} parent=1 // pred_fallthru
      _
    // Predicated region
    $region6: #{tpu_custom_call.1} parent=1 // pred_check
      _
    $region7: #{tpu_custom_call.1} parent=1 // pred_check_branch
      %19 = sbr.rel (0) target = $region9
    $region8: #{tpu_custom_call.1} parent=1 // pred_region
      _
    $region9: #{tpu_custom_call.1} parent=1 // pred_fallthru
      _
    // Predicated region
    $region10: #{tpu_custom_call.1} parent=1 // pred_check
      _
    $region11: #{tpu_custom_call.1} parent=1 // pred_check_branch
      %21 = sbr.rel (0) target = $region13
    $region12: #{tpu_custom_call.1} parent=1 // pred_region
      _
    $region13: #{tpu_custom_call.1} parent=1 // pred_fallthru
      _
    // Predicated region
    $region14: #{tpu_custom_call.1} parent=1 // pred_check
      _
    $region15: #{tpu_custom_call.1} parent=1 // pred_check_branch
      %23 = sbr.rel (0) target = $region17
    $region16: #{tpu_custom_call.1} parent=1 // pred_region
      %s25 = ssub.s32 1024, 1024
      %26 = vsyncadd [#allocation4], %s25
      %s27 = sshll.u32 [#allocation3], 4
      %s28 = int_to_ptr.vmem [resolvable:$true] %s27
      %33 = dma.hbm_to_vmem [thread:$0]  %s3, 1024, %s28, [#allocation4], 128, 128, 8
    $region17: #{tpu_custom_call.1} parent=1 // pred_fallthru
      _
    // Predicated region
    $region18: #{tpu_custom_call.1} parent=1 // pred_check
      _
    $region19: #{tpu_custom_call.1} parent=1 // pred_check_branch
      %35 = sbr.rel (0) target = $region21
    $region20: #{tpu_custom_call.1} parent=1 // pred_region
      %s37 = ssub.s32 1024, 1024
      %38 = vsyncadd [#allocation7], %s37
      %s39 = sshll.u32 [#allocation6], 4
      %s40 = int_to_ptr.vmem [resolvable:$true] %s39
      %45 = dma.hbm_to_vmem [thread:$0]  %s4, 1024, %s40, [#allocation7], 128, 128, 8
    $region21: #{tpu_custom_call.1} parent=1 // pred_fallthru
      _
    // Predicated region
    $region22: #{tpu_custom_call.1} parent=1 // pred_check
      _
    $region23: #{tpu_custom_call.1} parent=1 // pred_check_branch
      %47 = sbr.rel (0) target = $region25
    $region24: #{tpu_custom_call.1} parent=1 // pred_region
      _
    $region25: #{tpu_custom_call.1} parent=1 // pred_fallthru
      _
    // Predicated region
    $region26: #{tpu_custom_call.1} parent=1 // pred_check
      _
    $region27: #{tpu_custom_call.1} parent=1 // pred_check_branch
      %49 = sbr.rel (0) target = $region29
    $region28: #{tpu_custom_call.1} parent=1 // pred_region
      _
    $region29: #{tpu_custom_call.1} parent=1 // pred_fallthru
      _
    // Predicated region
    $region30: #{tpu_custom_call.1} parent=1 // pred_check
      _
    $region31: #{tpu_custom_call.1} parent=1 // pred_check_branch
      %51 = sbr.rel (0) target = $region33
    $region32: #{tpu_custom_call.1} parent=1 // pred_region
      _
    $region33: #{tpu_custom_call.1} parent=1 // pred_fallthru
      _
    // Predicated region
    $region34: #{tpu_custom_call.1} parent=1 // pred_check
      _
    $region35: #{tpu_custom_call.1} parent=1 // pred_check_branch
      %53 = sbr.rel (0) target = $region37
    $region36: #{tpu_custom_call.1} parent=1 // pred_region
      %54 = dma.done [#allocation4], 1024
    $region37: #{tpu_custom_call.1} parent=1 // pred_fallthru
      _
    // Predicated region
    $region38: #{tpu_custom_call.1} parent=1 // pred_check
      _
    $region39: #{tpu_custom_call.1} parent=1 // pred_check_branch
      %56 = sbr.rel (0) target = $region41
    $region40: #{tpu_custom_call.1} parent=1 // pred_region
      %57 = dma.done [#allocation7], 1024
    $region41: #{tpu_custom_call.1} parent=1 // pred_fallthru
      _
    %v58 = vld [vmem:[%s0] sm:$0xff]
    %v59 = vld [vmem:[%s0 + $0x8] sm:$0xff]
    %v60 = vld [vmem:[%s1] sm:$0xf]
    %v61 = vld [vmem:[%s2] sm:$0x1]
    %v63 = vlaneseq
    %v64 = vshrl.u32 %v63, 7
    %v65 = vsub.s32 0, %v64
    %v66 = vrot.slane %v61, %v65
    %vm68 = vcmask 31744
    %v70 = vsel %vm68, %v58, 0
    %v73 = vsel %vm68, %v59, 0
    %vm75 = vcmask 1043456
    %v77 = vsel %vm75, %v60, 0
    %79 = vmatprep.subr.mxu0 0.0
    %80 = vmatpush1.msra.mxu0 %v77
    %81 = vmatprep.subr.mxu0 0.0
    %82 = vmatpush1.msra.mxu0 0.0
    %83 = vmatprep.subr.mxu0 0.0
    %84 = vmatpush1.msra.mxu0 0.0
    %85 = vmatprep.subr.mxu0 0.0
    %86 = vmatpush1.msra.mxu0 0.0
    %87 = vmatprep.subr.mxu0 0.0
    %88 = vmatpush1.msra.mxu0 0.0
    %89 = vmatprep.subr.mxu0 0.0
    %90 = vmatpush1.msra.mxu0 0.0
    %91 = vmatprep.subr.mxu0 0.0
    %92 = vmatpush1.msra.mxu0 0.0
    %93 = vmatprep.subr.mxu0 0.0
    %94 = vmatpush1.msra.mxu0 0.0
    %95 = vmatprep.subr.mxu0 0.0
    %96 = vmatpush1.msra.mxu0 0.0
    %97 = vmatprep.subr.mxu0 0.0
    %98 = vmatpush1.msra.mxu0 0.0
    %99 = vmatprep.subr.mxu0 0.0
    %100 = vmatpush1.msra.mxu0 0.0
    %101 = vmatprep.subr.mxu0 0.0
    %102 = vmatpush1.msra.mxu0 0.0
    %103 = vmatprep.subr.mxu0 0.0
    %104 = vmatpush1.msra.mxu0 0.0
    %105 = vmatprep.subr.mxu0 0.0
    %106 = vmatpush1.msra.mxu0 0.0
    %107 = vmatprep.subr.mxu0 0.0
    %108 = vmatpush1.msra.mxu0 0.0
    %109 = vmatprep.subr.mxu0 0.0
    %110 = vmatpush1.msra.mxu0 0.0
    %111 = vmatprep.subr.mxu0 0.0
    %112 = vmatpush1.msra.mxu0 0.0
    %113 = vmatprep.subr.mxu0 0.0
    %114 = vmatpush1.msra.mxu0 0.0
    %115 = vmatprep.subr.mxu0 0.0
    %116 = vmatpush1.msra.mxu0 0.0
    %117 = vmatprep.subr.mxu0 0.0
    %118 = vmatpush1.msra.mxu0 0.0
    %119 = vmatprep.subr.mxu0 0.0
    %120 = vmatpush1.msra.mxu0 0.0
    %121 = vmatprep.subr.mxu0 0.0
    %122 = vmatpush1.msra.mxu0 0.0
    %123 = vmatprep.subr.mxu0 0.0
    %124 = vmatpush1.msra.mxu0 0.0
    %125 = vmatprep.subr.mxu0 0.0
    %126 = vmatpush1.msra.mxu0 0.0
    %127 = vmatprep.subr.mxu0 0.0
    %128 = vmatpush1.msra.mxu0 0.0
    %129 = vmatprep.subr.mxu0 0.0
    %130 = vmatpush1.msra.mxu0 0.0
    %131 = vmatprep.subr.mxu0 0.0
    %132 = vmatpush1.msra.mxu0 0.0
    %133 = vmatprep.subr.mxu0 0.0
    %134 = vmatpush1.msra.mxu0 0.0
    %135 = vmatprep.subr.mxu0 0.0
    %136 = vmatpush1.msra.mxu0 0.0
    %137 = vmatprep.subr.mxu0 0.0
    %138 = vmatpush1.msra.mxu0 0.0
    %139 = vmatprep.subr.mxu0 0.0
    %140 = vmatpush1.msra.mxu0 0.0
    %141 = vmatprep.subr.mxu0 0.0
    %142 = vmatpush1.msra.mxu0 0.0
    %143 = vmatprep.mubr.f32.mxu0 0.0
    %144 = vmatmul.mubr.f32.gmra.mrb[0].mxu0 %v70
    %v145 = vpop.f32.mrb[0].mxu0
    %v146 = vadd.f32 %v66, %v145
    %v147 = vpop.f32.mrb[0].mxu0
    %148 = vmatprep.mubr.f32.mxu0 0.0
    %149 = vmatmul.mubr.f32.gmra.mrb[0].mxu0 %v73
    %v150 = vpop.f32.mrb[0].mxu0
    %v151 = vadd.f32 %v66, %v150
    %v152 = vpop.f32.mrb[0].mxu0
    %153 = vdwg.mxu0
    %v154 = vld [vmem:[#allocation3] sm:$0xff]
    %v155 = vld [vmem:[#allocation3 + $0x8] sm:$0xff]
    %v156 = vld [vmem:[#allocation3 + $0x10] sm:$0xff]
    %v157 = vld [vmem:[#allocation3 + $0x18] sm:$0xff]
    %v158 = vld [vmem:[%s5] sm:$0x1]
    %v160 = vlaneseq
    %v161 = vshrl.u32 %v160, 7
    %v162 = vsub.s32 0, %v161
    %v163 = vrot.slane %v158, %v162
    %vm165 = vcmask 261120
    %v167 = vsel %vm165, %v146, 0
    %v170 = vsel %vm165, %v151, 0
    %172 = vmatprep.subr.mxu0 0.0
    %173 = vmatpush1.msra.mxu0 %v154
    %174 = vmatprep.subr.mxu0 0.0
    %175 = vmatpush1.msra.mxu0 %v155
    %176 = vmatprep.subr.mxu0 0.0
    %177 = vmatpush1.msra.mxu0 %v156
    %178 = vmatprep.subr.mxu0 0.0
    %179 = vmatpush1.msra.mxu0 %v157
    %180 = vmatprep.subr.mxu0 0.0
    %181 = vmatpush1.msra.mxu0 0.0
    %182 = vmatprep.subr.mxu0 0.0
    %183 = vmatpush1.msra.mxu0 0.0
    %184 = vmatprep.subr.mxu0 0.0
    %185 = vmatpush1.msra.mxu0 0.0
    %186 = vmatprep.subr.mxu0 0.0
    %187 = vmatpush1.msra.mxu0 0.0
    %188 = vmatprep.subr.mxu0 0.0
    %189 = vmatpush1.msra.mxu0 0.0
    %190 = vmatprep.subr.mxu0 0.0
    %191 = vmatpush1.msra.mxu0 0.0
    %192 = vmatprep.subr.mxu0 0.0
    %193 = vmatpush1.msra.mxu0 0.0
    %194 = vmatprep.subr.mxu0 0.0
    %195 = vmatpush1.msra.mxu0 0.0
    %196 = vmatprep.subr.mxu0 0.0
    %197 = vmatpush1.msra.mxu0 0.0
    %198 = vmatprep.subr.mxu0 0.0
    %199 = vmatpush1.msra.mxu0 0.0
    %200 = vmatprep.subr.mxu0 0.0
    %201 = vmatpush1.msra.mxu0 0.0
    %202 = vmatprep.subr.mxu0 0.0
    %203 = vmatpush1.msra.mxu0 0.0
    %204 = vmatprep.subr.mxu0 0.0
    %205 = vmatpush1.msra.mxu0 0.0
    %206 = vmatprep.subr.mxu0 0.0
    %207 = vmatpush1.msra.mxu0 0.0
    %208 = vmatprep.subr.mxu0 0.0
    %209 = vmatpush1.msra.mxu0 0.0
    %210 = vmatprep.subr.mxu0 0.0
    %211 = vmatpush1.msra.mxu0 0.0
    %212 = vmatprep.subr.mxu0 0.0
    %213 = vmatpush1.msra.mxu0 0.0
    %214 = vmatprep.subr.mxu0 0.0
    %215 = vmatpush1.msra.mxu0 0.0
    %216 = vmatprep.subr.mxu0 0.0
    %217 = vmatpush1.msra.mxu0 0.0
    %218 = vmatprep.subr.mxu0 0.0
    %219 = vmatpush1.msra.mxu0 0.0
    %220 = vmatprep.subr.mxu0 0.0
    %221 = vmatpush1.msra.mxu0 0.0
    %222 = vmatprep.subr.mxu0 0.0
    %223 = vmatpush1.msra.mxu0 0.0
    %224 = vmatprep.subr.mxu0 0.0
    %225 = vmatpush1.msra.mxu0 0.0
    %226 = vmatprep.subr.mxu0 0.0
    %227 = vmatpush1.msra.mxu0 0.0
    %228 = vmatprep.subr.mxu0 0.0
    %229 = vmatpush1.msra.mxu0 0.0
    %230 = vmatprep.subr.mxu0 0.0
    %231 = vmatpush1.msra.mxu0 0.0
    %232 = vmatprep.subr.mxu0 0.0
    %233 = vmatpush1.msra.mxu0 0.0
    %234 = vmatprep.subr.mxu0 0.0
    %235 = vmatpush1.msra.mxu0 0.0
    %236 = vmatprep.mubr.f32.mxu0 0.0
    %237 = vmatmul.mubr.f32.gmra.mrb[0].mxu0 %v167
    %v238 = vpop.f32.mrb[0].mxu0
    %v239 = vadd.f32 %v163, %v238
    %v240 = vpop.f32.mrb[0].mxu0
    %241 = vmatprep.mubr.f32.mxu0 0.0
    %242 = vmatmul.mubr.f32.gmra.mrb[0].mxu0 %v170
    %v243 = vpop.f32.mrb[0].mxu0
    %v244 = vadd.f32 %v163, %v243
    %v245 = vpop.f32.mrb[0].mxu0
    %246 = vdwg.mxu0
    %v247 = vlaneseq
    %v248 = vand.u32 %v247, 127
    %vm249 = vcmp.ge.s32.totalorder %v248, 64
    %vm250 = vcmp.lt.s32.totalorder %v248, 96
    %vm251 = vmand %vm249, %vm250
    %v252 = vsel %vm251, 1.0, 0.5
    %v253 = vld [vmem:[#allocation6] sm:$0xff]
    %v254 = vld [vmem:[#allocation6 + $0x8] sm:$0xff]
    %v255 = vld [vmem:[#allocation6 + $0x10] sm:$0xff]
    %v256 = vld [vmem:[#allocation6 + $0x18] sm:$0xff]
    %s257 = scalar_lea.vmem [#allocation6], 32
    %v258 = vld [vmem:[%s257] sm:$0xff]
    %v259 = vld [vmem:[%s257 + $0x8] sm:$0xff]
    %v260 = vld [vmem:[%s257 + $0x10] sm:$0xff]
    %v261 = vld [vmem:[%s257 + $0x18] sm:$0xff]
    %s262 = scalar_lea.vmem [#allocation3], 32
    %v263 = vld [vmem:[%s262] sm:$0xff]
    %v264 = vld [vmem:[%s262 + $0x8] sm:$0xff]
    %v265 = vld [vmem:[%s262 + $0x10] sm:$0xff]
    %v266 = vld [vmem:[%s262 + $0x18] sm:$0xff]
    %s267 = scalar_lea.vmem %s5, 1
    %v268 = vld [vmem:[%s267] sm:$0x1]
    %v270 = vlaneseq
    %v271 = vshrl.u32 %v270, 7
    %v272 = vsub.s32 0, %v271
    %v273 = vrot.slane %v268, %v272
    %v276 = vsel %vm165, 0.0, 0
    %278 = vmatprep.subr.mxu0 0.0
    %279 = vmatpush1.msra.mxu0 %v253
    %280 = vmatprep.subr.mxu0 0.0
    %281 = vmatpush1.msra.mxu0 %v254
    %282 = vmatprep.subr.mxu0 0.0
    %283 = vmatpush1.msra.mxu0 %v255
    %284 = vmatprep.subr.mxu0 0.0
    %285 = vmatpush1.msra.mxu0 %v256
    %286 = vmatprep.subr.mxu0 0.0
    %287 = vmatpush1.msra.mxu0 0.0
    %288 = vmatprep.subr.mxu0 0.0
    %289 = vmatpush1.msra.mxu0 0.0
    %290 = vmatprep.subr.mxu0 0.0
    %291 = vmatpush1.msra.mxu0 0.0
    %292 = vmatprep.subr.mxu0 0.0
    %293 = vmatpush1.msra.mxu0 0.0
    %294 = vmatprep.subr.mxu0 0.0
    %295 = vmatpush1.msra.mxu0 0.0
    %296 = vmatprep.subr.mxu0 0.0
    %297 = vmatpush1.msra.mxu0 0.0
    %298 = vmatprep.subr.mxu0 0.0
    %299 = vmatpush1.msra.mxu0 0.0
    %300 = vmatprep.subr.mxu0 0.0
    %301 = vmatpush1.msra.mxu0 0.0
    %302 = vmatprep.subr.mxu0 0.0
    %303 = vmatpush1.msra.mxu0 0.0
    %304 = vmatprep.subr.mxu0 0.0
    %305 = vmatpush1.msra.mxu0 0.0
    %306 = vmatprep.subr.mxu0 0.0
    %307 = vmatpush1.msra.mxu0 0.0
    %308 = vmatprep.subr.mxu0 0.0
    %309 = vmatpush1.msra.mxu0 0.0
    %310 = vmatprep.subr.mxu0 0.0
    %311 = vmatpush1.msra.mxu0 0.0
    %312 = vmatprep.subr.mxu0 0.0
    %313 = vmatpush1.msra.mxu0 0.0
    %314 = vmatprep.subr.mxu0 0.0
    %315 = vmatpush1.msra.mxu0 0.0
    %316 = vmatprep.subr.mxu0 0.0
    %317 = vmatpush1.msra.mxu0 0.0
    %318 = vmatprep.subr.mxu0 0.0
    %319 = vmatpush1.msra.mxu0 0.0
    %320 = vmatprep.subr.mxu0 0.0
    %321 = vmatpush1.msra.mxu0 0.0
    %322 = vmatprep.subr.mxu0 0.0
    %323 = vmatpush1.msra.mxu0 0.0
    %324 = vmatprep.subr.mxu0 0.0
    %325 = vmatpush1.msra.mxu0 0.0
    %326 = vmatprep.subr.mxu0 0.0
    %327 = vmatpush1.msra.mxu0 0.0
    %328 = vmatprep.subr.mxu0 0.0
    %329 = vmatpush1.msra.mxu0 0.0
    %330 = vmatprep.subr.mxu0 0.0
    %331 = vmatpush1.msra.mxu0 0.0
    %332 = vmatprep.subr.mxu0 0.0
    %333 = vmatpush1.msra.mxu0 0.0
    %334 = vmatprep.subr.mxu0 0.0
    %335 = vmatpush1.msra.mxu0 0.0
    %336 = vmatprep.subr.mxu0 0.0
    %337 = vmatpush1.msra.mxu0 0.0
    %338 = vmatprep.subr.mxu0 0.0
    %339 = vmatpush1.msra.mxu0 0.0
    %340 = vmatprep.subr.mxu0 0.0
    %341 = vmatpush1.msra.mxu0 0.0
    %342 = vmatprep.mubr.f32.mxu0 0.0
    %343 = vmatmul.mubr.f32.gmra.mrb[0].mxu0 %v276
    %v344 = vpop.f32.mrb[0].mxu0
    %v345 = vadd.f32 0.0, %v344
    %v346 = vpop.f32.mrb[0].mxu0
    %347 = vdwg.mxu0
    %v348 = vadd.f32 %v239, %v345
    %v349 = vmul.f32 %v348, %v252
    %v350 = vtanh.pop %v349
    %v351 = vmul.f32 %v350, 0.5
    %v352 = vadd.f32 %v351, 0.5
    %v353 = vsel %vm251, %v350, %v352
    %v354 = vmul.f32 %v353, 0.0
    %356 = vrot.lane.b32.xlu0 %v353, 64
    %v357 = vpop.permute.xlu0 %356
    %v359 = vmul.f32 %v353, %v357
    %361 = vrot.lane.b32.xlu0 %v359, 32
    %v362 = vpop.permute.xlu0 %361
    %v364 = vadd.f32 %v354, %v362
    %v365 = vtanh.pop %v364
    %367 = vrot.lane.b32.xlu0 %v365, 64
    %v368 = vpop.permute.xlu0 %367
    %v370 = vmul.f32 %v353, %v368
    %372 = vrot.lane.b32.xlu0 %v370, 32
    %v373 = vpop.permute.xlu0 %372
    %v374 = vsel %vm165, %v373, 0
    %376 = vmatprep.subr.mxu0 0.0
    %377 = vmatpush1.msra.mxu0 %v253
    %378 = vmatprep.subr.mxu0 0.0
    %379 = vmatpush1.msra.mxu0 %v254
    %380 = vmatprep.subr.mxu0 0.0
    %381 = vmatpush1.msra.mxu0 %v255
    %382 = vmatprep.subr.mxu0 0.0
    %383 = vmatpush1.msra.mxu0 %v256
    %384 = vmatprep.subr.mxu0 0.0
    %385 = vmatpush1.msra.mxu0 0.0
    %386 = vmatprep.subr.mxu0 0.0
    %387 = vmatpush1.msra.mxu0 0.0
    %388 = vmatprep.subr.mxu0 0.0
    %389 = vmatpush1.msra.mxu0 0.0
    %390 = vmatprep.subr.mxu0 0.0
    %391 = vmatpush1.msra.mxu0 0.0
    %392 = vmatprep.subr.mxu0 0.0
    %393 = vmatpush1.msra.mxu0 0.0
    %394 = vmatprep.subr.mxu0 0.0
    %395 = vmatpush1.msra.mxu0 0.0
    %396 = vmatprep.subr.mxu0 0.0
    %397 = vmatpush1.msra.mxu0 0.0
    %398 = vmatprep.subr.mxu0 0.0
    %399 = vmatpush1.msra.mxu0 0.0
    %400 = vmatprep.subr.mxu0 0.0
    %401 = vmatpush1.msra.mxu0 0.0
    %402 = vmatprep.subr.mxu0 0.0
    %403 = vmatpush1.msra.mxu0 0.0
    %404 = vmatprep.subr.mxu0 0.0
    %405 = vmatpush1.msra.mxu0 0.0
    %406 = vmatprep.subr.mxu0 0.0
    %407 = vmatpush1.msra.mxu0 0.0
    %408 = vmatprep.subr.mxu0 0.0
    %409 = vmatpush1.msra.mxu0 0.0
    %410 = vmatprep.subr.mxu0 0.0
    %411 = vmatpush1.msra.mxu0 0.0
    %412 = vmatprep.subr.mxu0 0.0
    %413 = vmatpush1.msra.mxu0 0.0
    %414 = vmatprep.subr.mxu0 0.0
    %415 = vmatpush1.msra.mxu0 0.0
    %416 = vmatprep.subr.mxu0 0.0
    %417 = vmatpush1.msra.mxu0 0.0
    %418 = vmatprep.subr.mxu0 0.0
    %419 = vmatpush1.msra.mxu0 0.0
    %420 = vmatprep.subr.mxu0 0.0
    %421 = vmatpush1.msra.mxu0 0.0
    %422 = vmatprep.subr.mxu0 0.0
    %423 = vmatpush1.msra.mxu0 0.0
    %424 = vmatprep.subr.mxu0 0.0
    %425 = vmatpush1.msra.mxu0 0.0
    %426 = vmatprep.subr.mxu0 0.0
    %427 = vmatpush1.msra.mxu0 0.0
    %428 = vmatprep.subr.mxu0 0.0
    %429 = vmatpush1.msra.mxu0 0.0
    %430 = vmatprep.subr.mxu0 0.0
    %431 = vmatpush1.msra.mxu0 0.0
    %432 = vmatprep.subr.mxu0 0.0
    %433 = vmatpush1.msra.mxu0 0.0
    %434 = vmatprep.subr.mxu0 0.0
    %435 = vmatpush1.msra.mxu0 0.0
    %436 = vmatprep.subr.mxu0 0.0
    %437 = vmatpush1.msra.mxu0 0.0
    %438 = vmatprep.subr.mxu0 0.0
    %439 = vmatpush1.msra.mxu0 0.0
    %440 = vmatprep.mubr.f32.mxu0 0.0
    %441 = vmatmul.mubr.f32.gmra.mrb[0].mxu0 %v374
    %v442 = vpop.f32.mrb[0].mxu0
    %v443 = vadd.f32 0.0, %v442
    %v444 = vpop.f32.mrb[0].mxu0
    %445 = vdwg.mxu0
    %v447 = vrot.slane %v443, 6
    %v449 = vadd.f32 %v239, %v447
    %v450 = vmul.f32 %v449, %v252
    %v451 = vtanh.pop %v450
    %v452 = vmul.f32 %v451, 0.5
    %v453 = vadd.f32 %v452, 0.5
    %v454 = vsel %vm251, %v451, %v453
    %v456 = vrot.slane %v364, 6
    %v458 = vmul.f32 %v454, %v456
    %460 = vrot.lane.b32.xlu0 %v454, 64
    %v461 = vpop.permute.xlu0 %460
    %v463 = vmul.f32 %v454, %v461
    %465 = vrot.lane.b32.xlu0 %v463, 32
    %v466 = vpop.permute.xlu0 %465
    %v468 = vadd.f32 %v458, %v466
    %v469 = vtanh.pop %v468
    %471 = vrot.lane.b32.xlu0 %v469, 64
    %v472 = vpop.permute.xlu0 %471
    %v474 = vmul.f32 %v454, %v472
    %475 = vmatprep.subr.mxu0 0.0
    %476 = vmatpush1.msra.mxu0 %v258
    %477 = vmatprep.subr.mxu0 0.0
    %478 = vmatpush1.msra.mxu0 %v259
    %479 = vmatprep.subr.mxu0 0.0
    %480 = vmatpush1.msra.mxu0 %v260
    %481 = vmatprep.subr.mxu0 0.0
    %482 = vmatpush1.msra.mxu0 %v261
    %483 = vmatprep.subr.mxu0 0.0
    %484 = vmatpush1.msra.mxu0 0.0
    %485 = vmatprep.subr.mxu0 0.0
    %486 = vmatpush1.msra.mxu0 0.0
    %487 = vmatprep.subr.mxu0 0.0
    %488 = vmatpush1.msra.mxu0 0.0
    %489 = vmatprep.subr.mxu0 0.0
    %490 = vmatpush1.msra.mxu0 0.0
    %491 = vmatprep.subr.mxu0 0.0
    %492 = vmatpush1.msra.mxu0 0.0
    %493 = vmatprep.subr.mxu0 0.0
    %494 = vmatpush1.msra.mxu0 0.0
    %495 = vmatprep.subr.mxu0 0.0
    %496 = vmatpush1.msra.mxu0 0.0
    %497 = vmatprep.subr.mxu0 0.0
    %498 = vmatpush1.msra.mxu0 0.0
    %499 = vmatprep.subr.mxu0 0.0
    %500 = vmatpush1.msra.mxu0 0.0
    %501 = vmatprep.subr.mxu0 0.0
    %502 = vmatpush1.msra.mxu0 0.0
    %503 = vmatprep.subr.mxu0 0.0
    %504 = vmatpush1.msra.mxu0 0.0
    %505 = vmatprep.subr.mxu0 0.0
    %506 = vmatpush1.msra.mxu0 0.0
    %507 = vmatprep.subr.mxu0 0.0
    %508 = vmatpush1.msra.mxu0 0.0
    %509 = vmatprep.subr.mxu0 0.0
    %510 = vmatpush1.msra.mxu0 0.0
    %511 = vmatprep.subr.mxu0 0.0
    %512 = vmatpush1.msra.mxu0 0.0
    %513 = vmatprep.subr.mxu0 0.0
    %514 = vmatpush1.msra.mxu0 0.0
    %515 = vmatprep.subr.mxu0 0.0
    %516 = vmatpush1.msra.mxu0 0.0
    %517 = vmatprep.subr.mxu0 0.0
    %518 = vmatpush1.msra.mxu0 0.0
    %519 = vmatprep.subr.mxu0 0.0
    %520 = vmatpush1.msra.mxu0 0.0
    %521 = vmatprep.subr.mxu0 0.0
    %522 = vmatpush1.msra.mxu0 0.0
    %523 = vmatprep.subr.mxu0 0.0
    %524 = vmatpush1.msra.mxu0 0.0
    %525 = vmatprep.subr.mxu0 0.0
    %526 = vmatpush1.msra.mxu0 0.0
    %527 = vmatprep.subr.mxu0 0.0
    %528 = vmatpush1.msra.mxu0 0.0
    %529 = vmatprep.subr.mxu0 0.0
    %530 = vmatpush1.msra.mxu0 0.0
    %531 = vmatprep.subr.mxu0 0.0
    %532 = vmatpush1.msra.mxu0 0.0
    %533 = vmatprep.subr.mxu0 0.0
    %534 = vmatpush1.msra.mxu0 0.0
    %535 = vmatprep.subr.mxu0 0.0
    %536 = vmatpush1.msra.mxu0 0.0
    %537 = vmatprep.subr.mxu0 0.0
    %538 = vmatpush1.msra.mxu0 0.0
    %539 = vmatprep.mubr.f32.mxu0 0.0
    %540 = vmatmul.mubr.f32.gmra.mrb[0].mxu0 %v276
    %v541 = vpop.f32.mrb[0].mxu0
    %v542 = vadd.f32 0.0, %v541
    %v543 = vpop.f32.mrb[0].mxu0
    %544 = vdwg.mxu0
    %545 = vmatprep.subr.mxu0 0.0
    %546 = vmatpush1.msra.mxu0 %v263
    %547 = vmatprep.subr.mxu0 0.0
    %548 = vmatpush1.msra.mxu0 %v264
    %549 = vmatprep.subr.mxu0 0.0
    %550 = vmatpush1.msra.mxu0 %v265
    %551 = vmatprep.subr.mxu0 0.0
    %552 = vmatpush1.msra.mxu0 %v266
    %553 = vmatprep.subr.mxu0 0.0
    %554 = vmatpush1.msra.mxu0 0.0
    %555 = vmatprep.subr.mxu0 0.0
    %556 = vmatpush1.msra.mxu0 0.0
    %557 = vmatprep.subr.mxu0 0.0
    %558 = vmatpush1.msra.mxu0 0.0
    %559 = vmatprep.subr.mxu0 0.0
    %560 = vmatpush1.msra.mxu0 0.0
    %561 = vmatprep.subr.mxu0 0.0
    %562 = vmatpush1.msra.mxu0 0.0
    %563 = vmatprep.subr.mxu0 0.0
    %564 = vmatpush1.msra.mxu0 0.0
    %565 = vmatprep.subr.mxu0 0.0
    %566 = vmatpush1.msra.mxu0 0.0
    %567 = vmatprep.subr.mxu0 0.0
    %568 = vmatpush1.msra.mxu0 0.0
    %569 = vmatprep.subr.mxu0 0.0
    %570 = vmatpush1.msra.mxu0 0.0
    %571 = vmatprep.subr.mxu0 0.0
    %572 = vmatpush1.msra.mxu0 0.0
    %573 = vmatprep.subr.mxu0 0.0
    %574 = vmatpush1.msra.mxu0 0.0
    %575 = vmatprep.subr.mxu0 0.0
    %576 = vmatpush1.msra.mxu0 0.0
    %577 = vmatprep.subr.mxu0 0.0
    %578 = vmatpush1.msra.mxu0 0.0
    %579 = vmatprep.subr.mxu0 0.0
    %580 = vmatpush1.msra.mxu0 0.0
    %581 = vmatprep.subr.mxu0 0.0
    %582 = vmatpush1.msra.mxu0 0.0
    %583 = vmatprep.subr.mxu0 0.0
    %584 = vmatpush1.msra.mxu0 0.0
    %585 = vmatprep.subr.mxu0 0.0
    %586 = vmatpush1.msra.mxu0 0.0
    %587 = vmatprep.subr.mxu0 0.0
    %588 = vmatpush1.msra.mxu0 0.0
    %589 = vmatprep.subr.mxu0 0.0
    %590 = vmatpush1.msra.mxu0 0.0
    %591 = vmatprep.subr.mxu0 0.0
    %592 = vmatpush1.msra.mxu0 0.0
    %593 = vmatprep.subr.mxu0 0.0
    %594 = vmatpush1.msra.mxu0 0.0
    %595 = vmatprep.subr.mxu0 0.0
    %596 = vmatpush1.msra.mxu0 0.0
    %597 = vmatprep.subr.mxu0 0.0
    %598 = vmatpush1.msra.mxu0 0.0
    %599 = vmatprep.subr.mxu0 0.0
    %600 = vmatpush1.msra.mxu0 0.0
    %601 = vmatprep.subr.mxu0 0.0
    %602 = vmatpush1.msra.mxu0 0.0
    %603 = vmatprep.subr.mxu0 0.0
    %604 = vmatpush1.msra.mxu0 0.0
    %605 = vmatprep.subr.mxu0 0.0
    %606 = vmatpush1.msra.mxu0 0.0
    %607 = vmatprep.subr.mxu0 0.0
    %608 = vmatpush1.msra.mxu0 0.0
    %609 = vmatprep.mubr.f32.mxu0 0.0
    %610 = vmatmul.mubr.f32.gmra.mrb[0].mxu0 %v374
    %v611 = vpop.f32.mrb[0].mxu0
    %v612 = vadd.f32 %v542, %v611
    %v613 = vpop.f32.mrb[0].mxu0
    %614 = vdwg.mxu0
    %v615 = vadd.f32 %v612, %v273
    %v616 = vmul.f32 %v615, %v252
    %v617 = vtanh.pop %v616
    %v618 = vmul.f32 %v617, 0.5
    %v619 = vadd.f32 %v618, 0.5
    %v620 = vsel %vm251, %v617, %v619
    %v621 = vmul.f32 %v620, 0.0
    %623 = vrot.lane.b32.xlu0 %v620, 64
    %v624 = vpop.permute.xlu0 %623
    %v626 = vmul.f32 %v620, %v624
    %628 = vrot.lane.b32.xlu0 %v626, 32
    %v629 = vpop.permute.xlu0 %628
    %v631 = vadd.f32 %v621, %v629
    %v632 = vtanh.pop %v631
    %634 = vrot.lane.b32.xlu0 %v632, 64
    %v635 = vpop.permute.xlu0 %634
    %v637 = vmul.f32 %v620, %v635
    %639 = vrot.lane.b32.xlu0 %v637, 32
    %v640 = vpop.permute.xlu0 %639
    %vm642 = vcmask 254976
    %643 = vst.msk [vmem:[#allocation2] sm:$0x3] %vm642, %v640
    %v645 = vrot.slane %v474, 2
    %646 = vrot.lane.b32.xlu0 %v645, 32
    %v647 = vpop.permute.xlu0 %646
    %v648 = vsel %vm165, %v647, 0
    %650 = vmatprep.subr.mxu0 0.0
    %651 = vmatpush1.msra.mxu0 %v253
    %652 = vmatprep.subr.mxu0 0.0
    %653 = vmatpush1.msra.mxu0 %v254
    %654 = vmatprep.subr.mxu0 0.0
    %655 = vmatpush1.msra.mxu0 %v255
    %656 = vmatprep.subr.mxu0 0.0
    %657 = vmatpush1.msra.mxu0 %v256
    %658 = vmatprep.subr.mxu0 0.0
    %659 = vmatpush1.msra.mxu0 0.0
    %660 = vmatprep.subr.mxu0 0.0
    %661 = vmatpush1.msra.mxu0 0.0
    %662 = vmatprep.subr.mxu0 0.0
    %663 = vmatpush1.msra.mxu0 0.0
    %664 = vmatprep.subr.mxu0 0.0
    %665 = vmatpush1.msra.mxu0 0.0
    %666 = vmatprep.subr.mxu0 0.0
    %667 = vmatpush1.msra.mxu0 0.0
    %668 = vmatprep.subr.mxu0 0.0
    %669 = vmatpush1.msra.mxu0 0.0
    %670 = vmatprep.subr.mxu0 0.0
    %671 = vmatpush1.msra.mxu0 0.0
    %672 = vmatprep.subr.mxu0 0.0
    %673 = vmatpush1.msra.mxu0 0.0
    %674 = vmatprep.subr.mxu0 0.0
    %675 = vmatpush1.msra.mxu0 0.0
    %676 = vmatprep.subr.mxu0 0.0
    %677 = vmatpush1.msra.mxu0 0.0
    %678 = vmatprep.subr.mxu0 0.0
    %679 = vmatpush1.msra.mxu0 0.0
    %680 = vmatprep.subr.mxu0 0.0
    %681 = vmatpush1.msra.mxu0 0.0
    %682 = vmatprep.subr.mxu0 0.0
    %683 = vmatpush1.msra.mxu0 0.0
    %684 = vmatprep.subr.mxu0 0.0
    %685 = vmatpush1.msra.mxu0 0.0
    %686 = vmatprep.subr.mxu0 0.0
    %687 = vmatpush1.msra.mxu0 0.0
    %688 = vmatprep.subr.mxu0 0.0
    %689 = vmatpush1.msra.mxu0 0.0
    %690 = vmatprep.subr.mxu0 0.0
    %691 = vmatpush1.msra.mxu0 0.0
    %692 = vmatprep.subr.mxu0 0.0
    %693 = vmatpush1.msra.mxu0 0.0
    %694 = vmatprep.subr.mxu0 0.0
    %695 = vmatpush1.msra.mxu0 0.0
    %696 = vmatprep.subr.mxu0 0.0
    %697 = vmatpush1.msra.mxu0 0.0
    %698 = vmatprep.subr.mxu0 0.0
    %699 = vmatpush1.msra.mxu0 0.0
    %700 = vmatprep.subr.mxu0 0.0
    %701 = vmatpush1.msra.mxu0 0.0
    %702 = vmatprep.subr.mxu0 0.0
    %703 = vmatpush1.msra.mxu0 0.0
    %704 = vmatprep.subr.mxu0 0.0
    %705 = vmatpush1.msra.mxu0 0.0
    %706 = vmatprep.subr.mxu0 0.0
    %707 = vmatpush1.msra.mxu0 0.0
    %708 = vmatprep.subr.mxu0 0.0
    %709 = vmatpush1.msra.mxu0 0.0
    %710 = vmatprep.subr.mxu0 0.0
    %711 = vmatpush1.msra.mxu0 0.0
    %712 = vmatprep.subr.mxu0 0.0
    %713 = vmatpush1.msra.mxu0 0.0
    %714 = vmatprep.mubr.f32.mxu0 0.0
    %715 = vmatmul.mubr.f32.gmra.mrb[0].mxu0 %v648
    %v716 = vpop.f32.mrb[0].mxu0
    %v717 = vadd.f32 0.0, %v716
    %v718 = vpop.f32.mrb[0].mxu0
    %719 = vdwg.mxu0
    %v721 = vrot.slane %v717, 4
    %v723 = vadd.f32 %v239, %v721
    %v724 = vmul.f32 %v723, %v252
    %v725 = vtanh.pop %v724
    %v726 = vmul.f32 %v725, 0.5
    %v727 = vadd.f32 %v726, 0.5
    %v728 = vsel %vm251, %v725, %v727
    %v730 = vrot.slane %v468, 6
    %v732 = vmul.f32 %v728, %v730
    %734 = vrot.lane.b32.xlu0 %v728, 64
    %v735 = vpop.permute.xlu0 %734
    %v737 = vmul.f32 %v728, %v735
    %739 = vrot.lane.b32.xlu0 %v737, 32
    %v740 = vpop.permute.xlu0 %739
    %v742 = vadd.f32 %v732, %v740
    %v743 = vtanh.pop %v742
    %745 = vrot.lane.b32.xlu0 %v743, 64
    %v746 = vpop.permute.xlu0 %745
    %v748 = vmul.f32 %v728, %v746
    %v749 = vsel %vm165, %v640, 0
    %751 = vmatprep.subr.mxu0 0.0
    %752 = vmatpush1.msra.mxu0 %v258
    %753 = vmatprep.subr.mxu0 0.0
    %754 = vmatpush1.msra.mxu0 %v259
    %755 = vmatprep.subr.mxu0 0.0
    %756 = vmatpush1.msra.mxu0 %v260
    %757 = vmatprep.subr.mxu0 0.0
    %758 = vmatpush1.msra.mxu0 %v261
    %759 = vmatprep.subr.mxu0 0.0
    %760 = vmatpush1.msra.mxu0 0.0
    %761 = vmatprep.subr.mxu0 0.0
    %762 = vmatpush1.msra.mxu0 0.0
    %763 = vmatprep.subr.mxu0 0.0
    %764 = vmatpush1.msra.mxu0 0.0
    %765 = vmatprep.subr.mxu0 0.0
    %766 = vmatpush1.msra.mxu0 0.0
    %767 = vmatprep.subr.mxu0 0.0
    %768 = vmatpush1.msra.mxu0 0.0
    %769 = vmatprep.subr.mxu0 0.0
    %770 = vmatpush1.msra.mxu0 0.0
    %771 = vmatprep.subr.mxu0 0.0
    %772 = vmatpush1.msra.mxu0 0.0
    %773 = vmatprep.subr.mxu0 0.0
    %774 = vmatpush1.msra.mxu0 0.0
    %775 = vmatprep.subr.mxu0 0.0
    %776 = vmatpush1.msra.mxu0 0.0
    %777 = vmatprep.subr.mxu0 0.0
    %778 = vmatpush1.msra.mxu0 0.0
    %779 = vmatprep.subr.mxu0 0.0
    %780 = vmatpush1.msra.mxu0 0.0
    %781 = vmatprep.subr.mxu0 0.0
    %782 = vmatpush1.msra.mxu0 0.0
    %783 = vmatprep.subr.mxu0 0.0
    %784 = vmatpush1.msra.mxu0 0.0
    %785 = vmatprep.subr.mxu0 0.0
    %786 = vmatpush1.msra.mxu0 0.0
    %787 = vmatprep.subr.mxu0 0.0
    %788 = vmatpush1.msra.mxu0 0.0
    %789 = vmatprep.subr.mxu0 0.0
    %790 = vmatpush1.msra.mxu0 0.0
    %791 = vmatprep.subr.mxu0 0.0
    %792 = vmatpush1.msra.mxu0 0.0
    %793 = vmatprep.subr.mxu0 0.0
    %794 = vmatpush1.msra.mxu0 0.0
    %795 = vmatprep.subr.mxu0 0.0
    %796 = vmatpush1.msra.mxu0 0.0
    %797 = vmatprep.subr.mxu0 0.0
    %798 = vmatpush1.msra.mxu0 0.0
    %799 = vmatprep.subr.mxu0 0.0
    %800 = vmatpush1.msra.mxu0 0.0
    %801 = vmatprep.subr.mxu0 0.0
    %802 = vmatpush1.msra.mxu0 0.0
    %803 = vmatprep.subr.mxu0 0.0
    %804 = vmatpush1.msra.mxu0 0.0
    %805 = vmatprep.subr.mxu0 0.0
    %806 = vmatpush1.msra.mxu0 0.0
    %807 = vmatprep.subr.mxu0 0.0
    %808 = vmatpush1.msra.mxu0 0.0
    %809 = vmatprep.subr.mxu0 0.0
    %810 = vmatpush1.msra.mxu0 0.0
    %811 = vmatprep.subr.mxu0 0.0
    %812 = vmatpush1.msra.mxu0 0.0
    %813 = vmatprep.subr.mxu0 0.0
    %814 = vmatpush1.msra.mxu0 0.0
    %815 = vmatprep.mubr.f32.mxu0 0.0
    %816 = vmatmul.mubr.f32.gmra.mrb[0].mxu0 %v749
    %v817 = vpop.f32.mrb[0].mxu0
    %v818 = vadd.f32 0.0, %v817
    %v819 = vpop.f32.mrb[0].mxu0
    %820 = vdwg.mxu0
    %821 = vmatprep.subr.mxu0 0.0
    %822 = vmatpush1.msra.mxu0 %v263
    %823 = vmatprep.subr.mxu0 0.0
    %824 = vmatpush1.msra.mxu0 %v264
    %825 = vmatprep.subr.mxu0 0.0
    %826 = vmatpush1.msra.mxu0 %v265
    %827 = vmatprep.subr.mxu0 0.0
    %828 = vmatpush1.msra.mxu0 %v266
    %829 = vmatprep.subr.mxu0 0.0
    %830 = vmatpush1.msra.mxu0 0.0
    %831 = vmatprep.subr.mxu0 0.0
    %832 = vmatpush1.msra.mxu0 0.0
    %833 = vmatprep.subr.mxu0 0.0
    %834 = vmatpush1.msra.mxu0 0.0
    %835 = vmatprep.subr.mxu0 0.0
    %836 = vmatpush1.msra.mxu0 0.0
    %837 = vmatprep.subr.mxu0 0.0
    %838 = vmatpush1.msra.mxu0 0.0
    %839 = vmatprep.subr.mxu0 0.0
    %840 = vmatpush1.msra.mxu0 0.0
    %841 = vmatprep.subr.mxu0 0.0
    %842 = vmatpush1.msra.mxu0 0.0
    %843 = vmatprep.subr.mxu0 0.0
    %844 = vmatpush1.msra.mxu0 0.0
    %845 = vmatprep.subr.mxu0 0.0
    %846 = vmatpush1.msra.mxu0 0.0
    %847 = vmatprep.subr.mxu0 0.0
    %848 = vmatpush1.msra.mxu0 0.0
    %849 = vmatprep.subr.mxu0 0.0
    %850 = vmatpush1.msra.mxu0 0.0
    %851 = vmatprep.subr.mxu0 0.0
    %852 = vmatpush1.msra.mxu0 0.0
    %853 = vmatprep.subr.mxu0 0.0
    %854 = vmatpush1.msra.mxu0 0.0
    %855 = vmatprep.subr.mxu0 0.0
    %856 = vmatpush1.msra.mxu0 0.0
    %857 = vmatprep.subr.mxu0 0.0
    %858 = vmatpush1.msra.mxu0 0.0
    %859 = vmatprep.subr.mxu0 0.0
    %860 = vmatpush1.msra.mxu0 0.0
    %861 = vmatprep.subr.mxu0 0.0
    %862 = vmatpush1.msra.mxu0 0.0
    %863 = vmatprep.subr.mxu0 0.0
    %864 = vmatpush1.msra.mxu0 0.0
    %865 = vmatprep.subr.mxu0 0.0
    %866 = vmatpush1.msra.mxu0 0.0
    %867 = vmatprep.subr.mxu0 0.0
    %868 = vmatpush1.msra.mxu0 0.0
    %869 = vmatprep.subr.mxu0 0.0
    %870 = vmatpush1.msra.mxu0 0.0
    %871 = vmatprep.subr.mxu0 0.0
    %872 = vmatpush1.msra.mxu0 0.0
    %873 = vmatprep.subr.mxu0 0.0
    %874 = vmatpush1.msra.mxu0 0.0
    %875 = vmatprep.subr.mxu0 0.0
    %876 = vmatpush1.msra.mxu0 0.0
    %877 = vmatprep.subr.mxu0 0.0
    %878 = vmatpush1.msra.mxu0 0.0
    %879 = vmatprep.subr.mxu0 0.0
    %880 = vmatpush1.msra.mxu0 0.0
    %881 = vmatprep.subr.mxu0 0.0
    %882 = vmatpush1.msra.mxu0 0.0
    %883 = vmatprep.subr.mxu0 0.0
    %884 = vmatpush1.msra.mxu0 0.0
    %885 = vmatprep.mubr.f32.mxu0 0.0
    %886 = vmatmul.mubr.f32.gmra.mrb[0].mxu0 %v648
    %v887 = vpop.f32.mrb[0].mxu0
    %v888 = vadd.f32 %v818, %v887
    %v889 = vpop.f32.mrb[0].mxu0
    %890 = vdwg.mxu0
    %v891 = vadd.f32 %v888, %v273
    %v892 = vmul.f32 %v891, %v252
    %v893 = vtanh.pop %v892
    %v894 = vmul.f32 %v893, 0.5
    %v895 = vadd.f32 %v894, 0.5
    %v896 = vsel %vm251, %v893, %v895
    %v897 = vmul.f32 %v896, %v631
    %899 = vrot.lane.b32.xlu0 %v896, 64
    %v900 = vpop.permute.xlu0 %899
    %v902 = vmul.f32 %v896, %v900
    %904 = vrot.lane.b32.xlu0 %v902, 32
    %v905 = vpop.permute.xlu0 %904
    %v907 = vadd.f32 %v897, %v905
    %v908 = vtanh.pop %v907
    %910 = vrot.lane.b32.xlu0 %v908, 64
    %v911 = vpop.permute.xlu0 %910
    %v913 = vmul.f32 %v896, %v911
    %915 = vrot.lane.b32.xlu0 %v913, 32
    %v916 = vpop.permute.xlu0 %915
    %918 = vst.msk [vmem:[#allocation2 + $0x2] sm:$0x3] %vm642, %v916
    %v920 = vrot.slane %v748, 4
    %921 = vrot.lane.b32.xlu0 %v920, 32
    %v922 = vpop.permute.xlu0 %921
    %v923 = vsel %vm165, %v922, 0
    %925 = vmatprep.subr.mxu0 0.0
    %926 = vmatpush1.msra.mxu0 %v253
    %927 = vmatprep.subr.mxu0 0.0
    %928 = vmatpush1.msra.mxu0 %v254
    %929 = vmatprep.subr.mxu0 0.0
    %930 = vmatpush1.msra.mxu0 %v255
    %931 = vmatprep.subr.mxu0 0.0
    %932 = vmatpush1.msra.mxu0 %v256
    %933 = vmatprep.subr.mxu0 0.0
    %934 = vmatpush1.msra.mxu0 0.0
    %935 = vmatprep.subr.mxu0 0.0
    %936 = vmatpush1.msra.mxu0 0.0
    %937 = vmatprep.subr.mxu0 0.0
    %938 = vmatpush1.msra.mxu0 0.0
    %939 = vmatprep.subr.mxu0 0.0
    %940 = vmatpush1.msra.mxu0 0.0
    %941 = vmatprep.subr.mxu0 0.0
    %942 = vmatpush1.msra.mxu0 0.0
    %943 = vmatprep.subr.mxu0 0.0
    %944 = vmatpush1.msra.mxu0 0.0
    %945 = vmatprep.subr.mxu0 0.0
    %946 = vmatpush1.msra.mxu0 0.0
    %947 = vmatprep.subr.mxu0 0.0
    %948 = vmatpush1.msra.mxu0 0.0
    %949 = vmatprep.subr.mxu0 0.0
    %950 = vmatpush1.msra.mxu0 0.0
    %951 = vmatprep.subr.mxu0 0.0
    %952 = vmatpush1.msra.mxu0 0.0
    %953 = vmatprep.subr.mxu0 0.0
    %954 = vmatpush1.msra.mxu0 0.0
    %955 = vmatprep.subr.mxu0 0.0
    %956 = vmatpush1.msra.mxu0 0.0
    %957 = vmatprep.subr.mxu0 0.0
    %958 = vmatpush1.msra.mxu0 0.0
    %959 = vmatprep.subr.mxu0 0.0
    %960 = vmatpush1.msra.mxu0 0.0
    %961 = vmatprep.subr.mxu0 0.0
    %962 = vmatpush1.msra.mxu0 0.0
    %963 = vmatprep.subr.mxu0 0.0
    %964 = vmatpush1.msra.mxu0 0.0
    %965 = vmatprep.subr.mxu0 0.0
    %966 = vmatpush1.msra.mxu0 0.0
    %967 = vmatprep.subr.mxu0 0.0
    %968 = vmatpush1.msra.mxu0 0.0
    %969 = vmatprep.subr.mxu0 0.0
    %970 = vmatpush1.msra.mxu0 0.0
    %971 = vmatprep.subr.mxu0 0.0
    %972 = vmatpush1.msra.mxu0 0.0
    %973 = vmatprep.subr.mxu0 0.0
    %974 = vmatpush1.msra.mxu0 0.0
    %975 = vmatprep.subr.mxu0 0.0
    %976 = vmatpush1.msra.mxu0 0.0
    %977 = vmatprep.subr.mxu0 0.0
    %978 = vmatpush1.msra.mxu0 0.0
    %979 = vmatprep.subr.mxu0 0.0
    %980 = vmatpush1.msra.mxu0 0.0
    %981 = vmatprep.subr.mxu0 0.0
    %982 = vmatpush1.msra.mxu0 0.0
    %983 = vmatprep.subr.mxu0 0.0
    %984 = vmatpush1.msra.mxu0 0.0
    %985 = vmatprep.subr.mxu0 0.0
    %986 = vmatpush1.msra.mxu0 0.0
    %987 = vmatprep.subr.mxu0 0.0
    %988 = vmatpush1.msra.mxu0 0.0
    %989 = vmatprep.mubr.f32.mxu0 0.0
    %990 = vmatmul.mubr.f32.gmra.mrb[0].mxu0 %v923
    %v991 = vpop.f32.mrb[0].mxu0
    %v992 = vadd.f32 0.0, %v991
    %v993 = vpop.f32.mrb[0].mxu0
    %994 = vdwg.mxu0
    %v996 = vrot.slane %v992, 2
    %v998 = vadd.f32 %v239, %v996
    %v999 = vmul.f32 %v998, %v252
    %v1000 = vtanh.pop %v999
    %v1001 = vmul.f32 %v1000, 0.5
    %v1002 = vadd.f32 %v1001, 0.5
    %v1003 = vsel %vm251, %v1000, %v1002
    %v1005 = vrot.slane %v742, 6
    %v1007 = vmul.f32 %v1003, %v1005
    %1009 = vrot.lane.b32.xlu0 %v1003, 64
    %v1010 = vpop.permute.xlu0 %1009
    %v1012 = vmul.f32 %v1003, %v1010
    %1014 = vrot.lane.b32.xlu0 %v1012, 32
    %v1015 = vpop.permute.xlu0 %1014
    %v1017 = vadd.f32 %v1007, %v1015
    %v1018 = vtanh.pop %v1017
    %1020 = vrot.lane.b32.xlu0 %v1018, 64
    %v1021 = vpop.permute.xlu0 %1020
    %v1023 = vmul.f32 %v1003, %v1021
    %v1024 = vsel %vm165, %v916, 0
    %1026 = vmatprep.subr.mxu0 0.0
    %1027 = vmatpush1.msra.mxu0 %v258
    %1028 = vmatprep.subr.mxu0 0.0
    %1029 = vmatpush1.msra.mxu0 %v259
    %1030 = vmatprep.subr.mxu0 0.0
    %1031 = vmatpush1.msra.mxu0 %v260
    %1032 = vmatprep.subr.mxu0 0.0
    %1033 = vmatpush1.msra.mxu0 %v261
    %1034 = vmatprep.subr.mxu0 0.0
    %1035 = vmatpush1.msra.mxu0 0.0
    %1036 = vmatprep.subr.mxu0 0.0
    %1037 = vmatpush1.msra.mxu0 0.0
    %1038 = vmatprep.subr.mxu0 0.0
    %1039 = vmatpush1.msra.mxu0 0.0
    %1040 = vmatprep.subr.mxu0 0.0
    %1041 = vmatpush1.msra.mxu0 0.0
    %1042 = vmatprep.subr.mxu0 0.0
    %1043 = vmatpush1.msra.mxu0 0.0
    %1044 = vmatprep.subr.mxu0 0.0
    %1045 = vmatpush1.msra.mxu0 0.0
    %1046 = vmatprep.subr.mxu0 0.0
    %1047 = vmatpush1.msra.mxu0 0.0
    %1048 = vmatprep.subr.mxu0 0.0
    %1049 = vmatpush1.msra.mxu0 0.0
    %1050 = vmatprep.subr.mxu0 0.0
    %1051 = vmatpush1.msra.mxu0 0.0
    %1052 = vmatprep.subr.mxu0 0.0
    %1053 = vmatpush1.msra.mxu0 0.0
    %1054 = vmatprep.subr.mxu0 0.0
    %1055 = vmatpush1.msra.mxu0 0.0
    %1056 = vmatprep.subr.mxu0 0.0
    %1057 = vmatpush1.msra.mxu0 0.0
    %1058 = vmatprep.subr.mxu0 0.0
    %1059 = vmatpush1.msra.mxu0 0.0
    %1060 = vmatprep.subr.mxu0 0.0
    %1061 = vmatpush1.msra.mxu0 0.0
    %1062 = vmatprep.subr.mxu0 0.0
    %1063 = vmatpush1.msra.mxu0 0.0
    %1064 = vmatprep.subr.mxu0 0.0
    %1065 = vmatpush1.msra.mxu0 0.0
    %1066 = vmatprep.subr.mxu0 0.0
    %1067 = vmatpush1.msra.mxu0 0.0
    %1068 = vmatprep.subr.mxu0 0.0
    %1069 = vmatpush1.msra.mxu0 0.0
    %1070 = vmatprep.subr.mxu0 0.0
    %1071 = vmatpush1.msra.mxu0 0.0
    %1072 = vmatprep.subr.mxu0 0.0
    %1073 = vmatpush1.msra.mxu0 0.0
    %1074 = vmatprep.subr.mxu0 0.0
    %1075 = vmatpush1.msra.mxu0 0.0
    %1076 = vmatprep.subr.mxu0 0.0
    %1077 = vmatpush1.msra.mxu0 0.0
    %1078 = vmatprep.subr.mxu0 0.0
    %1079 = vmatpush1.msra.mxu0 0.0
    %1080 = vmatprep.subr.mxu0 0.0
    %1081 = vmatpush1.msra.mxu0 0.0
    %1082 = vmatprep.subr.mxu0 0.0
    %1083 = vmatpush1.msra.mxu0 0.0
    %1084 = vmatprep.subr.mxu0 0.0
    %1085 = vmatpush1.msra.mxu0 0.0
    %1086 = vmatprep.subr.mxu0 0.0
    %1087 = vmatpush1.msra.mxu0 0.0
    %1088 = vmatprep.subr.mxu0 0.0
    %1089 = vmatpush1.msra.mxu0 0.0
    %1090 = vmatprep.mubr.f32.mxu0 0.0
    %1091 = vmatmul.mubr.f32.gmra.mrb[0].mxu0 %v1024
    %v1092 = vpop.f32.mrb[0].mxu0
    %v1093 = vadd.f32 0.0, %v1092
    %v1094 = vpop.f32.mrb[0].mxu0
    %1095 = vdwg.mxu0
    %1096 = vmatprep.subr.mxu0 0.0
    %1097 = vmatpush1.msra.mxu0 %v263
    %1098 = vmatprep.subr.mxu0 0.0
    %1099 = vmatpush1.msra.mxu0 %v264
    %1100 = vmatprep.subr.mxu0 0.0
    %1101 = vmatpush1.msra.mxu0 %v265
    %1102 = vmatprep.subr.mxu0 0.0
    %1103 = vmatpush1.msra.mxu0 %v266
    %1104 = vmatprep.subr.mxu0 0.0
    %1105 = vmatpush1.msra.mxu0 0.0
    %1106 = vmatprep.subr.mxu0 0.0
    %1107 = vmatpush1.msra.mxu0 0.0
    %1108 = vmatprep.subr.mxu0 0.0
    %1109 = vmatpush1.msra.mxu0 0.0
    %1110 = vmatprep.subr.mxu0 0.0
    %1111 = vmatpush1.msra.mxu0 0.0
    %1112 = vmatprep.subr.mxu0 0.0
    %1113 = vmatpush1.msra.mxu0 0.0
    %1114 = vmatprep.subr.mxu0 0.0
    %1115 = vmatpush1.msra.mxu0 0.0
    %1116 = vmatprep.subr.mxu0 0.0
    %1117 = vmatpush1.msra.mxu0 0.0
    %1118 = vmatprep.subr.mxu0 0.0
    %1119 = vmatpush1.msra.mxu0 0.0
    %1120 = vmatprep.subr.mxu0 0.0
    %1121 = vmatpush1.msra.mxu0 0.0
    %1122 = vmatprep.subr.mxu0 0.0
    %1123 = vmatpush1.msra.mxu0 0.0
    %1124 = vmatprep.subr.mxu0 0.0
    %1125 = vmatpush1.msra.mxu0 0.0
    %1126 = vmatprep.subr.mxu0 0.0
    %1127 = vmatpush1.msra.mxu0 0.0
    %1128 = vmatprep.subr.mxu0 0.0
    %1129 = vmatpush1.msra.mxu0 0.0
    %1130 = vmatprep.subr.mxu0 0.0
    %1131 = vmatpush1.msra.mxu0 0.0
    %1132 = vmatprep.subr.mxu0 0.0
    %1133 = vmatpush1.msra.mxu0 0.0
    %1134 = vmatprep.subr.mxu0 0.0
    %1135 = vmatpush1.msra.mxu0 0.0
    %1136 = vmatprep.subr.mxu0 0.0
    %1137 = vmatpush1.msra.mxu0 0.0
    %1138 = vmatprep.subr.mxu0 0.0
    %1139 = vmatpush1.msra.mxu0 0.0
    %1140 = vmatprep.subr.mxu0 0.0
    %1141 = vmatpush1.msra.mxu0 0.0
    %1142 = vmatprep.subr.mxu0 0.0
    %1143 = vmatpush1.msra.mxu0 0.0
    %1144 = vmatprep.subr.mxu0 0.0
    %1145 = vmatpush1.msra.mxu0 0.0
    %1146 = vmatprep.subr.mxu0 0.0
    %1147 = vmatpush1.msra.mxu0 0.0
    %1148 = vmatprep.subr.mxu0 0.0
    %1149 = vmatpush1.msra.mxu0 0.0
    %1150 = vmatprep.subr.mxu0 0.0
    %1151 = vmatpush1.msra.mxu0 0.0
    %1152 = vmatprep.subr.mxu0 0.0
    %1153 = vmatpush1.msra.mxu0 0.0
    %1154 = vmatprep.subr.mxu0 0.0
    %1155 = vmatpush1.msra.mxu0 0.0
    %1156 = vmatprep.subr.mxu0 0.0
    %1157 = vmatpush1.msra.mxu0 0.0
    %1158 = vmatprep.subr.mxu0 0.0
    %1159 = vmatpush1.msra.mxu0 0.0
    %1160 = vmatprep.mubr.f32.mxu0 0.0
    %1161 = vmatmul.mubr.f32.gmra.mrb[0].mxu0 %v923
    %v1162 = vpop.f32.mrb[0].mxu0
    %v1163 = vadd.f32 %v1093, %v1162
    %v1164 = vpop.f32.mrb[0].mxu0
    %1165 = vdwg.mxu0
    %v1166 = vadd.f32 %v1163, %v273
    %v1167 = vmul.f32 %v1166, %v252
    %v1168 = vtanh.pop %v1167
    %v1169 = vmul.f32 %v1168, 0.5
    %v1170 = vadd.f32 %v1169, 0.5
    %v1171 = vsel %vm251, %v1168, %v1170
    %v1172 = vmul.f32 %v1171, %v907
    %1174 = vrot.lane.b32.xlu0 %v1171, 64
    %v1175 = vpop.permute.xlu0 %1174
    %v1177 = vmul.f32 %v1171, %v1175
    %1179 = vrot.lane.b32.xlu0 %v1177, 32
    %v1180 = vpop.permute.xlu0 %1179
    %v1182 = vadd.f32 %v1172, %v1180
    %v1183 = vtanh.pop %v1182
    %1185 = vrot.lane.b32.xlu0 %v1183, 64
    %v1186 = vpop.permute.xlu0 %1185
    %v1188 = vmul.f32 %v1171, %v1186
    %1190 = vrot.lane.b32.xlu0 %v1188, 32
    %v1191 = vpop.permute.xlu0 %1190
    %1193 = vst.msk [vmem:[#allocation2 + $0x4] sm:$0x3] %vm642, %v1191
    %v1195 = vrot.slane %v1023, 6
    %1196 = vrot.lane.b32.xlu0 %v1195, 32
    %v1197 = vpop.permute.xlu0 %1196
    %v1198 = vsel %vm165, %v1197, 0
    %1200 = vmatprep.subr.mxu0 0.0
    %1201 = vmatpush1.msra.mxu0 %v253
    %1202 = vmatprep.subr.mxu0 0.0
    %1203 = vmatpush1.msra.mxu0 %v254
    %1204 = vmatprep.subr.mxu0 0.0
    %1205 = vmatpush1.msra.mxu0 %v255
    %1206 = vmatprep.subr.mxu0 0.0
    %1207 = vmatpush1.msra.mxu0 %v256
    %1208 = vmatprep.subr.mxu0 0.0
    %1209 = vmatpush1.msra.mxu0 0.0
    %1210 = vmatprep.subr.mxu0 0.0
    %1211 = vmatpush1.msra.mxu0 0.0
    %1212 = vmatprep.subr.mxu0 0.0
    %1213 = vmatpush1.msra.mxu0 0.0
    %1214 = vmatprep.subr.mxu0 0.0
    %1215 = vmatpush1.msra.mxu0 0.0
    %1216 = vmatprep.subr.mxu0 0.0
    %1217 = vmatpush1.msra.mxu0 0.0
    %1218 = vmatprep.subr.mxu0 0.0
    %1219 = vmatpush1.msra.mxu0 0.0
    %1220 = vmatprep.subr.mxu0 0.0
    %1221 = vmatpush1.msra.mxu0 0.0
    %1222 = vmatprep.subr.mxu0 0.0
    %1223 = vmatpush1.msra.mxu0 0.0
    %1224 = vmatprep.subr.mxu0 0.0
    %1225 = vmatpush1.msra.mxu0 0.0
    %1226 = vmatprep.subr.mxu0 0.0
    %1227 = vmatpush1.msra.mxu0 0.0
    %1228 = vmatprep.subr.mxu0 0.0
    %1229 = vmatpush1.msra.mxu0 0.0
    %1230 = vmatprep.subr.mxu0 0.0
    %1231 = vmatpush1.msra.mxu0 0.0
    %1232 = vmatprep.subr.mxu0 0.0
    %1233 = vmatpush1.msra.mxu0 0.0
    %1234 = vmatprep.subr.mxu0 0.0
    %1235 = vmatpush1.msra.mxu0 0.0
    %1236 = vmatprep.subr.mxu0 0.0
    %1237 = vmatpush1.msra.mxu0 0.0
    %1238 = vmatprep.subr.mxu0 0.0
    %1239 = vmatpush1.msra.mxu0 0.0
    %1240 = vmatprep.subr.mxu0 0.0
    %1241 = vmatpush1.msra.mxu0 0.0
    %1242 = vmatprep.subr.mxu0 0.0
    %1243 = vmatpush1.msra.mxu0 0.0
    %1244 = vmatprep.subr.mxu0 0.0
    %1245 = vmatpush1.msra.mxu0 0.0
    %1246 = vmatprep.subr.mxu0 0.0
    %1247 = vmatpush1.msra.mxu0 0.0
    %1248 = vmatprep.subr.mxu0 0.0
    %1249 = vmatpush1.msra.mxu0 0.0
    %1250 = vmatprep.subr.mxu0 0.0
    %1251 = vmatpush1.msra.mxu0 0.0
    %1252 = vmatprep.subr.mxu0 0.0
    %1253 = vmatpush1.msra.mxu0 0.0
    %1254 = vmatprep.subr.mxu0 0.0
    %1255 = vmatpush1.msra.mxu0 0.0
    %1256 = vmatprep.subr.mxu0 0.0
    %1257 = vmatpush1.msra.mxu0 0.0
    %1258 = vmatprep.subr.mxu0 0.0
    %1259 = vmatpush1.msra.mxu0 0.0
    %1260 = vmatprep.subr.mxu0 0.0
    %1261 = vmatpush1.msra.mxu0 0.0
    %1262 = vmatprep.subr.mxu0 0.0
    %1263 = vmatpush1.msra.mxu0 0.0
    %1264 = vmatprep.mubr.f32.mxu0 0.0
    %1265 = vmatmul.mubr.f32.gmra.mrb[0].mxu0 %v1198
    %v1266 = vpop.f32.mrb[0].mxu0
    %v1267 = vadd.f32 0.0, %v1266
    %v1268 = vpop.f32.mrb[0].mxu0
    %1269 = vdwg.mxu0
    %v1270 = vadd.f32 %v244, %v1267
    %v1271 = vmul.f32 %v1270, %v252
    %v1272 = vtanh.pop %v1271
    %v1273 = vmul.f32 %v1272, 0.5
    %v1274 = vadd.f32 %v1273, 0.5
    %v1275 = vsel %vm251, %v1272, %v1274
    %v1277 = vrot.slane %v1017, 6
    %v1279 = vmul.f32 %v1275, %v1277
    %1281 = vrot.lane.b32.xlu0 %v1275, 64
    %v1282 = vpop.permute.xlu0 %1281
    %v1284 = vmul.f32 %v1275, %v1282
    %1286 = vrot.lane.b32.xlu0 %v1284, 32
    %v1287 = vpop.permute.xlu0 %1286
    %v1289 = vadd.f32 %v1279, %v1287
    %v1290 = vtanh.pop %v1289
    %1292 = vrot.lane.b32.xlu0 %v1290, 64
    %v1293 = vpop.permute.xlu0 %1292
    %v1295 = vmul.f32 %v1275, %v1293
    %v1296 = vsel %vm165, %v1191, 0
    %1298 = vmatprep.subr.mxu0 0.0
    %1299 = vmatpush1.msra.mxu0 %v258
    %1300 = vmatprep.subr.mxu0 0.0
    %1301 = vmatpush1.msra.mxu0 %v259
    %1302 = vmatprep.subr.mxu0 0.0
    %1303 = vmatpush1.msra.mxu0 %v260
    %1304 = vmatprep.subr.mxu0 0.0
    %1305 = vmatpush1.msra.mxu0 %v261
    %1306 = vmatprep.subr.mxu0 0.0
    %1307 = vmatpush1.msra.mxu0 0.0
    %1308 = vmatprep.subr.mxu0 0.0
    %1309 = vmatpush1.msra.mxu0 0.0
    %1310 = vmatprep.subr.mxu0 0.0
    %1311 = vmatpush1.msra.mxu0 0.0
    %1312 = vmatprep.subr.mxu0 0.0
    %1313 = vmatpush1.msra.mxu0 0.0
    %1314 = vmatprep.subr.mxu0 0.0
    %1315 = vmatpush1.msra.mxu0 0.0
    %1316 = vmatprep.subr.mxu0 0.0
    %1317 = vmatpush1.msra.mxu0 0.0
    %1318 = vmatprep.subr.mxu0 0.0
    %1319 = vmatpush1.msra.mxu0 0.0
    %1320 = vmatprep.subr.mxu0 0.0
    %1321 = vmatpush1.msra.mxu0 0.0
    %1322 = vmatprep.subr.mxu0 0.0
    %1323 = vmatpush1.msra.mxu0 0.0
    %1324 = vmatprep.subr.mxu0 0.0
    %1325 = vmatpush1.msra.mxu0 0.0
    %1326 = vmatprep.subr.mxu0 0.0
    %1327 = vmatpush1.msra.mxu0 0.0
    %1328 = vmatprep.subr.mxu0 0.0
    %1329 = vmatpush1.msra.mxu0 0.0
    %1330 = vmatprep.subr.mxu0 0.0
    %1331 = vmatpush1.msra.mxu0 0.0
    %1332 = vmatprep.subr.mxu0 0.0
    %1333 = vmatpush1.msra.mxu0 0.0
    %1334 = vmatprep.subr.mxu0 0.0
    %1335 = vmatpush1.msra.mxu0 0.0
    %1336 = vmatprep.subr.mxu0 0.0
    %1337 = vmatpush1.msra.mxu0 0.0
    %1338 = vmatprep.subr.mxu0 0.0
    %1339 = vmatpush1.msra.mxu0 0.0
    %1340 = vmatprep.subr.mxu0 0.0
    %1341 = vmatpush1.msra.mxu0 0.0
    %1342 = vmatprep.subr.mxu0 0.0
    %1343 = vmatpush1.msra.mxu0 0.0
    %1344 = vmatprep.subr.mxu0 0.0
    %1345 = vmatpush1.msra.mxu0 0.0
    %1346 = vmatprep.subr.mxu0 0.0
    %1347 = vmatpush1.msra.mxu0 0.0
    %1348 = vmatprep.subr.mxu0 0.0
    %1349 = vmatpush1.msra.mxu0 0.0
    %1350 = vmatprep.subr.mxu0 0.0
    %1351 = vmatpush1.msra.mxu0 0.0
    %1352 = vmatprep.subr.mxu0 0.0
    %1353 = vmatpush1.msra.mxu0 0.0
    %1354 = vmatprep.subr.mxu0 0.0
    %1355 = vmatpush1.msra.mxu0 0.0
    %1356 = vmatprep.subr.mxu0 0.0
    %1357 = vmatpush1.msra.mxu0 0.0
    %1358 = vmatprep.subr.mxu0 0.0
    %1359 = vmatpush1.msra.mxu0 0.0
    %1360 = vmatprep.subr.mxu0 0.0
    %1361 = vmatpush1.msra.mxu0 0.0
    %1362 = vmatprep.mubr.f32.mxu0 0.0
    %1363 = vmatmul.mubr.f32.gmra.mrb[0].mxu0 %v1296
    %v1364 = vpop.f32.mrb[0].mxu0
    %v1365 = vadd.f32 0.0, %v1364
    %v1366 = vpop.f32.mrb[0].mxu0
    %1367 = vdwg.mxu0
    %1368 = vmatprep.subr.mxu0 0.0
    %1369 = vmatpush1.msra.mxu0 %v263
    %1370 = vmatprep.subr.mxu0 0.0
    %1371 = vmatpush1.msra.mxu0 %v264
    %1372 = vmatprep.subr.mxu0 0.0
    %1373 = vmatpush1.msra.mxu0 %v265
    %1374 = vmatprep.subr.mxu0 0.0
    %1375 = vmatpush1.msra.mxu0 %v266
    %1376 = vmatprep.subr.mxu0 0.0
    %1377 = vmatpush1.msra.mxu0 0.0
    %1378 = vmatprep.subr.mxu0 0.0
    %1379 = vmatpush1.msra.mxu0 0.0
    %1380 = vmatprep.subr.mxu0 0.0
    %1381 = vmatpush1.msra.mxu0 0.0
    %1382 = vmatprep.subr.mxu0 0.0
    %1383 = vmatpush1.msra.mxu0 0.0
    %1384 = vmatprep.subr.mxu0 0.0
    %1385 = vmatpush1.msra.mxu0 0.0
    %1386 = vmatprep.subr.mxu0 0.0
    %1387 = vmatpush1.msra.mxu0 0.0
    %1388 = vmatprep.subr.mxu0 0.0
    %1389 = vmatpush1.msra.mxu0 0.0
    %1390 = vmatprep.subr.mxu0 0.0
    %1391 = vmatpush1.msra.mxu0 0.0
    %1392 = vmatprep.subr.mxu0 0.0
    %1393 = vmatpush1.msra.mxu0 0.0
    %1394 = vmatprep.subr.mxu0 0.0
    %1395 = vmatpush1.msra.mxu0 0.0
    %1396 = vmatprep.subr.mxu0 0.0
    %1397 = vmatpush1.msra.mxu0 0.0
    %1398 = vmatprep.subr.mxu0 0.0
    %1399 = vmatpush1.msra.mxu0 0.0
    %1400 = vmatprep.subr.mxu0 0.0
    %1401 = vmatpush1.msra.mxu0 0.0
    %1402 = vmatprep.subr.mxu0 0.0
    %1403 = vmatpush1.msra.mxu0 0.0
    %1404 = vmatprep.subr.mxu0 0.0
    %1405 = vmatpush1.msra.mxu0 0.0
    %1406 = vmatprep.subr.mxu0 0.0
    %1407 = vmatpush1.msra.mxu0 0.0
    %1408 = vmatprep.subr.mxu0 0.0
    %1409 = vmatpush1.msra.mxu0 0.0
    %1410 = vmatprep.subr.mxu0 0.0
    %1411 = vmatpush1.msra.mxu0 0.0
    %1412 = vmatprep.subr.mxu0 0.0
    %1413 = vmatpush1.msra.mxu0 0.0
    %1414 = vmatprep.subr.mxu0 0.0
    %1415 = vmatpush1.msra.mxu0 0.0
    %1416 = vmatprep.subr.mxu0 0.0
    %1417 = vmatpush1.msra.mxu0 0.0
    %1418 = vmatprep.subr.mxu0 0.0
    %1419 = vmatpush1.msra.mxu0 0.0
    %1420 = vmatprep.subr.mxu0 0.0
    %1421 = vmatpush1.msra.mxu0 0.0
    %1422 = vmatprep.subr.mxu0 0.0
    %1423 = vmatpush1.msra.mxu0 0.0
    %1424 = vmatprep.subr.mxu0 0.0
    %1425 = vmatpush1.msra.mxu0 0.0
    %1426 = vmatprep.subr.mxu0 0.0
    %1427 = vmatpush1.msra.mxu0 0.0
    %1428 = vmatprep.subr.mxu0 0.0
    %1429 = vmatpush1.msra.mxu0 0.0
    %1430 = vmatprep.subr.mxu0 0.0
    %1431 = vmatpush1.msra.mxu0 0.0
    %1432 = vmatprep.mubr.f32.mxu0 0.0
    %1433 = vmatmul.mubr.f32.gmra.mrb[0].mxu0 %v1198
    %v1434 = vpop.f32.mrb[0].mxu0
    %v1435 = vadd.f32 %v1365, %v1434
    %v1436 = vpop.f32.mrb[0].mxu0
    %1437 = vdwg.mxu0
    %v1438 = vadd.f32 %v1435, %v273
    %v1439 = vmul.f32 %v1438, %v252
    %v1440 = vtanh.pop %v1439
    %v1441 = vmul.f32 %v1440, 0.5
    %v1442 = vadd.f32 %v1441, 0.5
    %v1443 = vsel %vm251, %v1440, %v1442
    %v1444 = vmul.f32 %v1443, %v1182
    %1446 = vrot.lane.b32.xlu0 %v1443, 64
    %v1447 = vpop.permute.xlu0 %1446
    %v1449 = vmul.f32 %v1443, %v1447
    %1451 = vrot.lane.b32.xlu0 %v1449, 32
    %v1452 = vpop.permute.xlu0 %1451
    %v1454 = vadd.f32 %v1444, %v1452
    %v1455 = vtanh.pop %v1454
    %1457 = vrot.lane.b32.xlu0 %v1455, 64
    %v1458 = vpop.permute.xlu0 %1457
    %v1460 = vmul.f32 %v1443, %v1458
    %1462 = vrot.lane.b32.xlu0 %v1460, 32
    %v1463 = vpop.permute.xlu0 %1462
    %1465 = vst.msk [vmem:[#allocation2 + $0x6] sm:$0x3] %vm642, %v1463
    %1467 = vrot.lane.b32.xlu0 %v1295, 32
    %v1468 = vpop.permute.xlu0 %1467
    %v1469 = vsel %vm165, %v1468, 0
    %1471 = vmatprep.subr.mxu0 0.0
    %1472 = vmatpush1.msra.mxu0 %v253
    %1473 = vmatprep.subr.mxu0 0.0
    %1474 = vmatpush1.msra.mxu0 %v254
    %1475 = vmatprep.subr.mxu0 0.0
    %1476 = vmatpush1.msra.mxu0 %v255
    %1477 = vmatprep.subr.mxu0 0.0
    %1478 = vmatpush1.msra.mxu0 %v256
    %1479 = vmatprep.subr.mxu0 0.0
    %1480 = vmatpush1.msra.mxu0 0.0
    %1481 = vmatprep.subr.mxu0 0.0
    %1482 = vmatpush1.msra.mxu0 0.0
    %1483 = vmatprep.subr.mxu0 0.0
    %1484 = vmatpush1.msra.mxu0 0.0
    %1485 = vmatprep.subr.mxu0 0.0
    %1486 = vmatpush1.msra.mxu0 0.0
    %1487 = vmatprep.subr.mxu0 0.0
    %1488 = vmatpush1.msra.mxu0 0.0
    %1489 = vmatprep.subr.mxu0 0.0
    %1490 = vmatpush1.msra.mxu0 0.0
    %1491 = vmatprep.subr.mxu0 0.0
    %1492 = vmatpush1.msra.mxu0 0.0
    %1493 = vmatprep.subr.mxu0 0.0
    %1494 = vmatpush1.msra.mxu0 0.0
    %1495 = vmatprep.subr.mxu0 0.0
    %1496 = vmatpush1.msra.mxu0 0.0
    %1497 = vmatprep.subr.mxu0 0.0
    %1498 = vmatpush1.msra.mxu0 0.0
    %1499 = vmatprep.subr.mxu0 0.0
    %1500 = vmatpush1.msra.mxu0 0.0
    %1501 = vmatprep.subr.mxu0 0.0
    %1502 = vmatpush1.msra.mxu0 0.0
    %1503 = vmatprep.subr.mxu0 0.0
    %1504 = vmatpush1.msra.mxu0 0.0
    %1505 = vmatprep.subr.mxu0 0.0
    %1506 = vmatpush1.msra.mxu0 0.0
    %1507 = vmatprep.subr.mxu0 0.0
    %1508 = vmatpush1.msra.mxu0 0.0
    %1509 = vmatprep.subr.mxu0 0.0
    %1510 = vmatpush1.msra.mxu0 0.0
    %1511 = vmatprep.subr.mxu0 0.0
    %1512 = vmatpush1.msra.mxu0 0.0
    %1513 = vmatprep.subr.mxu0 0.0
    %1514 = vmatpush1.msra.mxu0 0.0
    %1515 = vmatprep.subr.mxu0 0.0
    %1516 = vmatpush1.msra.mxu0 0.0
    %1517 = vmatprep.subr.mxu0 0.0
    %1518 = vmatpush1.msra.mxu0 0.0
    %1519 = vmatprep.subr.mxu0 0.0
    %1520 = vmatpush1.msra.mxu0 0.0
    %1521 = vmatprep.subr.mxu0 0.0
    %1522 = vmatpush1.msra.mxu0 0.0
    %1523 = vmatprep.subr.mxu0 0.0
    %1524 = vmatpush1.msra.mxu0 0.0
    %1525 = vmatprep.subr.mxu0 0.0
    %1526 = vmatpush1.msra.mxu0 0.0
    %1527 = vmatprep.subr.mxu0 0.0
    %1528 = vmatpush1.msra.mxu0 0.0
    %1529 = vmatprep.subr.mxu0 0.0
    %1530 = vmatpush1.msra.mxu0 0.0
    %1531 = vmatprep.subr.mxu0 0.0
    %1532 = vmatpush1.msra.mxu0 0.0
    %1533 = vmatprep.subr.mxu0 0.0
    %1534 = vmatpush1.msra.mxu0 0.0
    %1535 = vmatprep.mubr.f32.mxu0 0.0
    %1536 = vmatmul.mubr.f32.gmra.mrb[0].mxu0 %v1469
    %v1537 = vpop.f32.mrb[0].mxu0
    %v1538 = vadd.f32 0.0, %v1537
    %v1539 = vpop.f32.mrb[0].mxu0
    %1540 = vdwg.mxu0
    %v1542 = vrot.slane %v1538, 6
    %v1544 = vadd.f32 %v244, %v1542
    %v1545 = vmul.f32 %v1544, %v252
    %v1546 = vtanh.pop %v1545
    %v1547 = vmul.f32 %v1546, 0.5
    %v1548 = vadd.f32 %v1547, 0.5
    %v1549 = vsel %vm251, %v1546, %v1548
    %v1551 = vrot.slane %v1289, 6
    %v1553 = vmul.f32 %v1549, %v1551
    %1555 = vrot.lane.b32.xlu0 %v1549, 64
    %v1556 = vpop.permute.xlu0 %1555
    %v1558 = vmul.f32 %v1549, %v1556
    %1560 = vrot.lane.b32.xlu0 %v1558, 32
    %v1561 = vpop.permute.xlu0 %1560
    %v1563 = vadd.f32 %v1553, %v1561
    %v1564 = vtanh.pop %v1563
    %1566 = vrot.lane.b32.xlu0 %v1564, 64
    %v1567 = vpop.permute.xlu0 %1566
    %v1569 = vmul.f32 %v1549, %v1567
    %v1570 = vsel %vm165, %v1463, 0
    %1572 = vmatprep.subr.mxu0 0.0
    %1573 = vmatpush1.msra.mxu0 %v258
    %1574 = vmatprep.subr.mxu0 0.0
    %1575 = vmatpush1.msra.mxu0 %v259
    %1576 = vmatprep.subr.mxu0 0.0
    %1577 = vmatpush1.msra.mxu0 %v260
    %1578 = vmatprep.subr.mxu0 0.0
    %1579 = vmatpush1.msra.mxu0 %v261
    %1580 = vmatprep.subr.mxu0 0.0
    %1581 = vmatpush1.msra.mxu0 0.0
    %1582 = vmatprep.subr.mxu0 0.0
    %1583 = vmatpush1.msra.mxu0 0.0
    %1584 = vmatprep.subr.mxu0 0.0
    %1585 = vmatpush1.msra.mxu0 0.0
    %1586 = vmatprep.subr.mxu0 0.0
    %1587 = vmatpush1.msra.mxu0 0.0
    %1588 = vmatprep.subr.mxu0 0.0
    %1589 = vmatpush1.msra.mxu0 0.0
    %1590 = vmatprep.subr.mxu0 0.0
    %1591 = vmatpush1.msra.mxu0 0.0
    %1592 = vmatprep.subr.mxu0 0.0
    %1593 = vmatpush1.msra.mxu0 0.0
    %1594 = vmatprep.subr.mxu0 0.0
    %1595 = vmatpush1.msra.mxu0 0.0
    %1596 = vmatprep.subr.mxu0 0.0
    %1597 = vmatpush1.msra.mxu0 0.0
    %1598 = vmatprep.subr.mxu0 0.0
    %1599 = vmatpush1.msra.mxu0 0.0
    %1600 = vmatprep.subr.mxu0 0.0
    %1601 = vmatpush1.msra.mxu0 0.0
    %1602 = vmatprep.subr.mxu0 0.0
    %1603 = vmatpush1.msra.mxu0 0.0
    %1604 = vmatprep.subr.mxu0 0.0
    %1605 = vmatpush1.msra.mxu0 0.0
    %1606 = vmatprep.subr.mxu0 0.0
    %1607 = vmatpush1.msra.mxu0 0.0
    %1608 = vmatprep.subr.mxu0 0.0
    %1609 = vmatpush1.msra.mxu0 0.0
    %1610 = vmatprep.subr.mxu0 0.0
    %1611 = vmatpush1.msra.mxu0 0.0
    %1612 = vmatprep.subr.mxu0 0.0
    %1613 = vmatpush1.msra.mxu0 0.0
    %1614 = vmatprep.subr.mxu0 0.0
    %1615 = vmatpush1.msra.mxu0 0.0
    %1616 = vmatprep.subr.mxu0 0.0
    %1617 = vmatpush1.msra.mxu0 0.0
    %1618 = vmatprep.subr.mxu0 0.0
    %1619 = vmatpush1.msra.mxu0 0.0
    %1620 = vmatprep.subr.mxu0 0.0
    %1621 = vmatpush1.msra.mxu0 0.0
    %1622 = vmatprep.subr.mxu0 0.0
    %1623 = vmatpush1.msra.mxu0 0.0
    %1624 = vmatprep.subr.mxu0 0.0
    %1625 = vmatpush1.msra.mxu0 0.0
    %1626 = vmatprep.subr.mxu0 0.0
    %1627 = vmatpush1.msra.mxu0 0.0
    %1628 = vmatprep.subr.mxu0 0.0
    %1629 = vmatpush1.msra.mxu0 0.0
    %1630 = vmatprep.subr.mxu0 0.0
    %1631 = vmatpush1.msra.mxu0 0.0
    %1632 = vmatprep.subr.mxu0 0.0
    %1633 = vmatpush1.msra.mxu0 0.0
    %1634 = vmatprep.subr.mxu0 0.0
    %1635 = vmatpush1.msra.mxu0 0.0
    %1636 = vmatprep.mubr.f32.mxu0 0.0
    %1637 = vmatmul.mubr.f32.gmra.mrb[0].mxu0 %v1570
    %v1638 = vpop.f32.mrb[0].mxu0
    %v1639 = vadd.f32 0.0, %v1638
    %v1640 = vpop.f32.mrb[0].mxu0
    %1641 = vdwg.mxu0
    %1642 = vmatprep.subr.mxu0 0.0
    %1643 = vmatpush1.msra.mxu0 %v263
    %1644 = vmatprep.subr.mxu0 0.0
    %1645 = vmatpush1.msra.mxu0 %v264
    %1646 = vmatprep.subr.mxu0 0.0
    %1647 = vmatpush1.msra.mxu0 %v265
    %1648 = vmatprep.subr.mxu0 0.0
    %1649 = vmatpush1.msra.mxu0 %v266
    %1650 = vmatprep.subr.mxu0 0.0
    %1651 = vmatpush1.msra.mxu0 0.0
    %1652 = vmatprep.subr.mxu0 0.0
    %1653 = vmatpush1.msra.mxu0 0.0
    %1654 = vmatprep.subr.mxu0 0.0
    %1655 = vmatpush1.msra.mxu0 0.0
    %1656 = vmatprep.subr.mxu0 0.0
    %1657 = vmatpush1.msra.mxu0 0.0
    %1658 = vmatprep.subr.mxu0 0.0
    %1659 = vmatpush1.msra.mxu0 0.0
    %1660 = vmatprep.subr.mxu0 0.0
    %1661 = vmatpush1.msra.mxu0 0.0
    %1662 = vmatprep.subr.mxu0 0.0
    %1663 = vmatpush1.msra.mxu0 0.0
    %1664 = vmatprep.subr.mxu0 0.0
    %1665 = vmatpush1.msra.mxu0 0.0
    %1666 = vmatprep.subr.mxu0 0.0
    %1667 = vmatpush1.msra.mxu0 0.0
    %1668 = vmatprep.subr.mxu0 0.0
    %1669 = vmatpush1.msra.mxu0 0.0
    %1670 = vmatprep.subr.mxu0 0.0
    %1671 = vmatpush1.msra.mxu0 0.0
    %1672 = vmatprep.subr.mxu0 0.0
    %1673 = vmatpush1.msra.mxu0 0.0
    %1674 = vmatprep.subr.mxu0 0.0
    %1675 = vmatpush1.msra.mxu0 0.0
    %1676 = vmatprep.subr.mxu0 0.0
    %1677 = vmatpush1.msra.mxu0 0.0
    %1678 = vmatprep.subr.mxu0 0.0
    %1679 = vmatpush1.msra.mxu0 0.0
    %1680 = vmatprep.subr.mxu0 0.0
    %1681 = vmatpush1.msra.mxu0 0.0
    %1682 = vmatprep.subr.mxu0 0.0
    %1683 = vmatpush1.msra.mxu0 0.0
    %1684 = vmatprep.subr.mxu0 0.0
    %1685 = vmatpush1.msra.mxu0 0.0
    %1686 = vmatprep.subr.mxu0 0.0
    %1687 = vmatpush1.msra.mxu0 0.0
    %1688 = vmatprep.subr.mxu0 0.0
    %1689 = vmatpush1.msra.mxu0 0.0
    %1690 = vmatprep.subr.mxu0 0.0
    %1691 = vmatpush1.msra.mxu0 0.0
    %1692 = vmatprep.subr.mxu0 0.0
    %1693 = vmatpush1.msra.mxu0 0.0
    %1694 = vmatprep.subr.mxu0 0.0
    %1695 = vmatpush1.msra.mxu0 0.0
    %1696 = vmatprep.subr.mxu0 0.0
    %1697 = vmatpush1.msra.mxu0 0.0
    %1698 = vmatprep.subr.mxu0 0.0
    %1699 = vmatpush1.msra.mxu0 0.0
    %1700 = vmatprep.subr.mxu0 0.0
    %1701 = vmatpush1.msra.mxu0 0.0
    %1702 = vmatprep.subr.mxu0 0.0
    %1703 = vmatpush1.msra.mxu0 0.0
    %1704 = vmatprep.subr.mxu0 0.0
    %1705 = vmatpush1.msra.mxu0 0.0
    %1706 = vmatprep.mubr.f32.mxu0 0.0
    %1707 = vmatmul.mubr.f32.gmra.mrb[0].mxu0 %v1469
    %v1708 = vpop.f32.mrb[0].mxu0
    %v1709 = vadd.f32 %v1639, %v1708
    %v1710 = vpop.f32.mrb[0].mxu0
    %1711 = vdwg.mxu0
    %v1712 = vadd.f32 %v1709, %v273
    %v1713 = vmul.f32 %v1712, %v252
    %v1714 = vtanh.pop %v1713
    %v1715 = vmul.f32 %v1714, 0.5
    %v1716 = vadd.f32 %v1715, 0.5
    %v1717 = vsel %vm251, %v1714, %v1716
    %v1718 = vmul.f32 %v1717, %v1454
    %1720 = vrot.lane.b32.xlu0 %v1717, 64
    %v1721 = vpop.permute.xlu0 %1720
    %v1723 = vmul.f32 %v1717, %v1721
    %1725 = vrot.lane.b32.xlu0 %v1723, 32
    %v1726 = vpop.permute.xlu0 %1725
    %v1728 = vadd.f32 %v1718, %v1726
    %v1729 = vtanh.pop %v1728
    %1731 = vrot.lane.b32.xlu0 %v1729, 64
    %v1732 = vpop.permute.xlu0 %1731
    %v1734 = vmul.f32 %v1717, %v1732
    %1736 = vrot.lane.b32.xlu0 %v1734, 32
    %v1737 = vpop.permute.xlu0 %1736
    %1739 = vst.msk [vmem:[#allocation2 + $0x8] sm:$0x3] %vm642, %v1737
    %v1741 = vrot.slane %v1569, 2
    %1742 = vrot.lane.b32.xlu0 %v1741, 32
    %v1743 = vpop.permute.xlu0 %1742
    %v1744 = vsel %vm165, %v1743, 0
    %1746 = vmatprep.subr.mxu0 0.0
    %1747 = vmatpush1.msra.mxu0 %v253
    %1748 = vmatprep.subr.mxu0 0.0
    %1749 = vmatpush1.msra.mxu0 %v254
    %1750 = vmatprep.subr.mxu0 0.0
    %1751 = vmatpush1.msra.mxu0 %v255
    %1752 = vmatprep.subr.mxu0 0.0
    %1753 = vmatpush1.msra.mxu0 %v256
    %1754 = vmatprep.subr.mxu0 0.0
    %1755 = vmatpush1.msra.mxu0 0.0
    %1756 = vmatprep.subr.mxu0 0.0
    %1757 = vmatpush1.msra.mxu0 0.0
    %1758 = vmatprep.subr.mxu0 0.0
    %1759 = vmatpush1.msra.mxu0 0.0
    %1760 = vmatprep.subr.mxu0 0.0
    %1761 = vmatpush1.msra.mxu0 0.0
    %1762 = vmatprep.subr.mxu0 0.0
    %1763 = vmatpush1.msra.mxu0 0.0
    %1764 = vmatprep.subr.mxu0 0.0
    %1765 = vmatpush1.msra.mxu0 0.0
    %1766 = vmatprep.subr.mxu0 0.0
    %1767 = vmatpush1.msra.mxu0 0.0
    %1768 = vmatprep.subr.mxu0 0.0
    %1769 = vmatpush1.msra.mxu0 0.0
    %1770 = vmatprep.subr.mxu0 0.0
    %1771 = vmatpush1.msra.mxu0 0.0
    %1772 = vmatprep.subr.mxu0 0.0
    %1773 = vmatpush1.msra.mxu0 0.0
    %1774 = vmatprep.subr.mxu0 0.0
    %1775 = vmatpush1.msra.mxu0 0.0
    %1776 = vmatprep.subr.mxu0 0.0
    %1777 = vmatpush1.msra.mxu0 0.0
    %1778 = vmatprep.subr.mxu0 0.0
    %1779 = vmatpush1.msra.mxu0 0.0
    %1780 = vmatprep.subr.mxu0 0.0
    %1781 = vmatpush1.msra.mxu0 0.0
    %1782 = vmatprep.subr.mxu0 0.0
    %1783 = vmatpush1.msra.mxu0 0.0
    %1784 = vmatprep.subr.mxu0 0.0
    %1785 = vmatpush1.msra.mxu0 0.0
    %1786 = vmatprep.subr.mxu0 0.0
    %1787 = vmatpush1.msra.mxu0 0.0
    %1788 = vmatprep.subr.mxu0 0.0
    %1789 = vmatpush1.msra.mxu0 0.0
    %1790 = vmatprep.subr.mxu0 0.0
    %1791 = vmatpush1.msra.mxu0 0.0
    %1792 = vmatprep.subr.mxu0 0.0
    %1793 = vmatpush1.msra.mxu0 0.0
    %1794 = vmatprep.subr.mxu0 0.0
    %1795 = vmatpush1.msra.mxu0 0.0
    %1796 = vmatprep.subr.mxu0 0.0
    %1797 = vmatpush1.msra.mxu0 0.0
    %1798 = vmatprep.subr.mxu0 0.0
    %1799 = vmatpush1.msra.mxu0 0.0
    %1800 = vmatprep.subr.mxu0 0.0
    %1801 = vmatpush1.msra.mxu0 0.0
    %1802 = vmatprep.subr.mxu0 0.0
    %1803 = vmatpush1.msra.mxu0 0.0
    %1804 = vmatprep.subr.mxu0 0.0
    %1805 = vmatpush1.msra.mxu0 0.0
    %1806 = vmatprep.subr.mxu0 0.0
    %1807 = vmatpush1.msra.mxu0 0.0
    %1808 = vmatprep.subr.mxu0 0.0
    %1809 = vmatpush1.msra.mxu0 0.0
    %1810 = vmatprep.mubr.f32.mxu0 0.0
    %1811 = vmatmul.mubr.f32.gmra.mrb[0].mxu0 %v1744
    %v1812 = vpop.f32.mrb[0].mxu0
    %v1813 = vadd.f32 0.0, %v1812
    %v1814 = vpop.f32.mrb[0].mxu0
    %1815 = vdwg.mxu0
    %v1817 = vrot.slane %v1813, 4
    %v1819 = vadd.f32 %v244, %v1817
    %v1820 = vmul.f32 %v1819, %v252
    %v1821 = vtanh.pop %v1820
    %v1822 = vmul.f32 %v1821, 0.5
    %v1823 = vadd.f32 %v1822, 0.5
    %v1824 = vsel %vm251, %v1821, %v1823
    %v1826 = vrot.slane %v1563, 6
    %v1828 = vmul.f32 %v1824, %v1826
    %1830 = vrot.lane.b32.xlu0 %v1824, 64
    %v1831 = vpop.permute.xlu0 %1830
    %v1833 = vmul.f32 %v1824, %v1831
    %1835 = vrot.lane.b32.xlu0 %v1833, 32
    %v1836 = vpop.permute.xlu0 %1835
    %v1838 = vadd.f32 %v1828, %v1836
    %v1839 = vtanh.pop %v1838
    %1841 = vrot.lane.b32.xlu0 %v1839, 64
    %v1842 = vpop.permute.xlu0 %1841
    %v1844 = vmul.f32 %v1824, %v1842
    %v1845 = vsel %vm165, %v1737, 0
    %1847 = vmatprep.subr.mxu0 0.0
    %1848 = vmatpush1.msra.mxu0 %v258
    %1849 = vmatprep.subr.mxu0 0.0
    %1850 = vmatpush1.msra.mxu0 %v259
    %1851 = vmatprep.subr.mxu0 0.0
    %1852 = vmatpush1.msra.mxu0 %v260
    %1853 = vmatprep.subr.mxu0 0.0
    %1854 = vmatpush1.msra.mxu0 %v261
    %1855 = vmatprep.subr.mxu0 0.0
    %1856 = vmatpush1.msra.mxu0 0.0
    %1857 = vmatprep.subr.mxu0 0.0
    %1858 = vmatpush1.msra.mxu0 0.0
    %1859 = vmatprep.subr.mxu0 0.0
    %1860 = vmatpush1.msra.mxu0 0.0
    %1861 = vmatprep.subr.mxu0 0.0
    %1862 = vmatpush1.msra.mxu0 0.0
    %1863 = vmatprep.subr.mxu0 0.0
    %1864 = vmatpush1.msra.mxu0 0.0
    %1865 = vmatprep.subr.mxu0 0.0
    %1866 = vmatpush1.msra.mxu0 0.0
    %1867 = vmatprep.subr.mxu0 0.0
    %1868 = vmatpush1.msra.mxu0 0.0
    %1869 = vmatprep.subr.mxu0 0.0
    %1870 = vmatpush1.msra.mxu0 0.0
    %1871 = vmatprep.subr.mxu0 0.0
    %1872 = vmatpush1.msra.mxu0 0.0
    %1873 = vmatprep.subr.mxu0 0.0
    %1874 = vmatpush1.msra.mxu0 0.0
    %1875 = vmatprep.subr.mxu0 0.0
    %1876 = vmatpush1.msra.mxu0 0.0
    %1877 = vmatprep.subr.mxu0 0.0
    %1878 = vmatpush1.msra.mxu0 0.0
    %1879 = vmatprep.subr.mxu0 0.0
    %1880 = vmatpush1.msra.mxu0 0.0
    %1881 = vmatprep.subr.mxu0 0.0
    %1882 = vmatpush1.msra.mxu0 0.0
    %1883 = vmatprep.subr.mxu0 0.0
    %1884 = vmatpush1.msra.mxu0 0.0
    %1885 = vmatprep.subr.mxu0 0.0
    %1886 = vmatpush1.msra.mxu0 0.0
    %1887 = vmatprep.subr.mxu0 0.0
    %1888 = vmatpush1.msra.mxu0 0.0
    %1889 = vmatprep.subr.mxu0 0.0
    %1890 = vmatpush1.msra.mxu0 0.0
    %1891 = vmatprep.subr.mxu0 0.0
    %1892 = vmatpush1.msra.mxu0 0.0
    %1893 = vmatprep.subr.mxu0 0.0
    %1894 = vmatpush1.msra.mxu0 0.0
    %1895 = vmatprep.subr.mxu0 0.0
    %1896 = vmatpush1.msra.mxu0 0.0
    %1897 = vmatprep.subr.mxu0 0.0
    %1898 = vmatpush1.msra.mxu0 0.0
    %1899 = vmatprep.subr.mxu0 0.0
    %1900 = vmatpush1.msra.mxu0 0.0
    %1901 = vmatprep.subr.mxu0 0.0
    %1902 = vmatpush1.msra.mxu0 0.0
    %1903 = vmatprep.subr.mxu0 0.0
    %1904 = vmatpush1.msra.mxu0 0.0
    %1905 = vmatprep.subr.mxu0 0.0
    %1906 = vmatpush1.msra.mxu0 0.0
    %1907 = vmatprep.subr.mxu0 0.0
    %1908 = vmatpush1.msra.mxu0 0.0
    %1909 = vmatprep.subr.mxu0 0.0
    %1910 = vmatpush1.msra.mxu0 0.0
    %1911 = vmatprep.mubr.f32.mxu0 0.0
    %1912 = vmatmul.mubr.f32.gmra.mrb[0].mxu0 %v1845
    %v1913 = vpop.f32.mrb[0].mxu0
    %v1914 = vadd.f32 0.0, %v1913
    %v1915 = vpop.f32.mrb[0].mxu0
    %1916 = vdwg.mxu0
    %1917 = vmatprep.subr.mxu0 0.0
    %1918 = vmatpush1.msra.mxu0 %v263
    %1919 = vmatprep.subr.mxu0 0.0
    %1920 = vmatpush1.msra.mxu0 %v264
    %1921 = vmatprep.subr.mxu0 0.0
    %1922 = vmatpush1.msra.mxu0 %v265
    %1923 = vmatprep.subr.mxu0 0.0
    %1924 = vmatpush1.msra.mxu0 %v266
    %1925 = vmatprep.subr.mxu0 0.0
    %1926 = vmatpush1.msra.mxu0 0.0
    %1927 = vmatprep.subr.mxu0 0.0
    %1928 = vmatpush1.msra.mxu0 0.0
    %1929 = vmatprep.subr.mxu0 0.0
    %1930 = vmatpush1.msra.mxu0 0.0
    %1931 = vmatprep.subr.mxu0 0.0
    %1932 = vmatpush1.msra.mxu0 0.0
    %1933 = vmatprep.subr.mxu0 0.0
    %1934 = vmatpush1.msra.mxu0 0.0
    %1935 = vmatprep.subr.mxu0 0.0
    %1936 = vmatpush1.msra.mxu0 0.0
    %1937 = vmatprep.subr.mxu0 0.0
    %1938 = vmatpush1.msra.mxu0 0.0
    %1939 = vmatprep.subr.mxu0 0.0
    %1940 = vmatpush1.msra.mxu0 0.0
    %1941 = vmatprep.subr.mxu0 0.0
    %1942 = vmatpush1.msra.mxu0 0.0
    %1943 = vmatprep.subr.mxu0 0.0
    %1944 = vmatpush1.msra.mxu0 0.0
    %1945 = vmatprep.subr.mxu0 0.0
    %1946 = vmatpush1.msra.mxu0 0.0
    %1947 = vmatprep.subr.mxu0 0.0
    %1948 = vmatpush1.msra.mxu0 0.0
    %1949 = vmatprep.subr.mxu0 0.0
    %1950 = vmatpush1.msra.mxu0 0.0
    %1951 = vmatprep.subr.mxu0 0.0
    %1952 = vmatpush1.msra.mxu0 0.0
    %1953 = vmatprep.subr.mxu0 0.0
    %1954 = vmatpush1.msra.mxu0 0.0
    %1955 = vmatprep.subr.mxu0 0.0
    %1956 = vmatpush1.msra.mxu0 0.0
    %1957 = vmatprep.subr.mxu0 0.0
    %1958 = vmatpush1.msra.mxu0 0.0
    %1959 = vmatprep.subr.mxu0 0.0
    %1960 = vmatpush1.msra.mxu0 0.0
    %1961 = vmatprep.subr.mxu0 0.0
    %1962 = vmatpush1.msra.mxu0 0.0
    %1963 = vmatprep.subr.mxu0 0.0
    %1964 = vmatpush1.msra.mxu0 0.0
    %1965 = vmatprep.subr.mxu0 0.0
    %1966 = vmatpush1.msra.mxu0 0.0
    %1967 = vmatprep.subr.mxu0 0.0
    %1968 = vmatpush1.msra.mxu0 0.0
    %1969 = vmatprep.subr.mxu0 0.0
    %1970 = vmatpush1.msra.mxu0 0.0
    %1971 = vmatprep.subr.mxu0 0.0
    %1972 = vmatpush1.msra.mxu0 0.0
    %1973 = vmatprep.subr.mxu0 0.0
    %1974 = vmatpush1.msra.mxu0 0.0
    %1975 = vmatprep.subr.mxu0 0.0
    %1976 = vmatpush1.msra.mxu0 0.0
    %1977 = vmatprep.subr.mxu0 0.0
    %1978 = vmatpush1.msra.mxu0 0.0
    %1979 = vmatprep.subr.mxu0 0.0
    %1980 = vmatpush1.msra.mxu0 0.0
    %1981 = vmatprep.mubr.f32.mxu0 0.0
    %1982 = vmatmul.mubr.f32.gmra.mrb[0].mxu0 %v1744
    %v1983 = vpop.f32.mrb[0].mxu0
    %v1984 = vadd.f32 %v1914, %v1983
    %v1985 = vpop.f32.mrb[0].mxu0
    %1986 = vdwg.mxu0
    %v1987 = vadd.f32 %v1984, %v273
    %v1988 = vmul.f32 %v1987, %v252
    %v1989 = vtanh.pop %v1988
    %v1990 = vmul.f32 %v1989, 0.5
    %v1991 = vadd.f32 %v1990, 0.5
    %v1992 = vsel %vm251, %v1989, %v1991
    %v1993 = vmul.f32 %v1992, %v1728
    %1995 = vrot.lane.b32.xlu0 %v1992, 64
    %v1996 = vpop.permute.xlu0 %1995
    %v1998 = vmul.f32 %v1992, %v1996
    %2000 = vrot.lane.b32.xlu0 %v1998, 32
    %v2001 = vpop.permute.xlu0 %2000
    %v2003 = vadd.f32 %v1993, %v2001
    %v2004 = vtanh.pop %v2003
    %2006 = vrot.lane.b32.xlu0 %v2004, 64
    %v2007 = vpop.permute.xlu0 %2006
    %v2009 = vmul.f32 %v1992, %v2007
    %2011 = vrot.lane.b32.xlu0 %v2009, 32
    %v2012 = vpop.permute.xlu0 %2011
    %2014 = vst.msk [vmem:[#allocation2 + $0xa] sm:$0x3] %vm642, %v2012
    %v2016 = vrot.slane %v1844, 4
    %2017 = vrot.lane.b32.xlu0 %v2016, 32
    %v2018 = vpop.permute.xlu0 %2017
    %v2019 = vsel %vm165, %v2018, 0
    %2021 = vmatprep.subr.mxu0 0.0
    %2022 = vmatpush1.msra.mxu0 %v253
    %2023 = vmatprep.subr.mxu0 0.0
    %2024 = vmatpush1.msra.mxu0 %v254
    %2025 = vmatprep.subr.mxu0 0.0
    %2026 = vmatpush1.msra.mxu0 %v255
    %2027 = vmatprep.subr.mxu0 0.0
    %2028 = vmatpush1.msra.mxu0 %v256
    %2029 = vmatprep.subr.mxu0 0.0
    %2030 = vmatpush1.msra.mxu0 0.0
    %2031 = vmatprep.subr.mxu0 0.0
    %2032 = vmatpush1.msra.mxu0 0.0
    %2033 = vmatprep.subr.mxu0 0.0
    %2034 = vmatpush1.msra.mxu0 0.0
    %2035 = vmatprep.subr.mxu0 0.0
    %2036 = vmatpush1.msra.mxu0 0.0
    %2037 = vmatprep.subr.mxu0 0.0
    %2038 = vmatpush1.msra.mxu0 0.0
    %2039 = vmatprep.subr.mxu0 0.0
    %2040 = vmatpush1.msra.mxu0 0.0
    %2041 = vmatprep.subr.mxu0 0.0
    %2042 = vmatpush1.msra.mxu0 0.0
    %2043 = vmatprep.subr.mxu0 0.0
    %2044 = vmatpush1.msra.mxu0 0.0
    %2045 = vmatprep.subr.mxu0 0.0
    %2046 = vmatpush1.msra.mxu0 0.0
    %2047 = vmatprep.subr.mxu0 0.0
    %2048 = vmatpush1.msra.mxu0 0.0
    %2049 = vmatprep.subr.mxu0 0.0
    %2050 = vmatpush1.msra.mxu0 0.0
    %2051 = vmatprep.subr.mxu0 0.0
    %2052 = vmatpush1.msra.mxu0 0.0
    %2053 = vmatprep.subr.mxu0 0.0
    %2054 = vmatpush1.msra.mxu0 0.0
    %2055 = vmatprep.subr.mxu0 0.0
    %2056 = vmatpush1.msra.mxu0 0.0
    %2057 = vmatprep.subr.mxu0 0.0
    %2058 = vmatpush1.msra.mxu0 0.0
    %2059 = vmatprep.subr.mxu0 0.0
    %2060 = vmatpush1.msra.mxu0 0.0
    %2061 = vmatprep.subr.mxu0 0.0
    %2062 = vmatpush1.msra.mxu0 0.0
    %2063 = vmatprep.subr.mxu0 0.0
    %2064 = vmatpush1.msra.mxu0 0.0
    %2065 = vmatprep.subr.mxu0 0.0
    %2066 = vmatpush1.msra.mxu0 0.0
    %2067 = vmatprep.subr.mxu0 0.0
    %2068 = vmatpush1.msra.mxu0 0.0
    %2069 = vmatprep.subr.mxu0 0.0
    %2070 = vmatpush1.msra.mxu0 0.0
    %2071 = vmatprep.subr.mxu0 0.0
    %2072 = vmatpush1.msra.mxu0 0.0
    %2073 = vmatprep.subr.mxu0 0.0
    %2074 = vmatpush1.msra.mxu0 0.0
    %2075 = vmatprep.subr.mxu0 0.0
    %2076 = vmatpush1.msra.mxu0 0.0
    %2077 = vmatprep.subr.mxu0 0.0
    %2078 = vmatpush1.msra.mxu0 0.0
    %2079 = vmatprep.subr.mxu0 0.0
    %2080 = vmatpush1.msra.mxu0 0.0
    %2081 = vmatprep.subr.mxu0 0.0
    %2082 = vmatpush1.msra.mxu0 0.0
    %2083 = vmatprep.subr.mxu0 0.0
    %2084 = vmatpush1.msra.mxu0 0.0
    %2085 = vmatprep.mubr.f32.mxu0 0.0
    %2086 = vmatmul.mubr.f32.gmra.mrb[0].mxu0 %v2019
    %v2087 = vpop.f32.mrb[0].mxu0
    %v2088 = vadd.f32 0.0, %v2087
    %v2089 = vpop.f32.mrb[0].mxu0
    %2090 = vdwg.mxu0
    %v2092 = vrot.slane %v2088, 2
    %v2094 = vadd.f32 %v244, %v2092
    %v2095 = vmul.f32 %v2094, %v252
    %v2096 = vtanh.pop %v2095
    %v2097 = vmul.f32 %v2096, 0.5
    %v2098 = vadd.f32 %v2097, 0.5
    %v2099 = vsel %vm251, %v2096, %v2098
    %v2101 = vrot.slane %v1838, 6
    %v2103 = vmul.f32 %v2099, %v2101
    %2105 = vrot.lane.b32.xlu0 %v2099, 64
    %v2106 = vpop.permute.xlu0 %2105
    %v2108 = vmul.f32 %v2099, %v2106
    %2110 = vrot.lane.b32.xlu0 %v2108, 32
    %v2111 = vpop.permute.xlu0 %2110
    %v2113 = vadd.f32 %v2103, %v2111
    %v2114 = vtanh.pop %v2113
    %2116 = vrot.lane.b32.xlu0 %v2114, 64
    %v2117 = vpop.permute.xlu0 %2116
    %v2119 = vmul.f32 %v2099, %v2117
    %v2120 = vsel %vm165, %v2012, 0
    %2122 = vmatprep.subr.mxu0 0.0
    %2123 = vmatpush1.msra.mxu0 %v258
    %2124 = vmatprep.subr.mxu0 0.0
    %2125 = vmatpush1.msra.mxu0 %v259
    %2126 = vmatprep.subr.mxu0 0.0
    %2127 = vmatpush1.msra.mxu0 %v260
    %2128 = vmatprep.subr.mxu0 0.0
    %2129 = vmatpush1.msra.mxu0 %v261
    %2130 = vmatprep.subr.mxu0 0.0
    %2131 = vmatpush1.msra.mxu0 0.0
    %2132 = vmatprep.subr.mxu0 0.0
    %2133 = vmatpush1.msra.mxu0 0.0
    %2134 = vmatprep.subr.mxu0 0.0
    %2135 = vmatpush1.msra.mxu0 0.0
    %2136 = vmatprep.subr.mxu0 0.0
    %2137 = vmatpush1.msra.mxu0 0.0
    %2138 = vmatprep.subr.mxu0 0.0
    %2139 = vmatpush1.msra.mxu0 0.0
    %2140 = vmatprep.subr.mxu0 0.0
    %2141 = vmatpush1.msra.mxu0 0.0
    %2142 = vmatprep.subr.mxu0 0.0
    %2143 = vmatpush1.msra.mxu0 0.0
    %2144 = vmatprep.subr.mxu0 0.0
    %2145 = vmatpush1.msra.mxu0 0.0
    %2146 = vmatprep.subr.mxu0 0.0
    %2147 = vmatpush1.msra.mxu0 0.0
    %2148 = vmatprep.subr.mxu0 0.0
    %2149 = vmatpush1.msra.mxu0 0.0
    %2150 = vmatprep.subr.mxu0 0.0
    %2151 = vmatpush1.msra.mxu0 0.0
    %2152 = vmatprep.subr.mxu0 0.0
    %2153 = vmatpush1.msra.mxu0 0.0
    %2154 = vmatprep.subr.mxu0 0.0
    %2155 = vmatpush1.msra.mxu0 0.0
    %2156 = vmatprep.subr.mxu0 0.0
    %2157 = vmatpush1.msra.mxu0 0.0
    %2158 = vmatprep.subr.mxu0 0.0
    %2159 = vmatpush1.msra.mxu0 0.0
    %2160 = vmatprep.subr.mxu0 0.0
    %2161 = vmatpush1.msra.mxu0 0.0
    %2162 = vmatprep.subr.mxu0 0.0
    %2163 = vmatpush1.msra.mxu0 0.0
    %2164 = vmatprep.subr.mxu0 0.0
    %2165 = vmatpush1.msra.mxu0 0.0
    %2166 = vmatprep.subr.mxu0 0.0
    %2167 = vmatpush1.msra.mxu0 0.0
    %2168 = vmatprep.subr.mxu0 0.0
    %2169 = vmatpush1.msra.mxu0 0.0
    %2170 = vmatprep.subr.mxu0 0.0
    %2171 = vmatpush1.msra.mxu0 0.0
    %2172 = vmatprep.subr.mxu0 0.0
    %2173 = vmatpush1.msra.mxu0 0.0
    %2174 = vmatprep.subr.mxu0 0.0
    %2175 = vmatpush1.msra.mxu0 0.0
    %2176 = vmatprep.subr.mxu0 0.0
    %2177 = vmatpush1.msra.mxu0 0.0
    %2178 = vmatprep.subr.mxu0 0.0
    %2179 = vmatpush1.msra.mxu0 0.0
    %2180 = vmatprep.subr.mxu0 0.0
    %2181 = vmatpush1.msra.mxu0 0.0
    %2182 = vmatprep.subr.mxu0 0.0
    %2183 = vmatpush1.msra.mxu0 0.0
    %2184 = vmatprep.subr.mxu0 0.0
    %2185 = vmatpush1.msra.mxu0 0.0
    %2186 = vmatprep.mubr.f32.mxu0 0.0
    %2187 = vmatmul.mubr.f32.gmra.mrb[0].mxu0 %v2120
    %v2188 = vpop.f32.mrb[0].mxu0
    %v2189 = vadd.f32 0.0, %v2188
    %v2190 = vpop.f32.mrb[0].mxu0
    %2191 = vdwg.mxu0
    %2192 = vmatprep.subr.mxu0 0.0
    %2193 = vmatpush1.msra.mxu0 %v263
    %2194 = vmatprep.subr.mxu0 0.0
    %2195 = vmatpush1.msra.mxu0 %v264
    %2196 = vmatprep.subr.mxu0 0.0
    %2197 = vmatpush1.msra.mxu0 %v265
    %2198 = vmatprep.subr.mxu0 0.0
    %2199 = vmatpush1.msra.mxu0 %v266
    %2200 = vmatprep.subr.mxu0 0.0
    %2201 = vmatpush1.msra.mxu0 0.0
    %2202 = vmatprep.subr.mxu0 0.0
    %2203 = vmatpush1.msra.mxu0 0.0
    %2204 = vmatprep.subr.mxu0 0.0
    %2205 = vmatpush1.msra.mxu0 0.0
    %2206 = vmatprep.subr.mxu0 0.0
    %2207 = vmatpush1.msra.mxu0 0.0
    %2208 = vmatprep.subr.mxu0 0.0
    %2209 = vmatpush1.msra.mxu0 0.0
    %2210 = vmatprep.subr.mxu0 0.0
    %2211 = vmatpush1.msra.mxu0 0.0
    %2212 = vmatprep.subr.mxu0 0.0
    %2213 = vmatpush1.msra.mxu0 0.0
    %2214 = vmatprep.subr.mxu0 0.0
    %2215 = vmatpush1.msra.mxu0 0.0
    %2216 = vmatprep.subr.mxu0 0.0
    %2217 = vmatpush1.msra.mxu0 0.0
    %2218 = vmatprep.subr.mxu0 0.0
    %2219 = vmatpush1.msra.mxu0 0.0
    %2220 = vmatprep.subr.mxu0 0.0
    %2221 = vmatpush1.msra.mxu0 0.0
    %2222 = vmatprep.subr.mxu0 0.0
    %2223 = vmatpush1.msra.mxu0 0.0
    %2224 = vmatprep.subr.mxu0 0.0
    %2225 = vmatpush1.msra.mxu0 0.0
    %2226 = vmatprep.subr.mxu0 0.0
    %2227 = vmatpush1.msra.mxu0 0.0
    %2228 = vmatprep.subr.mxu0 0.0
    %2229 = vmatpush1.msra.mxu0 0.0
    %2230 = vmatprep.subr.mxu0 0.0
    %2231 = vmatpush1.msra.mxu0 0.0
    %2232 = vmatprep.subr.mxu0 0.0
    %2233 = vmatpush1.msra.mxu0 0.0
    %2234 = vmatprep.subr.mxu0 0.0
    %2235 = vmatpush1.msra.mxu0 0.0
    %2236 = vmatprep.subr.mxu0 0.0
    %2237 = vmatpush1.msra.mxu0 0.0
    %2238 = vmatprep.subr.mxu0 0.0
    %2239 = vmatpush1.msra.mxu0 0.0
    %2240 = vmatprep.subr.mxu0 0.0
    %2241 = vmatpush1.msra.mxu0 0.0
    %2242 = vmatprep.subr.mxu0 0.0
    %2243 = vmatpush1.msra.mxu0 0.0
    %2244 = vmatprep.subr.mxu0 0.0
    %2245 = vmatpush1.msra.mxu0 0.0
    %2246 = vmatprep.subr.mxu0 0.0
    %2247 = vmatpush1.msra.mxu0 0.0
    %2248 = vmatprep.subr.mxu0 0.0
    %2249 = vmatpush1.msra.mxu0 0.0
    %2250 = vmatprep.subr.mxu0 0.0
    %2251 = vmatpush1.msra.mxu0 0.0
    %2252 = vmatprep.subr.mxu0 0.0
    %2253 = vmatpush1.msra.mxu0 0.0
    %2254 = vmatprep.subr.mxu0 0.0
    %2255 = vmatpush1.msra.mxu0 0.0
    %2256 = vmatprep.mubr.f32.mxu0 0.0
    %2257 = vmatmul.mubr.f32.gmra.mrb[0].mxu0 %v2019
    %v2258 = vpop.f32.mrb[0].mxu0
    %v2259 = vadd.f32 %v2189, %v2258
    %v2260 = vpop.f32.mrb[0].mxu0
    %2261 = vdwg.mxu0
    %v2262 = vadd.f32 %v2259, %v273
    %v2263 = vmul.f32 %v2262, %v252
    %v2264 = vtanh.pop %v2263
    %v2265 = vmul.f32 %v2264, 0.5
    %v2266 = vadd.f32 %v2265, 0.5
    %v2267 = vsel %vm251, %v2264, %v2266
    %v2268 = vmul.f32 %v2267, %v2003
    %2270 = vrot.lane.b32.xlu0 %v2267, 64
    %v2271 = vpop.permute.xlu0 %2270
    %v2273 = vmul.f32 %v2267, %v2271
    %2275 = vrot.lane.b32.xlu0 %v2273, 32
    %v2276 = vpop.permute.xlu0 %2275
    %v2278 = vadd.f32 %v2268, %v2276
    %v2279 = vtanh.pop %v2278
    %2281 = vrot.lane.b32.xlu0 %v2279, 64
    %v2282 = vpop.permute.xlu0 %2281
    %v2284 = vmul.f32 %v2267, %v2282
    %2286 = vrot.lane.b32.xlu0 %v2284, 32
    %v2287 = vpop.permute.xlu0 %2286
    %2289 = vst.msk [vmem:[#allocation2 + $0xc] sm:$0x3] %vm642, %v2287
    %v2290 = vsel %vm165, %v2287, 0
    %2292 = vmatprep.subr.mxu0 0.0
    %2293 = vmatpush1.msra.mxu0 %v258
    %2294 = vmatprep.subr.mxu0 0.0
    %2295 = vmatpush1.msra.mxu0 %v259
    %2296 = vmatprep.subr.mxu0 0.0
    %2297 = vmatpush1.msra.mxu0 %v260
    %2298 = vmatprep.subr.mxu0 0.0
    %2299 = vmatpush1.msra.mxu0 %v261
    %2300 = vmatprep.subr.mxu0 0.0
    %2301 = vmatpush1.msra.mxu0 0.0
    %2302 = vmatprep.subr.mxu0 0.0
    %2303 = vmatpush1.msra.mxu0 0.0
    %2304 = vmatprep.subr.mxu0 0.0
    %2305 = vmatpush1.msra.mxu0 0.0
    %2306 = vmatprep.subr.mxu0 0.0
    %2307 = vmatpush1.msra.mxu0 0.0
    %2308 = vmatprep.subr.mxu0 0.0
    %2309 = vmatpush1.msra.mxu0 0.0
    %2310 = vmatprep.subr.mxu0 0.0
    %2311 = vmatpush1.msra.mxu0 0.0
    %2312 = vmatprep.subr.mxu0 0.0
    %2313 = vmatpush1.msra.mxu0 0.0
    %2314 = vmatprep.subr.mxu0 0.0
    %2315 = vmatpush1.msra.mxu0 0.0
    %2316 = vmatprep.subr.mxu0 0.0
    %2317 = vmatpush1.msra.mxu0 0.0
    %2318 = vmatprep.subr.mxu0 0.0
    %2319 = vmatpush1.msra.mxu0 0.0
    %2320 = vmatprep.subr.mxu0 0.0
    %2321 = vmatpush1.msra.mxu0 0.0
    %2322 = vmatprep.subr.mxu0 0.0
    %2323 = vmatpush1.msra.mxu0 0.0
    %2324 = vmatprep.subr.mxu0 0.0
    %2325 = vmatpush1.msra.mxu0 0.0
    %2326 = vmatprep.subr.mxu0 0.0
    %2327 = vmatpush1.msra.mxu0 0.0
    %2328 = vmatprep.subr.mxu0 0.0
    %2329 = vmatpush1.msra.mxu0 0.0
    %2330 = vmatprep.subr.mxu0 0.0
    %2331 = vmatpush1.msra.mxu0 0.0
    %2332 = vmatprep.subr.mxu0 0.0
    %2333 = vmatpush1.msra.mxu0 0.0
    %2334 = vmatprep.subr.mxu0 0.0
    %2335 = vmatpush1.msra.mxu0 0.0
    %2336 = vmatprep.subr.mxu0 0.0
    %2337 = vmatpush1.msra.mxu0 0.0
    %2338 = vmatprep.subr.mxu0 0.0
    %2339 = vmatpush1.msra.mxu0 0.0
    %2340 = vmatprep.subr.mxu0 0.0
    %2341 = vmatpush1.msra.mxu0 0.0
    %2342 = vmatprep.subr.mxu0 0.0
    %2343 = vmatpush1.msra.mxu0 0.0
    %2344 = vmatprep.subr.mxu0 0.0
    %2345 = vmatpush1.msra.mxu0 0.0
    %2346 = vmatprep.subr.mxu0 0.0
    %2347 = vmatpush1.msra.mxu0 0.0
    %2348 = vmatprep.subr.mxu0 0.0
    %2349 = vmatpush1.msra.mxu0 0.0
    %2350 = vmatprep.subr.mxu0 0.0
    %2351 = vmatpush1.msra.mxu0 0.0
    %2352 = vmatprep.subr.mxu0 0.0
    %2353 = vmatpush1.msra.mxu0 0.0
    %2354 = vmatprep.subr.mxu0 0.0
    %2355 = vmatpush1.msra.mxu0 0.0
    %2356 = vmatprep.mubr.f32.mxu0 0.0
    %2357 = vmatmul.mubr.f32.gmra.mrb[0].mxu0 %v2290
    %v2358 = vpop.f32.mrb[0].mxu0
    %v2359 = vadd.f32 0.0, %v2358
    %v2360 = vpop.f32.mrb[0].mxu0
    %2361 = vdwg.mxu0
    %v2363 = vrot.slane %v2119, 6
    %2364 = vrot.lane.b32.xlu0 %v2363, 32
    %v2365 = vpop.permute.xlu0 %2364
    %v2366 = vsel %vm165, %v2365, 0
    %2368 = vmatprep.subr.mxu0 0.0
    %2369 = vmatpush1.msra.mxu0 %v263
    %2370 = vmatprep.subr.mxu0 0.0
    %2371 = vmatpush1.msra.mxu0 %v264
    %2372 = vmatprep.subr.mxu0 0.0
    %2373 = vmatpush1.msra.mxu0 %v265
    %2374 = vmatprep.subr.mxu0 0.0
    %2375 = vmatpush1.msra.mxu0 %v266
    %2376 = vmatprep.subr.mxu0 0.0
    %2377 = vmatpush1.msra.mxu0 0.0
    %2378 = vmatprep.subr.mxu0 0.0
    %2379 = vmatpush1.msra.mxu0 0.0
    %2380 = vmatprep.subr.mxu0 0.0
    %2381 = vmatpush1.msra.mxu0 0.0
    %2382 = vmatprep.subr.mxu0 0.0
    %2383 = vmatpush1.msra.mxu0 0.0
    %2384 = vmatprep.subr.mxu0 0.0
    %2385 = vmatpush1.msra.mxu0 0.0
    %2386 = vmatprep.subr.mxu0 0.0
    %2387 = vmatpush1.msra.mxu0 0.0
    %2388 = vmatprep.subr.mxu0 0.0
    %2389 = vmatpush1.msra.mxu0 0.0
    %2390 = vmatprep.subr.mxu0 0.0
    %2391 = vmatpush1.msra.mxu0 0.0
    %2392 = vmatprep.subr.mxu0 0.0
    %2393 = vmatpush1.msra.mxu0 0.0
    %2394 = vmatprep.subr.mxu0 0.0
    %2395 = vmatpush1.msra.mxu0 0.0
    %2396 = vmatprep.subr.mxu0 0.0
    %2397 = vmatpush1.msra.mxu0 0.0
    %2398 = vmatprep.subr.mxu0 0.0
    %2399 = vmatpush1.msra.mxu0 0.0
    %2400 = vmatprep.subr.mxu0 0.0
    %2401 = vmatpush1.msra.mxu0 0.0
    %2402 = vmatprep.subr.mxu0 0.0
    %2403 = vmatpush1.msra.mxu0 0.0
    %2404 = vmatprep.subr.mxu0 0.0
    %2405 = vmatpush1.msra.mxu0 0.0
    %2406 = vmatprep.subr.mxu0 0.0
    %2407 = vmatpush1.msra.mxu0 0.0
    %2408 = vmatprep.subr.mxu0 0.0
    %2409 = vmatpush1.msra.mxu0 0.0
    %2410 = vmatprep.subr.mxu0 0.0
    %2411 = vmatpush1.msra.mxu0 0.0
    %2412 = vmatprep.subr.mxu0 0.0
    %2413 = vmatpush1.msra.mxu0 0.0
    %2414 = vmatprep.subr.mxu0 0.0
    %2415 = vmatpush1.msra.mxu0 0.0
    %2416 = vmatprep.subr.mxu0 0.0
    %2417 = vmatpush1.msra.mxu0 0.0
    %2418 = vmatprep.subr.mxu0 0.0
    %2419 = vmatpush1.msra.mxu0 0.0
    %2420 = vmatprep.subr.mxu0 0.0
    %2421 = vmatpush1.msra.mxu0 0.0
    %2422 = vmatprep.subr.mxu0 0.0
    %2423 = vmatpush1.msra.mxu0 0.0
    %2424 = vmatprep.subr.mxu0 0.0
    %2425 = vmatpush1.msra.mxu0 0.0
    %2426 = vmatprep.subr.mxu0 0.0
    %2427 = vmatpush1.msra.mxu0 0.0
    %2428 = vmatprep.subr.mxu0 0.0
    %2429 = vmatpush1.msra.mxu0 0.0
    %2430 = vmatprep.subr.mxu0 0.0
    %2431 = vmatpush1.msra.mxu0 0.0
    %2432 = vmatprep.mubr.f32.mxu0 0.0
    %2433 = vmatmul.mubr.f32.gmra.mrb[0].mxu0 %v2366
    %v2434 = vpop.f32.mrb[0].mxu0
    %v2435 = vadd.f32 %v2359, %v2434
    %v2436 = vpop.f32.mrb[0].mxu0
    %2437 = vdwg.mxu0
    %v2438 = vadd.f32 %v2435, %v273
    %v2439 = vmul.f32 %v2438, %v252
    %v2440 = vtanh.pop %v2439
    %v2441 = vmul.f32 %v2440, 0.5
    %v2442 = vadd.f32 %v2441, 0.5
    %v2443 = vsel %vm251, %v2440, %v2442
    %v2444 = vmul.f32 %v2443, %v2278
    %2446 = vrot.lane.b32.xlu0 %v2443, 64
    %v2447 = vpop.permute.xlu0 %2446
    %v2449 = vmul.f32 %v2443, %v2447
    %2451 = vrot.lane.b32.xlu0 %v2449, 32
    %v2452 = vpop.permute.xlu0 %2451
    %v2454 = vadd.f32 %v2444, %v2452
    %v2455 = vtanh.pop %v2454
    %2457 = vrot.lane.b32.xlu0 %v2455, 64
    %v2458 = vpop.permute.xlu0 %2457
    %v2460 = vmul.f32 %v2443, %v2458
    %2462 = vrot.lane.b32.xlu0 %v2460, 32
    %v2463 = vpop.permute.xlu0 %2462
    %2465 = vst.msk [vmem:[#allocation2 + $0xe] sm:$0x3] %vm642, %v2463
    %v2466 = vld [vmem:[#allocation2] sm:$0xff]
    %v2467 = vld [vmem:[#allocation2 + $0x8] sm:$0xff]
    %v2468 = vld [vmem:[%s6] sm:$0xff]
    %v2469 = vld [vmem:[%s6 + $0x8] sm:$0xff]
    %v2470 = vld [vmem:[%s6 + $0x10] sm:$0xff]
    %v2471 = vld [vmem:[%s6 + $0x18] sm:$0xff]
    %v2472 = vld [vmem:[%s7] sm:$0x1]
    %v2474 = vlaneseq
    %v2475 = vshrl.u32 %v2474, 7
    %v2476 = vsub.s32 0, %v2475
    %v2477 = vrot.slane %v2472, %v2476
    %v2480 = vsel %vm165, %v2466, 0
    %v2483 = vsel %vm165, %v2467, 0
    %2485 = vmatprep.subr.mxu0 0.0
    %2486 = vmatpush1.msra.mxu0 %v2468
    %2487 = vmatprep.subr.mxu0 0.0
    %2488 = vmatpush1.msra.mxu0 %v2469
    %2489 = vmatprep.subr.mxu0 0.0
    %2490 = vmatpush1.msra.mxu0 %v2470
    %2491 = vmatprep.subr.mxu0 0.0
    %2492 = vmatpush1.msra.mxu0 %v2471
    %2493 = vmatprep.subr.mxu0 0.0
    %2494 = vmatpush1.msra.mxu0 0.0
    %2495 = vmatprep.subr.mxu0 0.0
    %2496 = vmatpush1.msra.mxu0 0.0
    %2497 = vmatprep.subr.mxu0 0.0
    %2498 = vmatpush1.msra.mxu0 0.0
    %2499 = vmatprep.subr.mxu0 0.0
    %2500 = vmatpush1.msra.mxu0 0.0
    %2501 = vmatprep.subr.mxu0 0.0
    %2502 = vmatpush1.msra.mxu0 0.0
    %2503 = vmatprep.subr.mxu0 0.0
    %2504 = vmatpush1.msra.mxu0 0.0
    %2505 = vmatprep.subr.mxu0 0.0
    %2506 = vmatpush1.msra.mxu0 0.0
    %2507 = vmatprep.subr.mxu0 0.0
    %2508 = vmatpush1.msra.mxu0 0.0
    %2509 = vmatprep.subr.mxu0 0.0
    %2510 = vmatpush1.msra.mxu0 0.0
    %2511 = vmatprep.subr.mxu0 0.0
    %2512 = vmatpush1.msra.mxu0 0.0
    %2513 = vmatprep.subr.mxu0 0.0
    %2514 = vmatpush1.msra.mxu0 0.0
    %2515 = vmatprep.subr.mxu0 0.0
    %2516 = vmatpush1.msra.mxu0 0.0
    %2517 = vmatprep.subr.mxu0 0.0
    %2518 = vmatpush1.msra.mxu0 0.0
    %2519 = vmatprep.subr.mxu0 0.0
    %2520 = vmatpush1.msra.mxu0 0.0
    %2521 = vmatprep.subr.mxu0 0.0
    %2522 = vmatpush1.msra.mxu0 0.0
    %2523 = vmatprep.subr.mxu0 0.0
    %2524 = vmatpush1.msra.mxu0 0.0
    %2525 = vmatprep.subr.mxu0 0.0
    %2526 = vmatpush1.msra.mxu0 0.0
    %2527 = vmatprep.subr.mxu0 0.0
    %2528 = vmatpush1.msra.mxu0 0.0
    %2529 = vmatprep.subr.mxu0 0.0
    %2530 = vmatpush1.msra.mxu0 0.0
    %2531 = vmatprep.subr.mxu0 0.0
    %2532 = vmatpush1.msra.mxu0 0.0
    %2533 = vmatprep.subr.mxu0 0.0
    %2534 = vmatpush1.msra.mxu0 0.0
    %2535 = vmatprep.subr.mxu0 0.0
    %2536 = vmatpush1.msra.mxu0 0.0
    %2537 = vmatprep.subr.mxu0 0.0
    %2538 = vmatpush1.msra.mxu0 0.0
    %2539 = vmatprep.subr.mxu0 0.0
    %2540 = vmatpush1.msra.mxu0 0.0
    %2541 = vmatprep.subr.mxu0 0.0
    %2542 = vmatpush1.msra.mxu0 0.0
    %2543 = vmatprep.subr.mxu0 0.0
    %2544 = vmatpush1.msra.mxu0 0.0
    %2545 = vmatprep.subr.mxu0 0.0
    %2546 = vmatpush1.msra.mxu0 0.0
    %2547 = vmatprep.subr.mxu0 0.0
    %2548 = vmatpush1.msra.mxu0 0.0
    %2549 = vmatprep.mubr.f32.mxu0 0.0
    %2550 = vmatmul.mubr.f32.gmra.mrb[0].mxu0 %v2480
    %v2551 = vpop.f32.mrb[0].mxu0
    %v2552 = vadd.f32 %v2477, %v2551
    %v2553 = vpop.f32.mrb[0].mxu0
    %2554 = vmatprep.mubr.f32.mxu0 0.0
    %2555 = vmatmul.mubr.f32.gmra.mrb[0].mxu0 %v2483
    %v2556 = vpop.f32.mrb[0].mxu0
    %v2557 = vadd.f32 %v2477, %v2556
    %v2558 = vpop.f32.mrb[0].mxu0
    %2559 = vdwg.mxu0
    %2560 = vst [vmem:[#allocation8] sm:$0xff] %v2552
    %2561 = vst [vmem:[#allocation8 + $0x8] sm:$0xff] %v2557
    // Predicated region
    $region42: #{tpu_custom_call.1} parent=1 // pred_check
      _
    $region43: #{tpu_custom_call.1} parent=1 // pred_check_branch
      %2563 = sbr.rel (0) target = $region45
    $region44: #{tpu_custom_call.1} parent=1 // pred_region
      %s2565 = ssub.s32 256, 256
      %2566 = vsyncadd [#allocation5], %s2565
      %s2567 = sshll.u32 [#allocation8], 4
      %s2568 = int_to_ptr.vmem [resolvable:$true] %s2567
      %2573 = dma.vmem_to_hbm [thread:$0]  %s2568, 256, %s8, [#allocation5], 128, 128, 8
    $region45: #{tpu_custom_call.1} parent=1 // pred_fallthru
      _
    // Predicated region
    $region46: #{tpu_custom_call.1} parent=1 // pred_check
      _
    $region47: #{tpu_custom_call.1} parent=1 // pred_check_branch
      %2575 = sbr.rel (0) target = $region49
    $region48: #{tpu_custom_call.1} parent=1 // pred_region
      %2576 = dma.done [#allocation5], 256
    $region49: #{tpu_custom_call.1} parent=1 // pred_fallthru
      _
    %2577 = vsyncpa [#allocation4], 1
    %2578 = vsyncpa [#allocation7], 1
    %2579 = vsyncpa [#allocation5], 1

</llo_original>
